<compile_context>
chip_gen: v5e
topology: v5e:2x2
jax: 0.10.0
libtpu: 0.0.40
codegen_flags: <defaults>
</compile_context>

<pallas_src>
import jax
import jax.numpy as jnp
from jax import lax
from jax.experimental import pallas as pl
from jax.experimental.pallas import tpu as pltpu

_EPS = 1e-10           # distance floor for self-pairs (exact interpolation at data points)
_EPS2 = _EPS * _EPS    # same floor expressed in squared-distance space


def _make_idw_kernel(power: float):
    """Build the row-block kernel, specialized on the (static) scalar power parameter."""
    p = float(power)

    def kernel(xs_blk_ref, xs_t_ref, rhs_t_ref, yint_ref, covar_ref):
        xs_blk = xs_blk_ref[...]           # (TM, D)  ARD-scaled coords for this row block
        xs_t = xs_t_ref[...]               # (D, N)   ARD-scaled coords, transposed, full-resident
        d_dims = xs_blk.shape[1]

        # Pairwise squared distances: D unrolled VPU broadcast passes, exact 0 on self pairs.
        # d = 0 initializes dist2 directly (no zeros-broadcast + add pass).
        diff = xs_blk[:, 0:1] - xs_t[0:1, :]                 # (TM,1) - (1,N) -> (TM,N)
        dist2 = diff * diff
        for d in range(1, d_dims):
            diff = xs_blk[:, d:d + 1] - xs_t[d:d + 1, :]
            dist2 = dist2 + diff * diff
        dist2_safe = jnp.maximum(dist2, _EPS2)

        # covar = dist_safe^(-p) == dist2_safe^(-p/2), no sqrt needed.
        if p == 2.0:
            covar = pl.reciprocal(dist2_safe, approx=True)   # EUP vrcp, ~2^-12 rel err
        elif p == 4.0:
            r = pl.reciprocal(dist2_safe, approx=True)       # NOTE: overflows f32 on self pairs
            covar = r * r
        else:
            covar = jnp.exp((-0.5 * p) * jnp.log(dist2_safe))  # generic (non-even) power
        covar_ref[...] = covar

        # Fused matvecs: covar (TM,N) x rhs_t (2,N)^T -> (TM,2) in one MXU pass
        # (transposed-B contraction, same dimension_numbers as flash-attention q@k.T).
        out2 = lax.dot_general(
            covar, rhs_t_ref[...],
            dimension_numbers=(((1,), (1,)), ((), ())),
            precision=lax.Precision.HIGHEST,
            preferred_element_type=jnp.float32,
        )                                                    # (TM, 2)
        numer = out2[:, 0:1]
        denom = out2[:, 1:2]
        yint_ref[...] = numer * pl.reciprocal(denom, approx=True)   # EUP slot, otherwise idle

    return kernel


def _select_tile_and_vmem(N, D, block_rows):
    """Generation-aware row-tile + vmem_limit selection against the physical VMEM budget."""
    lane, sub = 128, 8
    try:
        vmem_phys = int(pltpu.get_tpu_info().vmem_capacity_bytes)   # 64 MiB v7x, 128 MiB v5e/v6e
    except Exception:
        vmem_phys = 64 << 20                                        # conservative (v7x-sized)
    budget = int(vmem_phys * 0.8)                                   # ~20% headroom

    n_lanes = -(-N // lane) * lane
    # Constant-index residents, conservatively counted double-buffered:
    #   xs_t (D,N) -> (8, n_lanes) f32, rhs_t (2,N) -> (8, n_lanes) f32.
    resident = 2 * 2 * (sub * n_lanes * 4)
    # Per-row cost of the tile, double-buffered:
    #   covar out (tm, n_lanes) + y_int out (tm, 1->128 lanes) + xs in (tm, D->128 lanes).
    per_row = 2 * (n_lanes + lane + lane) * 4

    tm_cap = max(sub, (budget - resident) // per_row)
    tm = min(int(block_rows), N, int(tm_cap))
    # Keep >= ~4 grid steps so megacore sharding + writeback/compute overlap have work.
    if N >= 4 * sub:
        tm = min(tm, max(sub, N // 4))
    # Alignment: multiples of 256 when large (MXU sublane alignment), else multiples of 8.
    if tm >= 256:
        tm = (tm // 256) * 256
    elif N >= sub:
        tm = max(sub, (tm // sub) * sub)
    else:
        tm = N                                                      # tiny-N edge case
    tm = max(1, min(tm, N))

    used = resident + per_row * tm
    vmem_limit = int(min(vmem_phys * 0.9, max(used * 1.25, 32 << 20)))
    vmem_limit = max(vmem_limit, used + (1 << 20))
    return tm, vmem_limit


def adj_weighted_inverse_distance_forward(x, c, y, lengthscale, power, *, block_rows=512):
    """Wrapper: row-tiled pallas_call.  `power` is specialized at trace time (Python float)."""
    N, D = x.shape
    x = x.astype(jnp.float32)
    c = c.astype(jnp.float32)
    y = y.astype(jnp.float32)

    # Layout plumbing in the wrapper (O(N*D) / O(N), negligible): ARD scaling, transposes, fused RHS.
    inv_ls = (1.0 / lengthscale.astype(jnp.float32)).reshape(1, D)
    xs = x * inv_ls                                         # (N, D)
    xs_t = xs.T                                             # (D, N)
    rhs_t = jnp.concatenate([(y * c).T, c.T], axis=0)       # (2, N): rows = [y*c, c]

    tm, vmem_limit = _select_tile_and_vmem(N, D, block_rows)
    grid = (pl.cdiv(N, tm),)

    y_int, covar = pl.pallas_call(
        _make_idw_kernel(float(power)),
        grid=grid,
        in_specs=[
            pl.BlockSpec((tm, D), lambda i: (i, 0)),        # xs row block
            pl.BlockSpec((D, N), lambda i: (0, 0)),         # xs_t, full-resident (constant index)
            pl.BlockSpec((2, N), lambda i: (0, 0)),         # rhs_t, full-resident (constant index)
        ],
        out_specs=(
            pl.BlockSpec((tm, 1), lambda i: (i, 0)),        # y_int rows
            pl.BlockSpec((tm, N), lambda i: (i, 0)),        # covar row block (lane-dense writeback)
        ),
        out_shape=(
            jax.ShapeDtypeStruct((N, 1), jnp.float32),
            jax.ShapeDtypeStruct((N, N), jnp.float32),
        ),
        compiler_params=pltpu.CompilerParams(
            dimension_semantics=("parallel",),
            vmem_limit_bytes=vmem_limit,
        ),
    )(xs, xs_t, rhs_t)
    return y_int, covar


def _reference_forward(x, c, y, lengthscale, power):
    """Pure-JAX reference matching the PyTorch module's forward semantics."""
    xs = x / lengthscale.reshape(1, -1)
    diff = xs[:, None, :] - xs[None, :, :]
    dist = jnp.sqrt(jnp.maximum(jnp.sum(diff * diff, axis=-1), 0.0))
    dist_safe = jnp.where(dist < _EPS, _EPS, dist)
    covar = dist_safe ** (-power)
    numer = jnp.matmul(covar, y * c, precision=lax.Precision.HIGHEST)
    denom = jnp.matmul(covar, jnp.ones_like(y) * c, precision=lax.Precision.HIGHEST)
    return numer / denom, covar


if __name__ == "__main__":
    key = jax.random.PRNGKey(0)
    kx, ky, kc = jax.random.split(key, 3)

    N, D = 512, 3  # D = 3 ARD dims (the Interval constraint has 3 entries)

    # Deterministic parameters (synthetic init, no checkpoint):
    #   raw lengthscale param = 0 -> Interval midpoint; power = 2.0.
    low = jnp.array([24.6, 24.6, 5.0], jnp.float32)
    high = jnp.array([40.13, 40.13, 13.0], jnp.float32)
    lengthscale = (low + high) / 2.0
    power = 2.0

    # Example inputs: coordinates inside the constrained box, targets y, adjustment weights c.
    u = jax.random.uniform(kx, (N, D), dtype=jnp.float32)
    x = low + u * (high - low)
    y = jax.random.normal(ky, (N, 1), dtype=jnp.float32)
    c = 1.0 + jax.random.uniform(kc, (N, 1), dtype=jnp.float32)

    y_int, covar = adj_weighted_inverse_distance_forward(x, c, y, lengthscale, power)
    jax.block_until_ready((y_int, covar))

    # Sanity checks against a pure-JAX reference.
    y_ref, covar_ref = _reference_forward(x, c, y, lengthscale, power)
    assert y_int.shape == (N, 1) and covar.shape == (N, N)
    assert bool(jnp.all(jnp.isfinite(y_int)))
    assert bool(jnp.allclose(y_int, y_ref, rtol=1e-2, atol=1e-3))
    assert bool(jnp.allclose(covar, covar_ref, rtol=1e-2, atol=0.0))

    print("KERNEL_OK")
</pallas_src>

<mosaic_0001>
module attributes {stable_mosaic.version = 11 : i64} {
  func.func @kernel(%arg0: i32, %arg1: memref<128x3xf32, #tpu.memory_space<vmem>>, %arg2: memref<3x512xf32, #tpu.memory_space<vmem>>, %arg3: memref<2x512xf32, #tpu.memory_space<vmem>>, %arg4: memref<128x1xf32, #tpu.memory_space<vmem>>, %arg5: memref<128x512xf32, #tpu.memory_space<vmem>>) attributes {dimension_semantics = [#tpu.dimension_semantics<parallel>], iteration_bounds = array<i64: 4>, scalar_prefetch = 0 : i64, scratch_operands = 0 : i64, tpu.core_type = #tpu.core_type<tc>, window_params = [{transform_indices = @transform_0, window_bounds = array<i64: 128, 3>}, {pipeline_mode = #tpu.pipeline_mode<synchronous>, transform_indices = @transform_1, window_bounds = array<i64: 3, 512>}, {pipeline_mode = #tpu.pipeline_mode<synchronous>, transform_indices = @transform_2, window_bounds = array<i64: 2, 512>}, {transform_indices = @transform_3, window_bounds = array<i64: 128, 1>}, {transform_indices = @transform_4, window_bounds = array<i64: 128, 512>}]} {
    %c0 = arith.constant 0 : index
    %c0_0 = arith.constant 0 : index
    %0 = vector.load %arg1[%c0, %c0_0] : memref<128x3xf32, #tpu.memory_space<vmem>>, vector<128x3xf32>
    %c0_1 = arith.constant 0 : index
    %c0_2 = arith.constant 0 : index
    %1 = vector.load %arg2[%c0_1, %c0_2] : memref<3x512xf32, #tpu.memory_space<vmem>>, vector<3x512xf32>
    %2 = vector.extract_strided_slice %0 {offsets = [0, 0], sizes = [128, 1], strides = [1, 1]} : vector<128x3xf32> to vector<128x1xf32>
    %3 = vector.extract_strided_slice %1 {offsets = [0, 0], sizes = [1, 512], strides = [1, 1]} : vector<3x512xf32> to vector<1x512xf32>
    %4 = vector.broadcast %2 : vector<128x1xf32> to vector<128x512xf32>
    %5 = vector.broadcast %3 : vector<1x512xf32> to vector<128x512xf32>
    %6 = arith.subf %4, %5 : vector<128x512xf32>
    %7 = arith.mulf %6, %6 : vector<128x512xf32>
    %8 = vector.extract_strided_slice %0 {offsets = [0, 1], sizes = [128, 1], strides = [1, 1]} : vector<128x3xf32> to vector<128x1xf32>
    %9 = vector.extract_strided_slice %1 {offsets = [1, 0], sizes = [1, 512], strides = [1, 1]} : vector<3x512xf32> to vector<1x512xf32>
    %10 = vector.broadcast %8 : vector<128x1xf32> to vector<128x512xf32>
    %11 = vector.broadcast %9 : vector<1x512xf32> to vector<128x512xf32>
    %12 = arith.subf %10, %11 : vector<128x512xf32>
    %13 = arith.mulf %12, %12 : vector<128x512xf32>
    %14 = arith.addf %7, %13 : vector<128x512xf32>
    %15 = vector.extract_strided_slice %0 {offsets = [0, 2], sizes = [128, 1], strides = [1, 1]} : vector<128x3xf32> to vector<128x1xf32>
    %16 = vector.extract_strided_slice %1 {offsets = [2, 0], sizes = [1, 512], strides = [1, 1]} : vector<3x512xf32> to vector<1x512xf32>
    %17 = vector.broadcast %15 : vector<128x1xf32> to vector<128x512xf32>
    %18 = vector.broadcast %16 : vector<1x512xf32> to vector<128x512xf32>
    %19 = arith.subf %17, %18 : vector<128x512xf32>
    %20 = arith.mulf %19, %19 : vector<128x512xf32>
    %21 = arith.addf %14, %20 : vector<128x512xf32>
    %cst = arith.constant 9.99999968E-21 : f32
    %22 = vector.broadcast %cst : f32 to vector<128x512xf32>
    %23 = arith.maximumf %21, %22 : vector<128x512xf32>
    %24 = tpu.reciprocal %23 {approx = true} : vector<128x512xf32> -> vector<128x512xf32>
    %c0_3 = arith.constant 0 : index
    %c0_4 = arith.constant 0 : index
    %25 = vector.load %arg5[%c0_3, %c0_4] : memref<128x512xf32, #tpu.memory_space<vmem>>, vector<128x512xf32>
    tpu.vector_store %arg5[%c0_3, %c0_4], %24 {strides = array<i32>} : memref<128x512xf32, #tpu.memory_space<vmem>>, vector<128x512xf32>,
    %c0_5 = arith.constant 0 : index
    %c0_6 = arith.constant 0 : index
    %26 = vector.load %arg3[%c0_5, %c0_6] : memref<2x512xf32, #tpu.memory_space<vmem>>, vector<2x512xf32>
    %cst_7 = arith.constant dense<0.000000e+00> : vector<128x2xf32>
    %27 = tpu.matmul %24, %26, %cst_7 {dimension_numbers = #tpu.dot_dimension_numbers<[1], [1], [0], [0], [0, 0, 1, 0], [], []>, precision = #tpu.contract_precision<fp32>} : vector<128x512xf32>, vector<2x512xf32>, vector<128x2xf32> -> vector<128x2xf32>
    %28 = vector.extract_strided_slice %27 {offsets = [0, 0], sizes = [128, 1], strides = [1, 1]} : vector<128x2xf32> to vector<128x1xf32>
    %29 = vector.extract_strided_slice %27 {offsets = [0, 1], sizes = [128, 1], strides = [1, 1]} : vector<128x2xf32> to vector<128x1xf32>
    %30 = tpu.reciprocal %29 {approx = true} : vector<128x1xf32> -> vector<128x1xf32>
    %31 = arith.mulf %28, %30 : vector<128x1xf32>
    %c0_8 = arith.constant 0 : index
    %c0_9 = arith.constant 0 : index
    %32 = vector.load %arg4[%c0_8, %c0_9] : memref<128x1xf32, #tpu.memory_space<vmem>>, vector<128x1xf32>
    tpu.vector_store %arg4[%c0_8, %c0_9], %31 {strides = array<i32>} : memref<128x1xf32, #tpu.memory_space<vmem>>, vector<128x1xf32>,
    return
  }
  func.func @transform_0(%arg0: i32) -> (i32, i32) {
    %c0_i32 = arith.constant 0 : i32
    %c0_i32_0 = arith.constant 0 : i32
    return %arg0, %c0_i32 : i32, i32
  }
  func.func @transform_1(%arg0: i32) -> (i32, i32) {
    %c0_i32 = arith.constant 0 : i32
    %c0_i32_0 = arith.constant 0 : i32
    %c0_i32_1 = arith.constant 0 : i32
    return %c0_i32, %c0_i32_0 : i32, i32
  }
  func.func @transform_2(%arg0: i32) -> (i32, i32) {
    %c0_i32 = arith.constant 0 : i32
    %c0_i32_0 = arith.constant 0 : i32
    %c0_i32_1 = arith.constant 0 : i32
    return %c0_i32, %c0_i32_0 : i32, i32
  }
  func.func @transform_3(%arg0: i32) -> (i32, i32) {
    %c0_i32 = arith.constant 0 : i32
    %c0_i32_0 = arith.constant 0 : i32
    return %arg0, %c0_i32 : i32, i32
  }
  func.func @transform_4(%arg0: i32) -> (i32, i32) {
    %c0_i32 = arith.constant 0 : i32
    %c0_i32_0 = arith.constant 0 : i32
    return %arg0, %c0_i32 : i32, i32
  }
}

</mosaic_0001>

<llo_original>
// kernel: tpu_custom_call.1
$region0: #{tpu_custom_call.1}
  #allocation0 [shape = 'u32[]', space=smem, size = 0x4, offset = 0x4, fixed_abs, tag = 'smem constant byte address 0x4 - core index']
  #allocation1 [shape = 'u32[72,128]{1,0:T(1,128)}', space=vmem, size = 0x9000, scoped, tag = 'internal scratch']
  %s0 = inlined_call_operand.vmem [shape: f32[512,3], index: 0, kind: input, shape index: {}]
  %s1 = inlined_call_operand.vmem [shape: f32[3,512], index: 1, kind: input, shape index: {}]
  %s2 = inlined_call_operand.vmem [shape: f32[2,512], index: 2, kind: input, shape index: {}]
  %s3 = inlined_call_operand.vmem [shape: f32[512,1], index: 3, kind: output, shape index: {0}]
  %s4 = inlined_call_operand.hbm [shape: f32[512,512], index: 4, kind: output, shape index: {1}]
  %5 = xla_tuple %s3, %s4
  %s6 = sld [smem:[#allocation0]]
  $region53: #{tpu_custom_call.1} parent=0
    _
  %s8 = ssub.s32 1, %s6
  %s9 = scalar_select 0, %s8, %s6
  $region1: #{tpu_custom_call.1} parent=0
    #allocation2 [shape = 'u8[524288]{0}', space=vmem, size = 0x80000, scoped, tag = 'output window, operand 1']
    #allocation3 [shape = 's32[2]{0}', space=sflag, size = 0x8, scoped, tag = 'scoped memory for tpu_custom_call.1']
    %10 = vsyncpa [#allocation3], 0
    %s11 = scalar_lea.sflag [#allocation3], 1
    %12 = vsyncpa %s11, 0
    loop: start=0, step=1, limit=6
    $region2: #{tpu_custom_call.1} parent=1 // loop_pre_header
      _
    $region3: #{tpu_custom_call.1} parent=1 // loop_header
      %s14 = sphi 0, %s18
      %p15 = scmp.ge.s32.totalorder %s14, 6
      %s24 = sphi 0, %s26
      %s27 = sphi 0, %s24
      %s28 = sphi 0, %s27
      %s44 = sphi 0, %s28
      %s48 = sphi 0, %s48
      %s50 = sphi 0, %s48
      %s51 = sphi 0, %s50
      %s65 = sphi 0, %s51
      %s69 = sphi 0, %s69
      %s71 = sphi 0, %s69
      %s72 = sphi 0, %s71
      %s86 = sphi 0, %s72
      %s92 = sphi 0, %s94
      %s95 = sphi 0, %s92
      %s96 = sphi 0, %s95
      %s112 = sphi 0, %s96
      %s118 = sphi 0, %s120
      %s121 = sphi 0, %s118
      %s122 = sphi 0, %s121
      %s138 = sphi 0, %s122
    $region4: #{tpu_custom_call.1} parent=1 // loop_header_branch
      %17 = sbr.rel (%p15) target = $region8
    $region5: #{tpu_custom_call.1} parent=1 // loop_body
      %s19 = ssub.s32 %s14, 1
      %s20 = ssub.s32 %s14, 2
      %s21 = sadd.s32 %s14, 1
      %s22 = ssub.s32 %s14, %s21
      %p23 = scmp.eq.s32.totalorder %s22, 0
      %s25 = sadd.s32 %s24, 1
      %s26 = scalar_select %p23, %s24, %s25
      %p29 = pneg %p23
      %p30 = scmp.eq.s32.totalorder %s14, 3
      %p31 = por %p29, %p30
      %p32 = scmp.ne.s32.totalorder %s24, %s27
      %p33 = scmp.eq.s32.totalorder %s14, 0
      %p34 = por %p32, %p33
      %p35 = scmp.ne.s32.totalorder %s24, %s27
      %p36 = scmp.eq.s32.totalorder %s19, 3
      %p37 = por %p35, %p36
      %p38 = scmp.ne.s32.totalorder %s27, %s28
      %p39 = scmp.eq.s32.totalorder %s19, 0
      %p40 = por %p38, %p39
      %p41 = scmp.ne.s32.totalorder %s27, %s28
      %p42 = scmp.eq.s32.totalorder %s20, 3
      %p43 = por %p41, %p42
      %p45 = scmp.ne.s32.totalorder %s28, %s44
      %p46 = scmp.eq.s32.totalorder %s20, 0
      %p47 = por %p45, %p46
      %s49 = sadd.s32 %s48, 1
      %p52 = scmp.eq.s32.totalorder %s14, 3
      %p53 = scmp.ne.s32.totalorder %s48, %s50
      %p54 = scmp.eq.s32.totalorder %s14, 0
      %p55 = por %p53, %p54
      %p56 = scmp.ne.s32.totalorder %s48, %s50
      %p57 = scmp.eq.s32.totalorder %s19, 3
      %p58 = por %p56, %p57
      %p59 = scmp.ne.s32.totalorder %s50, %s51
      %p60 = scmp.eq.s32.totalorder %s19, 0
      %p61 = por %p59, %p60
      %p62 = scmp.ne.s32.totalorder %s50, %s51
      %p63 = scmp.eq.s32.totalorder %s20, 3
      %p64 = por %p62, %p63
      %p66 = scmp.ne.s32.totalorder %s51, %s65
      %p67 = scmp.eq.s32.totalorder %s20, 0
      %p68 = por %p66, %p67
      %s70 = sadd.s32 %s69, 1
      %p73 = scmp.eq.s32.totalorder %s14, 3
      %p74 = scmp.ne.s32.totalorder %s69, %s71
      %p75 = scmp.eq.s32.totalorder %s14, 0
      %p76 = por %p74, %p75
      %p77 = scmp.ne.s32.totalorder %s69, %s71
      %p78 = scmp.eq.s32.totalorder %s19, 3
      %p79 = por %p77, %p78
      %p80 = scmp.ne.s32.totalorder %s71, %s72
      %p81 = scmp.eq.s32.totalorder %s19, 0
      %p82 = por %p80, %p81
      %p83 = scmp.ne.s32.totalorder %s71, %s72
      %p84 = scmp.eq.s32.totalorder %s20, 3
      %p85 = por %p83, %p84
      %p87 = scmp.ne.s32.totalorder %s72, %s86
      %p88 = scmp.eq.s32.totalorder %s20, 0
      %p89 = por %p87, %p88
      %s90 = ssub.s32 %s14, %s21
      %p91 = scmp.eq.s32.totalorder %s90, 0
      %s93 = sadd.s32 %s92, 1
      %s94 = scalar_select %p91, %s92, %s93
      %p97 = pneg %p91
      %p98 = scmp.eq.s32.totalorder %s14, 3
      %p99 = por %p97, %p98
      %p100 = scmp.ne.s32.totalorder %s92, %s95
      %p101 = scmp.eq.s32.totalorder %s14, 0
      %p102 = por %p100, %p101
      %p103 = scmp.ne.s32.totalorder %s92, %s95
      %p104 = scmp.eq.s32.totalorder %s19, 3
      %p105 = por %p103, %p104
      %p106 = scmp.ne.s32.totalorder %s95, %s96
      %p107 = scmp.eq.s32.totalorder %s19, 0
      %p108 = por %p106, %p107
      %p109 = scmp.ne.s32.totalorder %s95, %s96
      %p110 = scmp.eq.s32.totalorder %s20, 3
      %p111 = por %p109, %p110
      %p113 = scmp.ne.s32.totalorder %s96, %s112
      %p114 = scmp.eq.s32.totalorder %s20, 0
      %p115 = por %p113, %p114
      %s116 = ssub.s32 %s14, %s21
      %p117 = scmp.eq.s32.totalorder %s116, 0
      %s119 = sadd.s32 %s118, 1
      %s120 = scalar_select %p117, %s118, %s119
      %p123 = pneg %p117
      %p124 = scmp.eq.s32.totalorder %s14, 3
      %p125 = por %p123, %p124
      %p126 = scmp.ne.s32.totalorder %s118, %s121
      %p127 = scmp.eq.s32.totalorder %s14, 0
      %p128 = por %p126, %p127
      %p129 = scmp.ne.s32.totalorder %s118, %s121
      %p130 = scmp.eq.s32.totalorder %s19, 3
      %p131 = por %p129, %p130
      %p132 = scmp.ne.s32.totalorder %s121, %s122
      %p133 = scmp.eq.s32.totalorder %s19, 0
      %p134 = por %p132, %p133
      %p135 = scmp.ne.s32.totalorder %s121, %s122
      %p136 = scmp.eq.s32.totalorder %s20, 3
      %p137 = por %p135, %p136
      %p139 = scmp.ne.s32.totalorder %s122, %s138
      %p140 = scmp.eq.s32.totalorder %s20, 0
      %p141 = por %p139, %p140
      %p142 = scmp.le.s32.totalorder 1, %s14
      %p143 = scmp.lt.s32.totalorder %s14, 5
      %p144 = pnand %p142, %p143
      %p145 = pneg %p144
      // Predicated region
      $region9: #{tpu_custom_call.1} parent=5 // pred_check
        _
      $region10: #{tpu_custom_call.1} parent=5 // pred_check_branch
        %147 = sbr.rel (%p144) target = $region12
      $region11: #{tpu_custom_call.1} parent=5 // pred_region
        %s148 = ssub.s32 %s14, 1
        // Predicated region
        $region13: #{tpu_custom_call.1} parent=11 // pred_check
          %p149 = pneg %p61
        $region14: #{tpu_custom_call.1} parent=11 // pred_check_branch
          %151 = sbr.rel (%p149) target = $region16
        $region15: #{tpu_custom_call.1} parent=11 // pred_region
          _
        $region16: #{tpu_custom_call.1} parent=11 // pred_fallthru
          _
        // Predicated region
        $region17: #{tpu_custom_call.1} parent=11 // pred_check
          %p152 = pneg %p82
        $region18: #{tpu_custom_call.1} parent=11 // pred_check_branch
          %154 = sbr.rel (%p152) target = $region20
        $region19: #{tpu_custom_call.1} parent=11 // pred_region
          _
        $region20: #{tpu_custom_call.1} parent=11 // pred_fallthru
          _
      $region12: #{tpu_custom_call.1} parent=5 // pred_fallthru
        _
      %p155 = scmp.lt.s32.totalorder %s14, 4
      // Predicated region
      $region21: #{tpu_custom_call.1} parent=5 // pred_check
        %p156 = pneg %p155
      $region22: #{tpu_custom_call.1} parent=5 // pred_check_branch
        %158 = sbr.rel (%p156) target = $region24
      $region23: #{tpu_custom_call.1} parent=5 // pred_region
        // Predicated region
        $region25: #{tpu_custom_call.1} parent=23 // pred_check
          %p159 = pneg %p34
        $region26: #{tpu_custom_call.1} parent=23 // pred_check_branch
          %161 = sbr.rel (%p159) target = $region28
        $region27: #{tpu_custom_call.1} parent=23 // pred_region
          %s162 = smul.u32 16, %s14
          %p163 = scmp.lt.s32.totalorder %s162, 63
          %s164 = scalar_select %p163, %s162, 63
          %s165 = smul.addr %s164, 8
          %s166 = scalar_lea.vmem %s0, %s165
          %s167 = smul.u32 16, %s14
        $region28: #{tpu_custom_call.1} parent=23 // pred_fallthru
          _
      $region24: #{tpu_custom_call.1} parent=5 // pred_fallthru
        _
      %p168 = scmp.le.s32.totalorder 1, %s14
      %p169 = scmp.lt.s32.totalorder %s14, 5
      %p170 = pnand %p168, %p169
      %p171 = pneg %p170
      // Predicated region
      $region29: #{tpu_custom_call.1} parent=5 // pred_check
        _
      $region30: #{tpu_custom_call.1} parent=5 // pred_check_branch
        %173 = sbr.rel (%p170) target = $region32
      $region31: #{tpu_custom_call.1} parent=5 // pred_region
        %s174 = ssub.s32 %s14, 1
        %s175 = smul.u32 16, %s19
        %p176 = scmp.lt.s32.totalorder %s175, 63
        %s177 = scalar_select %p176, %s175, 63
        %s178 = smul.addr %s177, 8
        %s179 = scalar_lea.vmem %s0, %s178
        %p180 = pneg %p40
        %p181 = pneg %p37
        %p182 = pneg %p61
        %p183 = pneg %p58
        %p184 = pneg %p82
        %p185 = pneg %p79
        %p186 = pneg %p108
        %p187 = pneg %p105
        %s188 = smul.u32 16, %s19
        %p189 = scmp.lt.s32.totalorder %s188, 63
        %s190 = scalar_select %p189, %s188, 63
        %s191 = smul.addr %s190, 8
        %s192 = scalar_lea.vmem %s3, %s191
        %p193 = pneg %p134
        %p194 = pneg %p131
        %s195 = sand.u32 %s121, 1
        %s196 = scalar_lea.sflag [#allocation3], %s195
        %s197 = sand.u32 %s121, 1
        %s198 = smul.addr %s197, 512
        %s199 = scalar_lea.vmem [#allocation2], %s198
        %s200 = smul.u32 16, %s19
        %p201 = scmp.lt.s32.totalorder %s200, 63
        %s202 = scalar_select %p201, %s200, 63
        %s203 = smul.addr %s202, 8
        %s204 = scalar_lea.vmem %s0, %s203
        %s205 = smul.u32 16, %s19
        %s206 = smul.u32 16, %s19
        %p207 = scmp.lt.s32.totalorder %s206, 63
        %s208 = scalar_select %p207, %s206, 63
        %s209 = smul.addr %s208, 8
        %s210 = scalar_lea.vmem %s3, %s209
        %s211 = smul.u32 16, %s19
        %s212 = smul.u32 16, %s19
        %v213 = vld [vmem:[%s204] sm:$0xff]
        %v214 = vld [vmem:[%s204 + $0x8] sm:$0xff]
        %v215 = vld [vmem:[%s204 + $0x10] sm:$0xff]
        %v216 = vld [vmem:[%s204 + $0x18] sm:$0xff]
        %v217 = vld [vmem:[%s204 + $0x20] sm:$0xff]
        %v218 = vld [vmem:[%s204 + $0x28] sm:$0xff]
        %v219 = vld [vmem:[%s204 + $0x30] sm:$0xff]
        %v220 = vld [vmem:[%s204 + $0x38] sm:$0xff]
        %v221 = vld [vmem:[%s204 + $0x40] sm:$0xff]
        %v222 = vld [vmem:[%s204 + $0x48] sm:$0xff]
        %v223 = vld [vmem:[%s204 + $0x50] sm:$0xff]
        %v224 = vld [vmem:[%s204 + $0x58] sm:$0xff]
        %v225 = vld [vmem:[%s204 + $0x60] sm:$0xff]
        %v226 = vld [vmem:[%s204 + $0x68] sm:$0xff]
        %v227 = vld [vmem:[%s204 + $0x70] sm:$0xff]
        %v228 = vld [vmem:[%s204 + $0x78] sm:$0xff]
        %v229 = vld [vmem:[%s1] sm:$0x77]
        %v230 = vld [vmem:[%s1 + $0x8] sm:$0x77]
        %232 = vset.pattern.permute.xlu0 0
        %233 = vperm.xlu0 %232, %v213
        %v234 = vpop.permute.xlu0 %233
        %237 = vset.pattern.permute.xlu0 0
        %238 = vperm.xlu0 %237, %v214
        %v239 = vpop.permute.xlu0 %238
        %242 = vset.pattern.permute.xlu0 0
        %243 = vperm.xlu0 %242, %v215
        %v244 = vpop.permute.xlu0 %243
        %247 = vset.pattern.permute.xlu0 0
        %248 = vperm.xlu0 %247, %v216
        %v249 = vpop.permute.xlu0 %248
        %252 = vset.pattern.permute.xlu0 0
        %253 = vperm.xlu0 %252, %v217
        %v254 = vpop.permute.xlu0 %253
        %257 = vset.pattern.permute.xlu0 0
        %258 = vperm.xlu0 %257, %v218
        %v259 = vpop.permute.xlu0 %258
        %262 = vset.pattern.permute.xlu0 0
        %263 = vperm.xlu0 %262, %v219
        %v264 = vpop.permute.xlu0 %263
        %267 = vset.pattern.permute.xlu0 0
        %268 = vperm.xlu0 %267, %v220
        %v269 = vpop.permute.xlu0 %268
        %272 = vset.pattern.permute.xlu0 0
        %273 = vperm.xlu0 %272, %v221
        %v274 = vpop.permute.xlu0 %273
        %277 = vset.pattern.permute.xlu0 0
        %278 = vperm.xlu0 %277, %v222
        %v279 = vpop.permute.xlu0 %278
        %282 = vset.pattern.permute.xlu0 0
        %283 = vperm.xlu0 %282, %v223
        %v284 = vpop.permute.xlu0 %283
        %287 = vset.pattern.permute.xlu0 0
        %288 = vperm.xlu0 %287, %v224
        %v289 = vpop.permute.xlu0 %288
        %292 = vset.pattern.permute.xlu0 0
        %293 = vperm.xlu0 %292, %v225
        %v294 = vpop.permute.xlu0 %293
        %297 = vset.pattern.permute.xlu0 0
        %298 = vperm.xlu0 %297, %v226
        %v299 = vpop.permute.xlu0 %298
        %302 = vset.pattern.permute.xlu0 0
        %303 = vperm.xlu0 %302, %v227
        %v304 = vpop.permute.xlu0 %303
        %307 = vset.pattern.permute.xlu0 0
        %308 = vperm.xlu0 %307, %v228
        %v309 = vpop.permute.xlu0 %308
        %v313 = vperm.slane %v229, 0
        %v314 = vperm.slane %v229, 4
        %v315 = vperm.slane %v230, 0
        %v316 = vperm.slane %v230, 4
        %v321 = vperm.slane %v313, 0
        %v322 = vperm.slane %v314, 0
        %v323 = vperm.slane %v315, 0
        %v324 = vperm.slane %v316, 0
        %v325 = vsub.f32 %v234, %v321
        %v326 = vsub.f32 %v234, %v322
        %v327 = vsub.f32 %v234, %v323
        %v328 = vsub.f32 %v234, %v324
        %v329 = vsub.f32 %v239, %v321
        %v330 = vsub.f32 %v239, %v322
        %v331 = vsub.f32 %v239, %v323
        %v332 = vsub.f32 %v239, %v324
        %v333 = vsub.f32 %v244, %v321
        %v334 = vsub.f32 %v244, %v322
        %v335 = vsub.f32 %v244, %v323
        %v336 = vsub.f32 %v244, %v324
        %v337 = vsub.f32 %v249, %v321
        %v338 = vsub.f32 %v249, %v322
        %v339 = vsub.f32 %v249, %v323
        %v340 = vsub.f32 %v249, %v324
        %v341 = vsub.f32 %v254, %v321
        %v342 = vsub.f32 %v254, %v322
        %v343 = vsub.f32 %v254, %v323
        %v344 = vsub.f32 %v254, %v324
        %v345 = vsub.f32 %v259, %v321
        %v346 = vsub.f32 %v259, %v322
        %v347 = vsub.f32 %v259, %v323
        %v348 = vsub.f32 %v259, %v324
        %v349 = vsub.f32 %v264, %v321
        %v350 = vsub.f32 %v264, %v322
        %v351 = vsub.f32 %v264, %v323
        %v352 = vsub.f32 %v264, %v324
        %v353 = vsub.f32 %v269, %v321
        %v354 = vsub.f32 %v269, %v322
        %v355 = vsub.f32 %v269, %v323
        %v356 = vsub.f32 %v269, %v324
        %v357 = vsub.f32 %v274, %v321
        %v358 = vsub.f32 %v274, %v322
        %v359 = vsub.f32 %v274, %v323
        %v360 = vsub.f32 %v274, %v324
        %v361 = vsub.f32 %v279, %v321
        %v362 = vsub.f32 %v279, %v322
        %v363 = vsub.f32 %v279, %v323
        %v364 = vsub.f32 %v279, %v324
        %v365 = vsub.f32 %v284, %v321
        %v366 = vsub.f32 %v284, %v322
        %v367 = vsub.f32 %v284, %v323
        %v368 = vsub.f32 %v284, %v324
        %v369 = vsub.f32 %v289, %v321
        %v370 = vsub.f32 %v289, %v322
        %v371 = vsub.f32 %v289, %v323
        %v372 = vsub.f32 %v289, %v324
        %v373 = vsub.f32 %v294, %v321
        %v374 = vsub.f32 %v294, %v322
        %v375 = vsub.f32 %v294, %v323
        %v376 = vsub.f32 %v294, %v324
        %v377 = vsub.f32 %v299, %v321
        %v378 = vsub.f32 %v299, %v322
        %v379 = vsub.f32 %v299, %v323
        %v380 = vsub.f32 %v299, %v324
        %v381 = vsub.f32 %v304, %v321
        %v382 = vsub.f32 %v304, %v322
        %v383 = vsub.f32 %v304, %v323
        %v384 = vsub.f32 %v304, %v324
        %v385 = vsub.f32 %v309, %v321
        %v386 = vsub.f32 %v309, %v322
        %v387 = vsub.f32 %v309, %v323
        %v388 = vsub.f32 %v309, %v324
        %v389 = vmul.f32 %v325, %v325
        %v390 = vmul.f32 %v326, %v326
        %v391 = vmul.f32 %v327, %v327
        %v392 = vmul.f32 %v328, %v328
        %v393 = vmul.f32 %v329, %v329
        %v394 = vmul.f32 %v330, %v330
        %v395 = vmul.f32 %v331, %v331
        %v396 = vmul.f32 %v332, %v332
        %v397 = vmul.f32 %v333, %v333
        %v398 = vmul.f32 %v334, %v334
        %v399 = vmul.f32 %v335, %v335
        %v400 = vmul.f32 %v336, %v336
        %v401 = vmul.f32 %v337, %v337
        %v402 = vmul.f32 %v338, %v338
        %v403 = vmul.f32 %v339, %v339
        %v404 = vmul.f32 %v340, %v340
        %v405 = vmul.f32 %v341, %v341
        %v406 = vmul.f32 %v342, %v342
        %v407 = vmul.f32 %v343, %v343
        %v408 = vmul.f32 %v344, %v344
        %v409 = vmul.f32 %v345, %v345
        %v410 = vmul.f32 %v346, %v346
        %v411 = vmul.f32 %v347, %v347
        %v412 = vmul.f32 %v348, %v348
        %v413 = vmul.f32 %v349, %v349
        %v414 = vmul.f32 %v350, %v350
        %v415 = vmul.f32 %v351, %v351
        %v416 = vmul.f32 %v352, %v352
        %v417 = vmul.f32 %v353, %v353
        %v418 = vmul.f32 %v354, %v354
        %v419 = vmul.f32 %v355, %v355
        %v420 = vmul.f32 %v356, %v356
        %v421 = vmul.f32 %v357, %v357
        %v422 = vmul.f32 %v358, %v358
        %v423 = vmul.f32 %v359, %v359
        %v424 = vmul.f32 %v360, %v360
        %v425 = vmul.f32 %v361, %v361
        %v426 = vmul.f32 %v362, %v362
        %v427 = vmul.f32 %v363, %v363
        %v428 = vmul.f32 %v364, %v364
        %v429 = vmul.f32 %v365, %v365
        %v430 = vmul.f32 %v366, %v366
        %v431 = vmul.f32 %v367, %v367
        %v432 = vmul.f32 %v368, %v368
        %v433 = vmul.f32 %v369, %v369
        %v434 = vmul.f32 %v370, %v370
        %v435 = vmul.f32 %v371, %v371
        %v436 = vmul.f32 %v372, %v372
        %v437 = vmul.f32 %v373, %v373
        %v438 = vmul.f32 %v374, %v374
        %v439 = vmul.f32 %v375, %v375
        %v440 = vmul.f32 %v376, %v376
        %v441 = vmul.f32 %v377, %v377
        %v442 = vmul.f32 %v378, %v378
        %v443 = vmul.f32 %v379, %v379
        %v444 = vmul.f32 %v380, %v380
        %v445 = vmul.f32 %v381, %v381
        %v446 = vmul.f32 %v382, %v382
        %v447 = vmul.f32 %v383, %v383
        %v448 = vmul.f32 %v384, %v384
        %v449 = vmul.f32 %v385, %v385
        %v450 = vmul.f32 %v386, %v386
        %v451 = vmul.f32 %v387, %v387
        %v452 = vmul.f32 %v388, %v388
        %453 = vset.pattern.permute.xlu0 1
        %454 = vperm.xlu0 %453, %v213
        %v455 = vpop.permute.xlu0 %454
        %457 = vset.pattern.permute.xlu0 1
        %458 = vperm.xlu0 %457, %v214
        %v459 = vpop.permute.xlu0 %458
        %461 = vset.pattern.permute.xlu0 1
        %462 = vperm.xlu0 %461, %v215
        %v463 = vpop.permute.xlu0 %462
        %465 = vset.pattern.permute.xlu0 1
        %466 = vperm.xlu0 %465, %v216
        %v467 = vpop.permute.xlu0 %466
        %469 = vset.pattern.permute.xlu0 1
        %470 = vperm.xlu0 %469, %v217
        %v471 = vpop.permute.xlu0 %470
        %473 = vset.pattern.permute.xlu0 1
        %474 = vperm.xlu0 %473, %v218
        %v475 = vpop.permute.xlu0 %474
        %477 = vset.pattern.permute.xlu0 1
        %478 = vperm.xlu0 %477, %v219
        %v479 = vpop.permute.xlu0 %478
        %481 = vset.pattern.permute.xlu0 1
        %482 = vperm.xlu0 %481, %v220
        %v483 = vpop.permute.xlu0 %482
        %485 = vset.pattern.permute.xlu0 1
        %486 = vperm.xlu0 %485, %v221
        %v487 = vpop.permute.xlu0 %486
        %489 = vset.pattern.permute.xlu0 1
        %490 = vperm.xlu0 %489, %v222
        %v491 = vpop.permute.xlu0 %490
        %493 = vset.pattern.permute.xlu0 1
        %494 = vperm.xlu0 %493, %v223
        %v495 = vpop.permute.xlu0 %494
        %497 = vset.pattern.permute.xlu0 1
        %498 = vperm.xlu0 %497, %v224
        %v499 = vpop.permute.xlu0 %498
        %501 = vset.pattern.permute.xlu0 1
        %502 = vperm.xlu0 %501, %v225
        %v503 = vpop.permute.xlu0 %502
        %505 = vset.pattern.permute.xlu0 1
        %506 = vperm.xlu0 %505, %v226
        %v507 = vpop.permute.xlu0 %506
        %509 = vset.pattern.permute.xlu0 1
        %510 = vperm.xlu0 %509, %v227
        %v511 = vpop.permute.xlu0 %510
        %513 = vset.pattern.permute.xlu0 1
        %514 = vperm.xlu0 %513, %v228
        %v515 = vpop.permute.xlu0 %514
        %v517 = vperm.slane %v229, 1
        %v518 = vperm.slane %v229, 5
        %v519 = vperm.slane %v230, 1
        %v520 = vperm.slane %v230, 5
        %v525 = vperm.slane %v517, 1
        %v526 = vperm.slane %v518, 1
        %v527 = vperm.slane %v519, 1
        %v528 = vperm.slane %v520, 1
        %v529 = vsub.f32 %v455, %v525
        %v530 = vsub.f32 %v455, %v526
        %v531 = vsub.f32 %v455, %v527
        %v532 = vsub.f32 %v455, %v528
        %v533 = vsub.f32 %v459, %v525
        %v534 = vsub.f32 %v459, %v526
        %v535 = vsub.f32 %v459, %v527
        %v536 = vsub.f32 %v459, %v528
        %v537 = vsub.f32 %v463, %v525
        %v538 = vsub.f32 %v463, %v526
        %v539 = vsub.f32 %v463, %v527
        %v540 = vsub.f32 %v463, %v528
        %v541 = vsub.f32 %v467, %v525
        %v542 = vsub.f32 %v467, %v526
        %v543 = vsub.f32 %v467, %v527
        %v544 = vsub.f32 %v467, %v528
        %v545 = vsub.f32 %v471, %v525
        %v546 = vsub.f32 %v471, %v526
        %v547 = vsub.f32 %v471, %v527
        %v548 = vsub.f32 %v471, %v528
        %v549 = vsub.f32 %v475, %v525
        %v550 = vsub.f32 %v475, %v526
        %v551 = vsub.f32 %v475, %v527
        %v552 = vsub.f32 %v475, %v528
        %v553 = vsub.f32 %v479, %v525
        %v554 = vsub.f32 %v479, %v526
        %v555 = vsub.f32 %v479, %v527
        %v556 = vsub.f32 %v479, %v528
        %v557 = vsub.f32 %v483, %v525
        %v558 = vsub.f32 %v483, %v526
        %v559 = vsub.f32 %v483, %v527
        %v560 = vsub.f32 %v483, %v528
        %v561 = vsub.f32 %v487, %v525
        %v562 = vsub.f32 %v487, %v526
        %v563 = vsub.f32 %v487, %v527
        %v564 = vsub.f32 %v487, %v528
        %v565 = vsub.f32 %v491, %v525
        %v566 = vsub.f32 %v491, %v526
        %v567 = vsub.f32 %v491, %v527
        %v568 = vsub.f32 %v491, %v528
        %v569 = vsub.f32 %v495, %v525
        %v570 = vsub.f32 %v495, %v526
        %v571 = vsub.f32 %v495, %v527
        %v572 = vsub.f32 %v495, %v528
        %v573 = vsub.f32 %v499, %v525
        %v574 = vsub.f32 %v499, %v526
        %v575 = vsub.f32 %v499, %v527
        %v576 = vsub.f32 %v499, %v528
        %v577 = vsub.f32 %v503, %v525
        %v578 = vsub.f32 %v503, %v526
        %v579 = vsub.f32 %v503, %v527
        %v580 = vsub.f32 %v503, %v528
        %v581 = vsub.f32 %v507, %v525
        %v582 = vsub.f32 %v507, %v526
        %v583 = vsub.f32 %v507, %v527
        %v584 = vsub.f32 %v507, %v528
        %v585 = vsub.f32 %v511, %v525
        %v586 = vsub.f32 %v511, %v526
        %v587 = vsub.f32 %v511, %v527
        %v588 = vsub.f32 %v511, %v528
        %v589 = vsub.f32 %v515, %v525
        %v590 = vsub.f32 %v515, %v526
        %v591 = vsub.f32 %v515, %v527
        %v592 = vsub.f32 %v515, %v528
        %v593 = vmul.f32 %v529, %v529
        %v594 = vmul.f32 %v530, %v530
        %v595 = vmul.f32 %v531, %v531
        %v596 = vmul.f32 %v532, %v532
        %v597 = vmul.f32 %v533, %v533
        %v598 = vmul.f32 %v534, %v534
        %v599 = vmul.f32 %v535, %v535
        %v600 = vmul.f32 %v536, %v536
        %v601 = vmul.f32 %v537, %v537
        %v602 = vmul.f32 %v538, %v538
        %v603 = vmul.f32 %v539, %v539
        %v604 = vmul.f32 %v540, %v540
        %v605 = vmul.f32 %v541, %v541
        %v606 = vmul.f32 %v542, %v542
        %v607 = vmul.f32 %v543, %v543
        %v608 = vmul.f32 %v544, %v544
        %v609 = vmul.f32 %v545, %v545
        %v610 = vmul.f32 %v546, %v546
        %v611 = vmul.f32 %v547, %v547
        %v612 = vmul.f32 %v548, %v548
        %v613 = vmul.f32 %v549, %v549
        %v614 = vmul.f32 %v550, %v550
        %v615 = vmul.f32 %v551, %v551
        %v616 = vmul.f32 %v552, %v552
        %v617 = vmul.f32 %v553, %v553
        %v618 = vmul.f32 %v554, %v554
        %v619 = vmul.f32 %v555, %v555
        %v620 = vmul.f32 %v556, %v556
        %v621 = vmul.f32 %v557, %v557
        %v622 = vmul.f32 %v558, %v558
        %v623 = vmul.f32 %v559, %v559
        %v624 = vmul.f32 %v560, %v560
        %v625 = vmul.f32 %v561, %v561
        %v626 = vmul.f32 %v562, %v562
        %v627 = vmul.f32 %v563, %v563
        %v628 = vmul.f32 %v564, %v564
        %v629 = vmul.f32 %v565, %v565
        %v630 = vmul.f32 %v566, %v566
        %v631 = vmul.f32 %v567, %v567
        %v632 = vmul.f32 %v568, %v568
        %v633 = vmul.f32 %v569, %v569
        %v634 = vmul.f32 %v570, %v570
        %v635 = vmul.f32 %v571, %v571
        %v636 = vmul.f32 %v572, %v572
        %v637 = vmul.f32 %v573, %v573
        %v638 = vmul.f32 %v574, %v574
        %v639 = vmul.f32 %v575, %v575
        %v640 = vmul.f32 %v576, %v576
        %v641 = vmul.f32 %v577, %v577
        %v642 = vmul.f32 %v578, %v578
        %v643 = vmul.f32 %v579, %v579
        %v644 = vmul.f32 %v580, %v580
        %v645 = vmul.f32 %v581, %v581
        %v646 = vmul.f32 %v582, %v582
        %v647 = vmul.f32 %v583, %v583
        %v648 = vmul.f32 %v584, %v584
        %v649 = vmul.f32 %v585, %v585
        %v650 = vmul.f32 %v586, %v586
        %v651 = vmul.f32 %v587, %v587
        %v652 = vmul.f32 %v588, %v588
        %v653 = vmul.f32 %v589, %v589
        %v654 = vmul.f32 %v590, %v590
        %v655 = vmul.f32 %v591, %v591
        %v656 = vmul.f32 %v592, %v592
        %v657 = vadd.f32 %v389, %v593
        %v658 = vadd.f32 %v390, %v594
        %v659 = vadd.f32 %v391, %v595
        %v660 = vadd.f32 %v392, %v596
        %v661 = vadd.f32 %v393, %v597
        %v662 = vadd.f32 %v394, %v598
        %v663 = vadd.f32 %v395, %v599
        %v664 = vadd.f32 %v396, %v600
        %v665 = vadd.f32 %v397, %v601
        %v666 = vadd.f32 %v398, %v602
        %v667 = vadd.f32 %v399, %v603
        %v668 = vadd.f32 %v400, %v604
        %v669 = vadd.f32 %v401, %v605
        %v670 = vadd.f32 %v402, %v606
        %v671 = vadd.f32 %v403, %v607
        %v672 = vadd.f32 %v404, %v608
        %v673 = vadd.f32 %v405, %v609
        %v674 = vadd.f32 %v406, %v610
        %v675 = vadd.f32 %v407, %v611
        %v676 = vadd.f32 %v408, %v612
        %v677 = vadd.f32 %v409, %v613
        %v678 = vadd.f32 %v410, %v614
        %v679 = vadd.f32 %v411, %v615
        %v680 = vadd.f32 %v412, %v616
        %v681 = vadd.f32 %v413, %v617
        %v682 = vadd.f32 %v414, %v618
        %v683 = vadd.f32 %v415, %v619
        %v684 = vadd.f32 %v416, %v620
        %v685 = vadd.f32 %v417, %v621
        %v686 = vadd.f32 %v418, %v622
        %v687 = vadd.f32 %v419, %v623
        %v688 = vadd.f32 %v420, %v624
        %v689 = vadd.f32 %v421, %v625
        %v690 = vadd.f32 %v422, %v626
        %v691 = vadd.f32 %v423, %v627
        %v692 = vadd.f32 %v424, %v628
        %v693 = vadd.f32 %v425, %v629
        %v694 = vadd.f32 %v426, %v630
        %v695 = vadd.f32 %v427, %v631
        %v696 = vadd.f32 %v428, %v632
        %v697 = vadd.f32 %v429, %v633
        %v698 = vadd.f32 %v430, %v634
        %v699 = vadd.f32 %v431, %v635
        %v700 = vadd.f32 %v432, %v636
        %v701 = vadd.f32 %v433, %v637
        %v702 = vadd.f32 %v434, %v638
        %v703 = vadd.f32 %v435, %v639
        %v704 = vadd.f32 %v436, %v640
        %v705 = vadd.f32 %v437, %v641
        %v706 = vadd.f32 %v438, %v642
        %v707 = vadd.f32 %v439, %v643
        %v708 = vadd.f32 %v440, %v644
        %v709 = vadd.f32 %v441, %v645
        %v710 = vadd.f32 %v442, %v646
        %v711 = vadd.f32 %v443, %v647
        %v712 = vadd.f32 %v444, %v648
        %v713 = vadd.f32 %v445, %v649
        %v714 = vadd.f32 %v446, %v650
        %v715 = vadd.f32 %v447, %v651
        %v716 = vadd.f32 %v448, %v652
        %v717 = vadd.f32 %v449, %v653
        %v718 = vadd.f32 %v450, %v654
        %v719 = vadd.f32 %v451, %v655
        %v720 = vadd.f32 %v452, %v656
        %721 = vset.pattern.permute.xlu0 2
        %722 = vperm.xlu0 %721, %v213
        %v723 = vpop.permute.xlu0 %722
        %725 = vset.pattern.permute.xlu0 2
        %726 = vperm.xlu0 %725, %v214
        %v727 = vpop.permute.xlu0 %726
        %729 = vset.pattern.permute.xlu0 2
        %730 = vperm.xlu0 %729, %v215
        %v731 = vpop.permute.xlu0 %730
        %733 = vset.pattern.permute.xlu0 2
        %734 = vperm.xlu0 %733, %v216
        %v735 = vpop.permute.xlu0 %734
        %737 = vset.pattern.permute.xlu0 2
        %738 = vperm.xlu0 %737, %v217
        %v739 = vpop.permute.xlu0 %738
        %741 = vset.pattern.permute.xlu0 2
        %742 = vperm.xlu0 %741, %v218
        %v743 = vpop.permute.xlu0 %742
        %745 = vset.pattern.permute.xlu0 2
        %746 = vperm.xlu0 %745, %v219
        %v747 = vpop.permute.xlu0 %746
        %749 = vset.pattern.permute.xlu0 2
        %750 = vperm.xlu0 %749, %v220
        %v751 = vpop.permute.xlu0 %750
        %753 = vset.pattern.permute.xlu0 2
        %754 = vperm.xlu0 %753, %v221
        %v755 = vpop.permute.xlu0 %754
        %757 = vset.pattern.permute.xlu0 2
        %758 = vperm.xlu0 %757, %v222
        %v759 = vpop.permute.xlu0 %758
        %761 = vset.pattern.permute.xlu0 2
        %762 = vperm.xlu0 %761, %v223
        %v763 = vpop.permute.xlu0 %762
        %765 = vset.pattern.permute.xlu0 2
        %766 = vperm.xlu0 %765, %v224
        %v767 = vpop.permute.xlu0 %766
        %769 = vset.pattern.permute.xlu0 2
        %770 = vperm.xlu0 %769, %v225
        %v771 = vpop.permute.xlu0 %770
        %773 = vset.pattern.permute.xlu0 2
        %774 = vperm.xlu0 %773, %v226
        %v775 = vpop.permute.xlu0 %774
        %777 = vset.pattern.permute.xlu0 2
        %778 = vperm.xlu0 %777, %v227
        %v779 = vpop.permute.xlu0 %778
        %781 = vset.pattern.permute.xlu0 2
        %782 = vperm.xlu0 %781, %v228
        %v783 = vpop.permute.xlu0 %782
        %v785 = vperm.slane %v229, 2
        %v786 = vperm.slane %v229, 6
        %v787 = vperm.slane %v230, 2
        %v788 = vperm.slane %v230, 6
        %v793 = vperm.slane %v785, 2
        %v794 = vperm.slane %v786, 2
        %v795 = vperm.slane %v787, 2
        %v796 = vperm.slane %v788, 2
        %v797 = vsub.f32 %v723, %v793
        %v798 = vsub.f32 %v723, %v794
        %v799 = vsub.f32 %v723, %v795
        %v800 = vsub.f32 %v723, %v796
        %v801 = vsub.f32 %v727, %v793
        %v802 = vsub.f32 %v727, %v794
        %v803 = vsub.f32 %v727, %v795
        %v804 = vsub.f32 %v727, %v796
        %v805 = vsub.f32 %v731, %v793
        %v806 = vsub.f32 %v731, %v794
        %v807 = vsub.f32 %v731, %v795
        %v808 = vsub.f32 %v731, %v796
        %v809 = vsub.f32 %v735, %v793
        %v810 = vsub.f32 %v735, %v794
        %v811 = vsub.f32 %v735, %v795
        %v812 = vsub.f32 %v735, %v796
        %v813 = vsub.f32 %v739, %v793
        %v814 = vsub.f32 %v739, %v794
        %v815 = vsub.f32 %v739, %v795
        %v816 = vsub.f32 %v739, %v796
        %v817 = vsub.f32 %v743, %v793
        %v818 = vsub.f32 %v743, %v794
        %v819 = vsub.f32 %v743, %v795
        %v820 = vsub.f32 %v743, %v796
        %v821 = vsub.f32 %v747, %v793
        %v822 = vsub.f32 %v747, %v794
        %v823 = vsub.f32 %v747, %v795
        %v824 = vsub.f32 %v747, %v796
        %v825 = vsub.f32 %v751, %v793
        %v826 = vsub.f32 %v751, %v794
        %v827 = vsub.f32 %v751, %v795
        %v828 = vsub.f32 %v751, %v796
        %v829 = vsub.f32 %v755, %v793
        %v830 = vsub.f32 %v755, %v794
        %v831 = vsub.f32 %v755, %v795
        %v832 = vsub.f32 %v755, %v796
        %v833 = vsub.f32 %v759, %v793
        %v834 = vsub.f32 %v759, %v794
        %v835 = vsub.f32 %v759, %v795
        %v836 = vsub.f32 %v759, %v796
        %v837 = vsub.f32 %v763, %v793
        %v838 = vsub.f32 %v763, %v794
        %v839 = vsub.f32 %v763, %v795
        %v840 = vsub.f32 %v763, %v796
        %v841 = vsub.f32 %v767, %v793
        %v842 = vsub.f32 %v767, %v794
        %v843 = vsub.f32 %v767, %v795
        %v844 = vsub.f32 %v767, %v796
        %v845 = vsub.f32 %v771, %v793
        %v846 = vsub.f32 %v771, %v794
        %v847 = vsub.f32 %v771, %v795
        %v848 = vsub.f32 %v771, %v796
        %v849 = vsub.f32 %v775, %v793
        %v850 = vsub.f32 %v775, %v794
        %v851 = vsub.f32 %v775, %v795
        %v852 = vsub.f32 %v775, %v796
        %v853 = vsub.f32 %v779, %v793
        %v854 = vsub.f32 %v779, %v794
        %v855 = vsub.f32 %v779, %v795
        %v856 = vsub.f32 %v779, %v796
        %v857 = vsub.f32 %v783, %v793
        %v858 = vsub.f32 %v783, %v794
        %v859 = vsub.f32 %v783, %v795
        %v860 = vsub.f32 %v783, %v796
        %v861 = vmul.f32 %v797, %v797
        %v862 = vmul.f32 %v798, %v798
        %v863 = vmul.f32 %v799, %v799
        %v864 = vmul.f32 %v800, %v800
        %v865 = vmul.f32 %v801, %v801
        %v866 = vmul.f32 %v802, %v802
        %v867 = vmul.f32 %v803, %v803
        %v868 = vmul.f32 %v804, %v804
        %v869 = vmul.f32 %v805, %v805
        %v870 = vmul.f32 %v806, %v806
        %v871 = vmul.f32 %v807, %v807
        %v872 = vmul.f32 %v808, %v808
        %v873 = vmul.f32 %v809, %v809
        %v874 = vmul.f32 %v810, %v810
        %v875 = vmul.f32 %v811, %v811
        %v876 = vmul.f32 %v812, %v812
        %v877 = vmul.f32 %v813, %v813
        %v878 = vmul.f32 %v814, %v814
        %v879 = vmul.f32 %v815, %v815
        %v880 = vmul.f32 %v816, %v816
        %v881 = vmul.f32 %v817, %v817
        %v882 = vmul.f32 %v818, %v818
        %v883 = vmul.f32 %v819, %v819
        %v884 = vmul.f32 %v820, %v820
        %v885 = vmul.f32 %v821, %v821
        %v886 = vmul.f32 %v822, %v822
        %v887 = vmul.f32 %v823, %v823
        %v888 = vmul.f32 %v824, %v824
        %v889 = vmul.f32 %v825, %v825
        %v890 = vmul.f32 %v826, %v826
        %v891 = vmul.f32 %v827, %v827
        %v892 = vmul.f32 %v828, %v828
        %v893 = vmul.f32 %v829, %v829
        %v894 = vmul.f32 %v830, %v830
        %v895 = vmul.f32 %v831, %v831
        %v896 = vmul.f32 %v832, %v832
        %v897 = vmul.f32 %v833, %v833
        %v898 = vmul.f32 %v834, %v834
        %v899 = vmul.f32 %v835, %v835
        %v900 = vmul.f32 %v836, %v836
        %v901 = vmul.f32 %v837, %v837
        %v902 = vmul.f32 %v838, %v838
        %v903 = vmul.f32 %v839, %v839
        %v904 = vmul.f32 %v840, %v840
        %v905 = vmul.f32 %v841, %v841
        %v906 = vmul.f32 %v842, %v842
        %v907 = vmul.f32 %v843, %v843
        %v908 = vmul.f32 %v844, %v844
        %v909 = vmul.f32 %v845, %v845
        %v910 = vmul.f32 %v846, %v846
        %v911 = vmul.f32 %v847, %v847
        %v912 = vmul.f32 %v848, %v848
        %v913 = vmul.f32 %v849, %v849
        %v914 = vmul.f32 %v850, %v850
        %v915 = vmul.f32 %v851, %v851
        %v916 = vmul.f32 %v852, %v852
        %v917 = vmul.f32 %v853, %v853
        %v918 = vmul.f32 %v854, %v854
        %v919 = vmul.f32 %v855, %v855
        %v920 = vmul.f32 %v856, %v856
        %v921 = vmul.f32 %v857, %v857
        %v922 = vmul.f32 %v858, %v858
        %v923 = vmul.f32 %v859, %v859
        %v924 = vmul.f32 %v860, %v860
        %v925 = vadd.f32 %v657, %v861
        %v926 = vadd.f32 %v658, %v862
        %v927 = vadd.f32 %v659, %v863
        %v928 = vadd.f32 %v660, %v864
        %v929 = vadd.f32 %v661, %v865
        %v930 = vadd.f32 %v662, %v866
        %v931 = vadd.f32 %v663, %v867
        %v932 = vadd.f32 %v664, %v868
        %v933 = vadd.f32 %v665, %v869
        %v934 = vadd.f32 %v666, %v870
        %v935 = vadd.f32 %v667, %v871
        %v936 = vadd.f32 %v668, %v872
        %v937 = vadd.f32 %v669, %v873
        %v938 = vadd.f32 %v670, %v874
        %v939 = vadd.f32 %v671, %v875
        %v940 = vadd.f32 %v672, %v876
        %v941 = vadd.f32 %v673, %v877
        %v942 = vadd.f32 %v674, %v878
        %v943 = vadd.f32 %v675, %v879
        %v944 = vadd.f32 %v676, %v880
        %v945 = vadd.f32 %v677, %v881
        %v946 = vadd.f32 %v678, %v882
        %v947 = vadd.f32 %v679, %v883
        %v948 = vadd.f32 %v680, %v884
        %v949 = vadd.f32 %v681, %v885
        %v950 = vadd.f32 %v682, %v886
        %v951 = vadd.f32 %v683, %v887
        %v952 = vadd.f32 %v684, %v888
        %v953 = vadd.f32 %v685, %v889
        %v954 = vadd.f32 %v686, %v890
        %v955 = vadd.f32 %v687, %v891
        %v956 = vadd.f32 %v688, %v892
        %v957 = vadd.f32 %v689, %v893
        %v958 = vadd.f32 %v690, %v894
        %v959 = vadd.f32 %v691, %v895
        %v960 = vadd.f32 %v692, %v896
        %v961 = vadd.f32 %v693, %v897
        %v962 = vadd.f32 %v694, %v898
        %v963 = vadd.f32 %v695, %v899
        %v964 = vadd.f32 %v696, %v900
        %v965 = vadd.f32 %v697, %v901
        %v966 = vadd.f32 %v698, %v902
        %v967 = vadd.f32 %v699, %v903
        %v968 = vadd.f32 %v700, %v904
        %v969 = vadd.f32 %v701, %v905
        %v970 = vadd.f32 %v702, %v906
        %v971 = vadd.f32 %v703, %v907
        %v972 = vadd.f32 %v704, %v908
        %v973 = vadd.f32 %v705, %v909
        %v974 = vadd.f32 %v706, %v910
        %v975 = vadd.f32 %v707, %v911
        %v976 = vadd.f32 %v708, %v912
        %v977 = vadd.f32 %v709, %v913
        %v978 = vadd.f32 %v710, %v914
        %v979 = vadd.f32 %v711, %v915
        %v980 = vadd.f32 %v712, %v916
        %v981 = vadd.f32 %v713, %v917
        %v982 = vadd.f32 %v714, %v918
        %v983 = vadd.f32 %v715, %v919
        %v984 = vadd.f32 %v716, %v920
        %v985 = vadd.f32 %v717, %v921
        %v986 = vadd.f32 %v718, %v922
        %v987 = vadd.f32 %v719, %v923
        %v988 = vadd.f32 %v720, %v924
        %v989 = vmax.f32 %v925, 1e-20
        %v990 = vmax.f32 %v926, 1e-20
        %v991 = vmax.f32 %v927, 1e-20
        %v992 = vmax.f32 %v928, 1e-20
        %v993 = vmax.f32 %v929, 1e-20
        %v994 = vmax.f32 %v930, 1e-20
        %v995 = vmax.f32 %v931, 1e-20
        %v996 = vmax.f32 %v932, 1e-20
        %v997 = vmax.f32 %v933, 1e-20
        %v998 = vmax.f32 %v934, 1e-20
        %v999 = vmax.f32 %v935, 1e-20
        %v1000 = vmax.f32 %v936, 1e-20
        %v1001 = vmax.f32 %v937, 1e-20
        %v1002 = vmax.f32 %v938, 1e-20
        %v1003 = vmax.f32 %v939, 1e-20
        %v1004 = vmax.f32 %v940, 1e-20
        %v1005 = vmax.f32 %v941, 1e-20
        %v1006 = vmax.f32 %v942, 1e-20
        %v1007 = vmax.f32 %v943, 1e-20
        %v1008 = vmax.f32 %v944, 1e-20
        %v1009 = vmax.f32 %v945, 1e-20
        %v1010 = vmax.f32 %v946, 1e-20
        %v1011 = vmax.f32 %v947, 1e-20
        %v1012 = vmax.f32 %v948, 1e-20
        %v1013 = vmax.f32 %v949, 1e-20
        %v1014 = vmax.f32 %v950, 1e-20
        %v1015 = vmax.f32 %v951, 1e-20
        %v1016 = vmax.f32 %v952, 1e-20
        %v1017 = vmax.f32 %v953, 1e-20
        %v1018 = vmax.f32 %v954, 1e-20
        %v1019 = vmax.f32 %v955, 1e-20
        %v1020 = vmax.f32 %v956, 1e-20
        %v1021 = vmax.f32 %v957, 1e-20
        %v1022 = vmax.f32 %v958, 1e-20
        %v1023 = vmax.f32 %v959, 1e-20
        %v1024 = vmax.f32 %v960, 1e-20
        %v1025 = vmax.f32 %v961, 1e-20
        %v1026 = vmax.f32 %v962, 1e-20
        %v1027 = vmax.f32 %v963, 1e-20
        %v1028 = vmax.f32 %v964, 1e-20
        %v1029 = vmax.f32 %v965, 1e-20
        %v1030 = vmax.f32 %v966, 1e-20
        %v1031 = vmax.f32 %v967, 1e-20
        %v1032 = vmax.f32 %v968, 1e-20
        %v1033 = vmax.f32 %v969, 1e-20
        %v1034 = vmax.f32 %v970, 1e-20
        %v1035 = vmax.f32 %v971, 1e-20
        %v1036 = vmax.f32 %v972, 1e-20
        %v1037 = vmax.f32 %v973, 1e-20
        %v1038 = vmax.f32 %v974, 1e-20
        %v1039 = vmax.f32 %v975, 1e-20
        %v1040 = vmax.f32 %v976, 1e-20
        %v1041 = vmax.f32 %v977, 1e-20
        %v1042 = vmax.f32 %v978, 1e-20
        %v1043 = vmax.f32 %v979, 1e-20
        %v1044 = vmax.f32 %v980, 1e-20
        %v1045 = vmax.f32 %v981, 1e-20
        %v1046 = vmax.f32 %v982, 1e-20
        %v1047 = vmax.f32 %v983, 1e-20
        %v1048 = vmax.f32 %v984, 1e-20
        %v1049 = vmax.f32 %v985, 1e-20
        %v1050 = vmax.f32 %v986, 1e-20
        %v1051 = vmax.f32 %v987, 1e-20
        %v1052 = vmax.f32 %v988, 1e-20
        %v1053 = vrcp.pop %v989
        %v1054 = vrcp.pop %v990
        %v1055 = vrcp.pop %v991
        %v1056 = vrcp.pop %v992
        %v1057 = vrcp.pop %v993
        %v1058 = vrcp.pop %v994
        %v1059 = vrcp.pop %v995
        %v1060 = vrcp.pop %v996
        %v1061 = vrcp.pop %v997
        %v1062 = vrcp.pop %v998
        %v1063 = vrcp.pop %v999
        %v1064 = vrcp.pop %v1000
        %v1065 = vrcp.pop %v1001
        %v1066 = vrcp.pop %v1002
        %v1067 = vrcp.pop %v1003
        %v1068 = vrcp.pop %v1004
        %v1069 = vrcp.pop %v1005
        %v1070 = vrcp.pop %v1006
        %v1071 = vrcp.pop %v1007
        %v1072 = vrcp.pop %v1008
        %v1073 = vrcp.pop %v1009
        %v1074 = vrcp.pop %v1010
        %v1075 = vrcp.pop %v1011
        %v1076 = vrcp.pop %v1012
        %v1077 = vrcp.pop %v1013
        %v1078 = vrcp.pop %v1014
        %v1079 = vrcp.pop %v1015
        %v1080 = vrcp.pop %v1016
        %v1081 = vrcp.pop %v1017
        %v1082 = vrcp.pop %v1018
        %v1083 = vrcp.pop %v1019
        %v1084 = vrcp.pop %v1020
        %v1085 = vrcp.pop %v1021
        %v1086 = vrcp.pop %v1022
        %v1087 = vrcp.pop %v1023
        %v1088 = vrcp.pop %v1024
        %v1089 = vrcp.pop %v1025
        %v1090 = vrcp.pop %v1026
        %v1091 = vrcp.pop %v1027
        %v1092 = vrcp.pop %v1028
        %v1093 = vrcp.pop %v1029
        %v1094 = vrcp.pop %v1030
        %v1095 = vrcp.pop %v1031
        %v1096 = vrcp.pop %v1032
        %v1097 = vrcp.pop %v1033
        %v1098 = vrcp.pop %v1034
        %v1099 = vrcp.pop %v1035
        %v1100 = vrcp.pop %v1036
        %v1101 = vrcp.pop %v1037
        %v1102 = vrcp.pop %v1038
        %v1103 = vrcp.pop %v1039
        %v1104 = vrcp.pop %v1040
        %v1105 = vrcp.pop %v1041
        %v1106 = vrcp.pop %v1042
        %v1107 = vrcp.pop %v1043
        %v1108 = vrcp.pop %v1044
        %v1109 = vrcp.pop %v1045
        %v1110 = vrcp.pop %v1046
        %v1111 = vrcp.pop %v1047
        %v1112 = vrcp.pop %v1048
        %v1113 = vrcp.pop %v1049
        %v1114 = vrcp.pop %v1050
        %v1115 = vrcp.pop %v1051
        %v1116 = vrcp.pop %v1052
        %1117 = vst [vmem:[%s199] sm:$0xff] %v1053
        %1118 = vst [vmem:[%s199 + $0x8] sm:$0xff] %v1054
        %1119 = vst [vmem:[%s199 + $0x10] sm:$0xff] %v1055
        %1120 = vst [vmem:[%s199 + $0x18] sm:$0xff] %v1056
        %1121 = vst [vmem:[%s199 + $0x20] sm:$0xff] %v1057
        %1122 = vst [vmem:[%s199 + $0x28] sm:$0xff] %v1058
        %1123 = vst [vmem:[%s199 + $0x30] sm:$0xff] %v1059
        %1124 = vst [vmem:[%s199 + $0x38] sm:$0xff] %v1060
        %1125 = vst [vmem:[%s199 + $0x40] sm:$0xff] %v1061
        %1126 = vst [vmem:[%s199 + $0x48] sm:$0xff] %v1062
        %1127 = vst [vmem:[%s199 + $0x50] sm:$0xff] %v1063
        %1128 = vst [vmem:[%s199 + $0x58] sm:$0xff] %v1064
        %1129 = vst [vmem:[%s199 + $0x60] sm:$0xff] %v1065
        %1130 = vst [vmem:[%s199 + $0x68] sm:$0xff] %v1066
        %1131 = vst [vmem:[%s199 + $0x70] sm:$0xff] %v1067
        %1132 = vst [vmem:[%s199 + $0x78] sm:$0xff] %v1068
        %1133 = vst [vmem:[%s199 + $0x80] sm:$0xff] %v1069
        %1134 = vst [vmem:[%s199 + $0x88] sm:$0xff] %v1070
        %1135 = vst [vmem:[%s199 + $0x90] sm:$0xff] %v1071
        %1136 = vst [vmem:[%s199 + $0x98] sm:$0xff] %v1072
        %1137 = vst [vmem:[%s199 + $0xa0] sm:$0xff] %v1073
        %1138 = vst [vmem:[%s199 + $0xa8] sm:$0xff] %v1074
        %1139 = vst [vmem:[%s199 + $0xb0] sm:$0xff] %v1075
        %1140 = vst [vmem:[%s199 + $0xb8] sm:$0xff] %v1076
        %1141 = vst [vmem:[%s199 + $0xc0] sm:$0xff] %v1077
        %1142 = vst [vmem:[%s199 + $0xc8] sm:$0xff] %v1078
        %1143 = vst [vmem:[%s199 + $0xd0] sm:$0xff] %v1079
        %1144 = vst [vmem:[%s199 + $0xd8] sm:$0xff] %v1080
        %1145 = vst [vmem:[%s199 + $0xe0] sm:$0xff] %v1081
        %1146 = vst [vmem:[%s199 + $0xe8] sm:$0xff] %v1082
        %1147 = vst [vmem:[%s199 + $0xf0] sm:$0xff] %v1083
        %1148 = vst [vmem:[%s199 + $0xf8] sm:$0xff] %v1084
        %1149 = vst [vmem:[%s199 + $0x100] sm:$0xff] %v1085
        %1150 = vst [vmem:[%s199 + $0x108] sm:$0xff] %v1086
        %1151 = vst [vmem:[%s199 + $0x110] sm:$0xff] %v1087
        %1152 = vst [vmem:[%s199 + $0x118] sm:$0xff] %v1088
        %1153 = vst [vmem:[%s199 + $0x120] sm:$0xff] %v1089
        %1154 = vst [vmem:[%s199 + $0x128] sm:$0xff] %v1090
        %1155 = vst [vmem:[%s199 + $0x130] sm:$0xff] %v1091
        %1156 = vst [vmem:[%s199 + $0x138] sm:$0xff] %v1092
        %1157 = vst [vmem:[%s199 + $0x140] sm:$0xff] %v1093
        %1158 = vst [vmem:[%s199 + $0x148] sm:$0xff] %v1094
        %1159 = vst [vmem:[%s199 + $0x150] sm:$0xff] %v1095
        %1160 = vst [vmem:[%s199 + $0x158] sm:$0xff] %v1096
        %1161 = vst [vmem:[%s199 + $0x160] sm:$0xff] %v1097
        %1162 = vst [vmem:[%s199 + $0x168] sm:$0xff] %v1098
        %1163 = vst [vmem:[%s199 + $0x170] sm:$0xff] %v1099
        %1164 = vst [vmem:[%s199 + $0x178] sm:$0xff] %v1100
        %1165 = vst [vmem:[%s199 + $0x180] sm:$0xff] %v1101
        %1166 = vst [vmem:[%s199 + $0x188] sm:$0xff] %v1102
        %1167 = vst [vmem:[%s199 + $0x190] sm:$0xff] %v1103
        %1168 = vst [vmem:[%s199 + $0x198] sm:$0xff] %v1104
        %1169 = vst [vmem:[%s199 + $0x1a0] sm:$0xff] %v1105
        %1170 = vst [vmem:[%s199 + $0x1a8] sm:$0xff] %v1106
        %1171 = vst [vmem:[%s199 + $0x1b0] sm:$0xff] %v1107
        %1172 = vst [vmem:[%s199 + $0x1b8] sm:$0xff] %v1108
        %1173 = vst [vmem:[%s199 + $0x1c0] sm:$0xff] %v1109
        %1174 = vst [vmem:[%s199 + $0x1c8] sm:$0xff] %v1110
        %1175 = vst [vmem:[%s199 + $0x1d0] sm:$0xff] %v1111
        %1176 = vst [vmem:[%s199 + $0x1d8] sm:$0xff] %v1112
        %1177 = vst [vmem:[%s199 + $0x1e0] sm:$0xff] %v1113
        %1178 = vst [vmem:[%s199 + $0x1e8] sm:$0xff] %v1114
        %1179 = vst [vmem:[%s199 + $0x1f0] sm:$0xff] %v1115
        %1180 = vst [vmem:[%s199 + $0x1f8] sm:$0xff] %v1116
        %v1181 = vld [vmem:[%s2] sm:$0xff]
        %1183 = vst [vmem:[#allocation1] ss:$4 sm:$0xff] %v1181
        %v1184 = vld.sshfl [vmem:[#allocation1] sm:$0xff pattern:$0x73625140]
        %v1185 = vld.sshfl [vmem:[#allocation1 + $0x8] sm:$0xff pattern:$0x73625140]
        %v1186 = vld.sshfl [vmem:[#allocation1 + $0x10] sm:$0xff pattern:$0x73625140]
        %v1187 = vld.sshfl [vmem:[#allocation1 + $0x18] sm:$0xff pattern:$0x73625140]
        %1192 = vmatpush.xpose.msra.mxu0 0.0
        %1193 = vmatpush.xpose.msra.mxu0 0.0
        %1194 = vmatpush.xpose.msra.mxu0 0.0
        %1195 = vmatpush.xpose.msra.mxu0 0.0
        %1196 = vmatpush.xpose.msra.mxu0 0.0
        %1197 = vmatpush.xpose.msra.mxu0 0.0
        %1198 = vmatpush.xpose.msra.mxu0 0.0
        %1199 = vmatpush.xpose.msra.mxu0 0.0
        %1200 = vmatpush.xpose.msra.mxu0 0.0
        %1201 = vmatpush.xpose.msra.mxu0 0.0
        %1202 = vmatpush.xpose.msra.mxu0 0.0
        %1203 = vmatpush.xpose.msra.mxu0 0.0
        %1204 = vmatpush.xpose.msra.mxu0 0.0
        %1205 = vmatpush.xpose.msra.mxu0 0.0
        %1206 = vmatpush.xpose.msra.mxu0 0.0
        %v1207 = vand.u32 %v1184, 4294901760
        %1208 = vmatpush.xpose.msra.mxu0 %v1207
        %v1209 = vand.u32 %v1053, 4294901760
        %v1210 = vsub.f32 %v1053, %v1209
        %v1211 = vand.u32 %v1210, 4294901760
        %v1212 = vsub.f32 %v1210, %v1211
        %v1213 = vand.u32 %v1212, 4294901760
        %1214 = vmatmul.f32.gmra.mxu0 %v1213
        %v1215 = vpop.f32.mrf.mxu0
        %v1216 = vadd.f32 0.0, %v1215
        %v1217 = vand.u32 %v1057, 4294901760
        %v1218 = vsub.f32 %v1057, %v1217
        %v1219 = vand.u32 %v1218, 4294901760
        %v1220 = vsub.f32 %v1218, %v1219
        %v1221 = vand.u32 %v1220, 4294901760
        %1222 = vmatmul.f32.gmra.mxu0 %v1221
        %v1223 = vpop.f32.mrf.mxu0
        %v1224 = vadd.f32 0.0, %v1223
        %v1225 = vand.u32 %v1061, 4294901760
        %v1226 = vsub.f32 %v1061, %v1225
        %v1227 = vand.u32 %v1226, 4294901760
        %v1228 = vsub.f32 %v1226, %v1227
        %v1229 = vand.u32 %v1228, 4294901760
        %1230 = vmatmul.f32.gmra.mxu0 %v1229
        %v1231 = vpop.f32.mrf.mxu0
        %v1232 = vadd.f32 0.0, %v1231
        %v1233 = vand.u32 %v1065, 4294901760
        %v1234 = vsub.f32 %v1065, %v1233
        %v1235 = vand.u32 %v1234, 4294901760
        %v1236 = vsub.f32 %v1234, %v1235
        %v1237 = vand.u32 %v1236, 4294901760
        %1238 = vmatmul.f32.gmra.mxu0 %v1237
        %v1239 = vpop.f32.mrf.mxu0
        %v1240 = vadd.f32 0.0, %v1239
        %v1241 = vand.u32 %v1069, 4294901760
        %v1242 = vsub.f32 %v1069, %v1241
        %v1243 = vand.u32 %v1242, 4294901760
        %v1244 = vsub.f32 %v1242, %v1243
        %v1245 = vand.u32 %v1244, 4294901760
        %1246 = vmatmul.f32.gmra.mxu0 %v1245
        %v1247 = vpop.f32.mrf.mxu0
        %v1248 = vadd.f32 0.0, %v1247
        %v1249 = vand.u32 %v1073, 4294901760
        %v1250 = vsub.f32 %v1073, %v1249
        %v1251 = vand.u32 %v1250, 4294901760
        %v1252 = vsub.f32 %v1250, %v1251
        %v1253 = vand.u32 %v1252, 4294901760
        %1254 = vmatmul.f32.gmra.mxu0 %v1253
        %v1255 = vpop.f32.mrf.mxu0
        %v1256 = vadd.f32 0.0, %v1255
        %v1257 = vand.u32 %v1077, 4294901760
        %v1258 = vsub.f32 %v1077, %v1257
        %v1259 = vand.u32 %v1258, 4294901760
        %v1260 = vsub.f32 %v1258, %v1259
        %v1261 = vand.u32 %v1260, 4294901760
        %1262 = vmatmul.f32.gmra.mxu0 %v1261
        %v1263 = vpop.f32.mrf.mxu0
        %v1264 = vadd.f32 0.0, %v1263
        %v1265 = vand.u32 %v1081, 4294901760
        %v1266 = vsub.f32 %v1081, %v1265
        %v1267 = vand.u32 %v1266, 4294901760
        %v1268 = vsub.f32 %v1266, %v1267
        %v1269 = vand.u32 %v1268, 4294901760
        %1270 = vmatmul.f32.gmra.mxu0 %v1269
        %v1271 = vpop.f32.mrf.mxu0
        %v1272 = vadd.f32 0.0, %v1271
        %v1273 = vand.u32 %v1085, 4294901760
        %v1274 = vsub.f32 %v1085, %v1273
        %v1275 = vand.u32 %v1274, 4294901760
        %v1276 = vsub.f32 %v1274, %v1275
        %v1277 = vand.u32 %v1276, 4294901760
        %1278 = vmatmul.f32.gmra.mxu0 %v1277
        %v1279 = vpop.f32.mrf.mxu0
        %v1280 = vadd.f32 0.0, %v1279
        %v1281 = vand.u32 %v1089, 4294901760
        %v1282 = vsub.f32 %v1089, %v1281
        %v1283 = vand.u32 %v1282, 4294901760
        %v1284 = vsub.f32 %v1282, %v1283
        %v1285 = vand.u32 %v1284, 4294901760
        %1286 = vmatmul.f32.gmra.mxu0 %v1285
        %v1287 = vpop.f32.mrf.mxu0
        %v1288 = vadd.f32 0.0, %v1287
        %v1289 = vand.u32 %v1093, 4294901760
        %v1290 = vsub.f32 %v1093, %v1289
        %v1291 = vand.u32 %v1290, 4294901760
        %v1292 = vsub.f32 %v1290, %v1291
        %v1293 = vand.u32 %v1292, 4294901760
        %1294 = vmatmul.f32.gmra.mxu0 %v1293
        %v1295 = vpop.f32.mrf.mxu0
        %v1296 = vadd.f32 0.0, %v1295
        %v1297 = vand.u32 %v1097, 4294901760
        %v1298 = vsub.f32 %v1097, %v1297
        %v1299 = vand.u32 %v1298, 4294901760
        %v1300 = vsub.f32 %v1298, %v1299
        %v1301 = vand.u32 %v1300, 4294901760
        %1302 = vmatmul.f32.gmra.mxu0 %v1301
        %v1303 = vpop.f32.mrf.mxu0
        %v1304 = vadd.f32 0.0, %v1303
        %v1305 = vand.u32 %v1101, 4294901760
        %v1306 = vsub.f32 %v1101, %v1305
        %v1307 = vand.u32 %v1306, 4294901760
        %v1308 = vsub.f32 %v1306, %v1307
        %v1309 = vand.u32 %v1308, 4294901760
        %1310 = vmatmul.f32.gmra.mxu0 %v1309
        %v1311 = vpop.f32.mrf.mxu0
        %v1312 = vadd.f32 0.0, %v1311
        %v1313 = vand.u32 %v1105, 4294901760
        %v1314 = vsub.f32 %v1105, %v1313
        %v1315 = vand.u32 %v1314, 4294901760
        %v1316 = vsub.f32 %v1314, %v1315
        %v1317 = vand.u32 %v1316, 4294901760
        %1318 = vmatmul.f32.gmra.mxu0 %v1317
        %v1319 = vpop.f32.mrf.mxu0
        %v1320 = vadd.f32 0.0, %v1319
        %v1321 = vand.u32 %v1109, 4294901760
        %v1322 = vsub.f32 %v1109, %v1321
        %v1323 = vand.u32 %v1322, 4294901760
        %v1324 = vsub.f32 %v1322, %v1323
        %v1325 = vand.u32 %v1324, 4294901760
        %1326 = vmatmul.f32.gmra.mxu0 %v1325
        %v1327 = vpop.f32.mrf.mxu0
        %v1328 = vadd.f32 0.0, %v1327
        %v1329 = vand.u32 %v1113, 4294901760
        %v1330 = vsub.f32 %v1113, %v1329
        %v1331 = vand.u32 %v1330, 4294901760
        %v1332 = vsub.f32 %v1330, %v1331
        %v1333 = vand.u32 %v1332, 4294901760
        %1334 = vmatmul.f32.gmra.mxu0 %v1333
        %v1335 = vpop.f32.mrf.mxu0
        %v1336 = vadd.f32 0.0, %v1335
        %1337 = vdwg.mxu0
        %1338 = vmatpush.xpose.msra.mxu0 0.0
        %1339 = vmatpush.xpose.msra.mxu0 0.0
        %1340 = vmatpush.xpose.msra.mxu0 0.0
        %1341 = vmatpush.xpose.msra.mxu0 0.0
        %1342 = vmatpush.xpose.msra.mxu0 0.0
        %1343 = vmatpush.xpose.msra.mxu0 0.0
        %1344 = vmatpush.xpose.msra.mxu0 0.0
        %1345 = vmatpush.xpose.msra.mxu0 0.0
        %1346 = vmatpush.xpose.msra.mxu0 0.0
        %1347 = vmatpush.xpose.msra.mxu0 0.0
        %1348 = vmatpush.xpose.msra.mxu0 0.0
        %1349 = vmatpush.xpose.msra.mxu0 0.0
        %1350 = vmatpush.xpose.msra.mxu0 0.0
        %1351 = vmatpush.xpose.msra.mxu0 0.0
        %1352 = vmatpush.xpose.msra.mxu0 0.0
        %v1353 = vand.u32 %v1184, 4294901760
        %v1354 = vsub.f32 %v1184, %v1353
        %v1355 = vand.u32 %v1354, 4294901760
        %v1356 = vsub.f32 %v1354, %v1355
        %v1357 = vand.u32 %v1356, 4294901760
        %1358 = vmatpush.xpose.msra.mxu0 %v1357
        %v1359 = vand.u32 %v1053, 4294901760
        %1360 = vmatmul.f32.gmra.mxu0 %v1359
        %v1361 = vpop.f32.mrf.mxu0
        %v1362 = vadd.f32 %v1216, %v1361
        %v1363 = vand.u32 %v1057, 4294901760
        %1364 = vmatmul.f32.gmra.mxu0 %v1363
        %v1365 = vpop.f32.mrf.mxu0
        %v1366 = vadd.f32 %v1224, %v1365
        %v1367 = vand.u32 %v1061, 4294901760
        %1368 = vmatmul.f32.gmra.mxu0 %v1367
        %v1369 = vpop.f32.mrf.mxu0
        %v1370 = vadd.f32 %v1232, %v1369
        %v1371 = vand.u32 %v1065, 4294901760
        %1372 = vmatmul.f32.gmra.mxu0 %v1371
        %v1373 = vpop.f32.mrf.mxu0
        %v1374 = vadd.f32 %v1240, %v1373
        %v1375 = vand.u32 %v1069, 4294901760
        %1376 = vmatmul.f32.gmra.mxu0 %v1375
        %v1377 = vpop.f32.mrf.mxu0
        %v1378 = vadd.f32 %v1248, %v1377
        %v1379 = vand.u32 %v1073, 4294901760
        %1380 = vmatmul.f32.gmra.mxu0 %v1379
        %v1381 = vpop.f32.mrf.mxu0
        %v1382 = vadd.f32 %v1256, %v1381
        %v1383 = vand.u32 %v1077, 4294901760
        %1384 = vmatmul.f32.gmra.mxu0 %v1383
        %v1385 = vpop.f32.mrf.mxu0
        %v1386 = vadd.f32 %v1264, %v1385
        %v1387 = vand.u32 %v1081, 4294901760
        %1388 = vmatmul.f32.gmra.mxu0 %v1387
        %v1389 = vpop.f32.mrf.mxu0
        %v1390 = vadd.f32 %v1272, %v1389
        %v1391 = vand.u32 %v1085, 4294901760
        %1392 = vmatmul.f32.gmra.mxu0 %v1391
        %v1393 = vpop.f32.mrf.mxu0
        %v1394 = vadd.f32 %v1280, %v1393
        %v1395 = vand.u32 %v1089, 4294901760
        %1396 = vmatmul.f32.gmra.mxu0 %v1395
        %v1397 = vpop.f32.mrf.mxu0
        %v1398 = vadd.f32 %v1288, %v1397
        %v1399 = vand.u32 %v1093, 4294901760
        %1400 = vmatmul.f32.gmra.mxu0 %v1399
        %v1401 = vpop.f32.mrf.mxu0
        %v1402 = vadd.f32 %v1296, %v1401
        %v1403 = vand.u32 %v1097, 4294901760
        %1404 = vmatmul.f32.gmra.mxu0 %v1403
        %v1405 = vpop.f32.mrf.mxu0
        %v1406 = vadd.f32 %v1304, %v1405
        %v1407 = vand.u32 %v1101, 4294901760
        %1408 = vmatmul.f32.gmra.mxu0 %v1407
        %v1409 = vpop.f32.mrf.mxu0
        %v1410 = vadd.f32 %v1312, %v1409
        %v1411 = vand.u32 %v1105, 4294901760
        %1412 = vmatmul.f32.gmra.mxu0 %v1411
        %v1413 = vpop.f32.mrf.mxu0
        %v1414 = vadd.f32 %v1320, %v1413
        %v1415 = vand.u32 %v1109, 4294901760
        %1416 = vmatmul.f32.gmra.mxu0 %v1415
        %v1417 = vpop.f32.mrf.mxu0
        %v1418 = vadd.f32 %v1328, %v1417
        %v1419 = vand.u32 %v1113, 4294901760
        %1420 = vmatmul.f32.gmra.mxu0 %v1419
        %v1421 = vpop.f32.mrf.mxu0
        %v1422 = vadd.f32 %v1336, %v1421
        %1423 = vdwg.mxu0
        %1424 = vmatpush.xpose.msra.mxu0 0.0
        %1425 = vmatpush.xpose.msra.mxu0 0.0
        %1426 = vmatpush.xpose.msra.mxu0 0.0
        %1427 = vmatpush.xpose.msra.mxu0 0.0
        %1428 = vmatpush.xpose.msra.mxu0 0.0
        %1429 = vmatpush.xpose.msra.mxu0 0.0
        %1430 = vmatpush.xpose.msra.mxu0 0.0
        %1431 = vmatpush.xpose.msra.mxu0 0.0
        %1432 = vmatpush.xpose.msra.mxu0 0.0
        %1433 = vmatpush.xpose.msra.mxu0 0.0
        %1434 = vmatpush.xpose.msra.mxu0 0.0
        %1435 = vmatpush.xpose.msra.mxu0 0.0
        %1436 = vmatpush.xpose.msra.mxu0 0.0
        %1437 = vmatpush.xpose.msra.mxu0 0.0
        %1438 = vmatpush.xpose.msra.mxu0 0.0
        %v1439 = vand.u32 %v1184, 4294901760
        %v1440 = vsub.f32 %v1184, %v1439
        %1441 = vmatpush.xpose.msra.mxu0 %v1440
        %v1442 = vand.u32 %v1053, 4294901760
        %v1443 = vsub.f32 %v1053, %v1442
        %1444 = vmatmul.f32.gmra.mxu0 %v1443
        %v1445 = vpop.f32.mrf.mxu0
        %v1446 = vadd.f32 %v1362, %v1445
        %v1447 = vand.u32 %v1057, 4294901760
        %v1448 = vsub.f32 %v1057, %v1447
        %1449 = vmatmul.f32.gmra.mxu0 %v1448
        %v1450 = vpop.f32.mrf.mxu0
        %v1451 = vadd.f32 %v1366, %v1450
        %v1452 = vand.u32 %v1061, 4294901760
        %v1453 = vsub.f32 %v1061, %v1452
        %1454 = vmatmul.f32.gmra.mxu0 %v1453
        %v1455 = vpop.f32.mrf.mxu0
        %v1456 = vadd.f32 %v1370, %v1455
        %v1457 = vand.u32 %v1065, 4294901760
        %v1458 = vsub.f32 %v1065, %v1457
        %1459 = vmatmul.f32.gmra.mxu0 %v1458
        %v1460 = vpop.f32.mrf.mxu0
        %v1461 = vadd.f32 %v1374, %v1460
        %v1462 = vand.u32 %v1069, 4294901760
        %v1463 = vsub.f32 %v1069, %v1462
        %1464 = vmatmul.f32.gmra.mxu0 %v1463
        %v1465 = vpop.f32.mrf.mxu0
        %v1466 = vadd.f32 %v1378, %v1465
        %v1467 = vand.u32 %v1073, 4294901760
        %v1468 = vsub.f32 %v1073, %v1467
        %1469 = vmatmul.f32.gmra.mxu0 %v1468
        %v1470 = vpop.f32.mrf.mxu0
        %v1471 = vadd.f32 %v1382, %v1470
        %v1472 = vand.u32 %v1077, 4294901760
        %v1473 = vsub.f32 %v1077, %v1472
        %1474 = vmatmul.f32.gmra.mxu0 %v1473
        %v1475 = vpop.f32.mrf.mxu0
        %v1476 = vadd.f32 %v1386, %v1475
        %v1477 = vand.u32 %v1081, 4294901760
        %v1478 = vsub.f32 %v1081, %v1477
        %1479 = vmatmul.f32.gmra.mxu0 %v1478
        %v1480 = vpop.f32.mrf.mxu0
        %v1481 = vadd.f32 %v1390, %v1480
        %v1482 = vand.u32 %v1085, 4294901760
        %v1483 = vsub.f32 %v1085, %v1482
        %1484 = vmatmul.f32.gmra.mxu0 %v1483
        %v1485 = vpop.f32.mrf.mxu0
        %v1486 = vadd.f32 %v1394, %v1485
        %v1487 = vand.u32 %v1089, 4294901760
        %v1488 = vsub.f32 %v1089, %v1487
        %1489 = vmatmul.f32.gmra.mxu0 %v1488
        %v1490 = vpop.f32.mrf.mxu0
        %v1491 = vadd.f32 %v1398, %v1490
        %v1492 = vand.u32 %v1093, 4294901760
        %v1493 = vsub.f32 %v1093, %v1492
        %1494 = vmatmul.f32.gmra.mxu0 %v1493
        %v1495 = vpop.f32.mrf.mxu0
        %v1496 = vadd.f32 %v1402, %v1495
        %v1497 = vand.u32 %v1097, 4294901760
        %v1498 = vsub.f32 %v1097, %v1497
        %1499 = vmatmul.f32.gmra.mxu0 %v1498
        %v1500 = vpop.f32.mrf.mxu0
        %v1501 = vadd.f32 %v1406, %v1500
        %v1502 = vand.u32 %v1101, 4294901760
        %v1503 = vsub.f32 %v1101, %v1502
        %1504 = vmatmul.f32.gmra.mxu0 %v1503
        %v1505 = vpop.f32.mrf.mxu0
        %v1506 = vadd.f32 %v1410, %v1505
        %v1507 = vand.u32 %v1105, 4294901760
        %v1508 = vsub.f32 %v1105, %v1507
        %1509 = vmatmul.f32.gmra.mxu0 %v1508
        %v1510 = vpop.f32.mrf.mxu0
        %v1511 = vadd.f32 %v1414, %v1510
        %v1512 = vand.u32 %v1109, 4294901760
        %v1513 = vsub.f32 %v1109, %v1512
        %1514 = vmatmul.f32.gmra.mxu0 %v1513
        %v1515 = vpop.f32.mrf.mxu0
        %v1516 = vadd.f32 %v1418, %v1515
        %v1517 = vand.u32 %v1113, 4294901760
        %v1518 = vsub.f32 %v1113, %v1517
        %1519 = vmatmul.f32.gmra.mxu0 %v1518
        %v1520 = vpop.f32.mrf.mxu0
        %v1521 = vadd.f32 %v1422, %v1520
        %1522 = vdwg.mxu0
        %1523 = vmatpush.xpose.msra.mxu0 0.0
        %1524 = vmatpush.xpose.msra.mxu0 0.0
        %1525 = vmatpush.xpose.msra.mxu0 0.0
        %1526 = vmatpush.xpose.msra.mxu0 0.0
        %1527 = vmatpush.xpose.msra.mxu0 0.0
        %1528 = vmatpush.xpose.msra.mxu0 0.0
        %1529 = vmatpush.xpose.msra.mxu0 0.0
        %1530 = vmatpush.xpose.msra.mxu0 0.0
        %1531 = vmatpush.xpose.msra.mxu0 0.0
        %1532 = vmatpush.xpose.msra.mxu0 0.0
        %1533 = vmatpush.xpose.msra.mxu0 0.0
        %1534 = vmatpush.xpose.msra.mxu0 0.0
        %1535 = vmatpush.xpose.msra.mxu0 0.0
        %1536 = vmatpush.xpose.msra.mxu0 0.0
        %1537 = vmatpush.xpose.msra.mxu0 0.0
        %v1538 = vand.u32 %v1184, 4294901760
        %1539 = vmatpush.xpose.msra.mxu0 %v1538
        %v1540 = vand.u32 %v1053, 4294901760
        %v1541 = vsub.f32 %v1053, %v1540
        %v1542 = vand.u32 %v1541, 4294901760
        %1543 = vmatmul.f32.gmra.mxu0 %v1542
        %v1544 = vpop.f32.mrf.mxu0
        %v1545 = vadd.f32 %v1446, %v1544
        %v1546 = vand.u32 %v1057, 4294901760
        %v1547 = vsub.f32 %v1057, %v1546
        %v1548 = vand.u32 %v1547, 4294901760
        %1549 = vmatmul.f32.gmra.mxu0 %v1548
        %v1550 = vpop.f32.mrf.mxu0
        %v1551 = vadd.f32 %v1451, %v1550
        %v1552 = vand.u32 %v1061, 4294901760
        %v1553 = vsub.f32 %v1061, %v1552
        %v1554 = vand.u32 %v1553, 4294901760
        %1555 = vmatmul.f32.gmra.mxu0 %v1554
        %v1556 = vpop.f32.mrf.mxu0
        %v1557 = vadd.f32 %v1456, %v1556
        %v1558 = vand.u32 %v1065, 4294901760
        %v1559 = vsub.f32 %v1065, %v1558
        %v1560 = vand.u32 %v1559, 4294901760
        %1561 = vmatmul.f32.gmra.mxu0 %v1560
        %v1562 = vpop.f32.mrf.mxu0
        %v1563 = vadd.f32 %v1461, %v1562
        %v1564 = vand.u32 %v1069, 4294901760
        %v1565 = vsub.f32 %v1069, %v1564
        %v1566 = vand.u32 %v1565, 4294901760
        %1567 = vmatmul.f32.gmra.mxu0 %v1566
        %v1568 = vpop.f32.mrf.mxu0
        %v1569 = vadd.f32 %v1466, %v1568
        %v1570 = vand.u32 %v1073, 4294901760
        %v1571 = vsub.f32 %v1073, %v1570
        %v1572 = vand.u32 %v1571, 4294901760
        %1573 = vmatmul.f32.gmra.mxu0 %v1572
        %v1574 = vpop.f32.mrf.mxu0
        %v1575 = vadd.f32 %v1471, %v1574
        %v1576 = vand.u32 %v1077, 4294901760
        %v1577 = vsub.f32 %v1077, %v1576
        %v1578 = vand.u32 %v1577, 4294901760
        %1579 = vmatmul.f32.gmra.mxu0 %v1578
        %v1580 = vpop.f32.mrf.mxu0
        %v1581 = vadd.f32 %v1476, %v1580
        %v1582 = vand.u32 %v1081, 4294901760
        %v1583 = vsub.f32 %v1081, %v1582
        %v1584 = vand.u32 %v1583, 4294901760
        %1585 = vmatmul.f32.gmra.mxu0 %v1584
        %v1586 = vpop.f32.mrf.mxu0
        %v1587 = vadd.f32 %v1481, %v1586
        %v1588 = vand.u32 %v1085, 4294901760
        %v1589 = vsub.f32 %v1085, %v1588
        %v1590 = vand.u32 %v1589, 4294901760
        %1591 = vmatmul.f32.gmra.mxu0 %v1590
        %v1592 = vpop.f32.mrf.mxu0
        %v1593 = vadd.f32 %v1486, %v1592
        %v1594 = vand.u32 %v1089, 4294901760
        %v1595 = vsub.f32 %v1089, %v1594
        %v1596 = vand.u32 %v1595, 4294901760
        %1597 = vmatmul.f32.gmra.mxu0 %v1596
        %v1598 = vpop.f32.mrf.mxu0
        %v1599 = vadd.f32 %v1491, %v1598
        %v1600 = vand.u32 %v1093, 4294901760
        %v1601 = vsub.f32 %v1093, %v1600
        %v1602 = vand.u32 %v1601, 4294901760
        %1603 = vmatmul.f32.gmra.mxu0 %v1602
        %v1604 = vpop.f32.mrf.mxu0
        %v1605 = vadd.f32 %v1496, %v1604
        %v1606 = vand.u32 %v1097, 4294901760
        %v1607 = vsub.f32 %v1097, %v1606
        %v1608 = vand.u32 %v1607, 4294901760
        %1609 = vmatmul.f32.gmra.mxu0 %v1608
        %v1610 = vpop.f32.mrf.mxu0
        %v1611 = vadd.f32 %v1501, %v1610
        %v1612 = vand.u32 %v1101, 4294901760
        %v1613 = vsub.f32 %v1101, %v1612
        %v1614 = vand.u32 %v1613, 4294901760
        %1615 = vmatmul.f32.gmra.mxu0 %v1614
        %v1616 = vpop.f32.mrf.mxu0
        %v1617 = vadd.f32 %v1506, %v1616
        %v1618 = vand.u32 %v1105, 4294901760
        %v1619 = vsub.f32 %v1105, %v1618
        %v1620 = vand.u32 %v1619, 4294901760
        %1621 = vmatmul.f32.gmra.mxu0 %v1620
        %v1622 = vpop.f32.mrf.mxu0
        %v1623 = vadd.f32 %v1511, %v1622
        %v1624 = vand.u32 %v1109, 4294901760
        %v1625 = vsub.f32 %v1109, %v1624
        %v1626 = vand.u32 %v1625, 4294901760
        %1627 = vmatmul.f32.gmra.mxu0 %v1626
        %v1628 = vpop.f32.mrf.mxu0
        %v1629 = vadd.f32 %v1516, %v1628
        %v1630 = vand.u32 %v1113, 4294901760
        %v1631 = vsub.f32 %v1113, %v1630
        %v1632 = vand.u32 %v1631, 4294901760
        %1633 = vmatmul.f32.gmra.mxu0 %v1632
        %v1634 = vpop.f32.mrf.mxu0
        %v1635 = vadd.f32 %v1521, %v1634
        %1636 = vdwg.mxu0
        %1637 = vmatpush.xpose.msra.mxu0 0.0
        %1638 = vmatpush.xpose.msra.mxu0 0.0
        %1639 = vmatpush.xpose.msra.mxu0 0.0
        %1640 = vmatpush.xpose.msra.mxu0 0.0
        %1641 = vmatpush.xpose.msra.mxu0 0.0
        %1642 = vmatpush.xpose.msra.mxu0 0.0
        %1643 = vmatpush.xpose.msra.mxu0 0.0
        %1644 = vmatpush.xpose.msra.mxu0 0.0
        %1645 = vmatpush.xpose.msra.mxu0 0.0
        %1646 = vmatpush.xpose.msra.mxu0 0.0
        %1647 = vmatpush.xpose.msra.mxu0 0.0
        %1648 = vmatpush.xpose.msra.mxu0 0.0
        %1649 = vmatpush.xpose.msra.mxu0 0.0
        %1650 = vmatpush.xpose.msra.mxu0 0.0
        %1651 = vmatpush.xpose.msra.mxu0 0.0
        %v1652 = vand.u32 %v1184, 4294901760
        %v1653 = vsub.f32 %v1184, %v1652
        %v1654 = vand.u32 %v1653, 4294901760
        %1655 = vmatpush.xpose.msra.mxu0 %v1654
        %v1656 = vand.u32 %v1053, 4294901760
        %1657 = vmatmul.f32.gmra.mxu0 %v1656
        %v1658 = vpop.f32.mrf.mxu0
        %v1659 = vadd.f32 %v1545, %v1658
        %v1660 = vand.u32 %v1057, 4294901760
        %1661 = vmatmul.f32.gmra.mxu0 %v1660
        %v1662 = vpop.f32.mrf.mxu0
        %v1663 = vadd.f32 %v1551, %v1662
        %v1664 = vand.u32 %v1061, 4294901760
        %1665 = vmatmul.f32.gmra.mxu0 %v1664
        %v1666 = vpop.f32.mrf.mxu0
        %v1667 = vadd.f32 %v1557, %v1666
        %v1668 = vand.u32 %v1065, 4294901760
        %1669 = vmatmul.f32.gmra.mxu0 %v1668
        %v1670 = vpop.f32.mrf.mxu0
        %v1671 = vadd.f32 %v1563, %v1670
        %v1672 = vand.u32 %v1069, 4294901760
        %1673 = vmatmul.f32.gmra.mxu0 %v1672
        %v1674 = vpop.f32.mrf.mxu0
        %v1675 = vadd.f32 %v1569, %v1674
        %v1676 = vand.u32 %v1073, 4294901760
        %1677 = vmatmul.f32.gmra.mxu0 %v1676
        %v1678 = vpop.f32.mrf.mxu0
        %v1679 = vadd.f32 %v1575, %v1678
        %v1680 = vand.u32 %v1077, 4294901760
        %1681 = vmatmul.f32.gmra.mxu0 %v1680
        %v1682 = vpop.f32.mrf.mxu0
        %v1683 = vadd.f32 %v1581, %v1682
        %v1684 = vand.u32 %v1081, 4294901760
        %1685 = vmatmul.f32.gmra.mxu0 %v1684
        %v1686 = vpop.f32.mrf.mxu0
        %v1687 = vadd.f32 %v1587, %v1686
        %v1688 = vand.u32 %v1085, 4294901760
        %1689 = vmatmul.f32.gmra.mxu0 %v1688
        %v1690 = vpop.f32.mrf.mxu0
        %v1691 = vadd.f32 %v1593, %v1690
        %v1692 = vand.u32 %v1089, 4294901760
        %1693 = vmatmul.f32.gmra.mxu0 %v1692
        %v1694 = vpop.f32.mrf.mxu0
        %v1695 = vadd.f32 %v1599, %v1694
        %v1696 = vand.u32 %v1093, 4294901760
        %1697 = vmatmul.f32.gmra.mxu0 %v1696
        %v1698 = vpop.f32.mrf.mxu0
        %v1699 = vadd.f32 %v1605, %v1698
        %v1700 = vand.u32 %v1097, 4294901760
        %1701 = vmatmul.f32.gmra.mxu0 %v1700
        %v1702 = vpop.f32.mrf.mxu0
        %v1703 = vadd.f32 %v1611, %v1702
        %v1704 = vand.u32 %v1101, 4294901760
        %1705 = vmatmul.f32.gmra.mxu0 %v1704
        %v1706 = vpop.f32.mrf.mxu0
        %v1707 = vadd.f32 %v1617, %v1706
        %v1708 = vand.u32 %v1105, 4294901760
        %1709 = vmatmul.f32.gmra.mxu0 %v1708
        %v1710 = vpop.f32.mrf.mxu0
        %v1711 = vadd.f32 %v1623, %v1710
        %v1712 = vand.u32 %v1109, 4294901760
        %1713 = vmatmul.f32.gmra.mxu0 %v1712
        %v1714 = vpop.f32.mrf.mxu0
        %v1715 = vadd.f32 %v1629, %v1714
        %v1716 = vand.u32 %v1113, 4294901760
        %1717 = vmatmul.f32.gmra.mxu0 %v1716
        %v1718 = vpop.f32.mrf.mxu0
        %v1719 = vadd.f32 %v1635, %v1718
        %1720 = vdwg.mxu0
        %1721 = vmatpush.xpose.msra.mxu0 0.0
        %1722 = vmatpush.xpose.msra.mxu0 0.0
        %1723 = vmatpush.xpose.msra.mxu0 0.0
        %1724 = vmatpush.xpose.msra.mxu0 0.0
        %1725 = vmatpush.xpose.msra.mxu0 0.0
        %1726 = vmatpush.xpose.msra.mxu0 0.0
        %1727 = vmatpush.xpose.msra.mxu0 0.0
        %1728 = vmatpush.xpose.msra.mxu0 0.0
        %1729 = vmatpush.xpose.msra.mxu0 0.0
        %1730 = vmatpush.xpose.msra.mxu0 0.0
        %1731 = vmatpush.xpose.msra.mxu0 0.0
        %1732 = vmatpush.xpose.msra.mxu0 0.0
        %1733 = vmatpush.xpose.msra.mxu0 0.0
        %1734 = vmatpush.xpose.msra.mxu0 0.0
        %1735 = vmatpush.xpose.msra.mxu0 0.0
        %v1736 = vand.u32 %v1184, 4294901760
        %1737 = vmatpush.xpose.msra.mxu0 %v1736
        %v1738 = vand.u32 %v1053, 4294901760
        %1739 = vmatmul.f32.gmra.mxu0 %v1738
        %v1740 = vpop.f32.mrf.mxu0
        %v1741 = vadd.f32 %v1659, %v1740
        %v1742 = vand.u32 %v1057, 4294901760
        %1743 = vmatmul.f32.gmra.mxu0 %v1742
        %v1744 = vpop.f32.mrf.mxu0
        %v1745 = vadd.f32 %v1663, %v1744
        %v1746 = vand.u32 %v1061, 4294901760
        %1747 = vmatmul.f32.gmra.mxu0 %v1746
        %v1748 = vpop.f32.mrf.mxu0
        %v1749 = vadd.f32 %v1667, %v1748
        %v1750 = vand.u32 %v1065, 4294901760
        %1751 = vmatmul.f32.gmra.mxu0 %v1750
        %v1752 = vpop.f32.mrf.mxu0
        %v1753 = vadd.f32 %v1671, %v1752
        %v1754 = vand.u32 %v1069, 4294901760
        %1755 = vmatmul.f32.gmra.mxu0 %v1754
        %v1756 = vpop.f32.mrf.mxu0
        %v1757 = vadd.f32 %v1675, %v1756
        %v1758 = vand.u32 %v1073, 4294901760
        %1759 = vmatmul.f32.gmra.mxu0 %v1758
        %v1760 = vpop.f32.mrf.mxu0
        %v1761 = vadd.f32 %v1679, %v1760
        %v1762 = vand.u32 %v1077, 4294901760
        %1763 = vmatmul.f32.gmra.mxu0 %v1762
        %v1764 = vpop.f32.mrf.mxu0
        %v1765 = vadd.f32 %v1683, %v1764
        %v1766 = vand.u32 %v1081, 4294901760
        %1767 = vmatmul.f32.gmra.mxu0 %v1766
        %v1768 = vpop.f32.mrf.mxu0
        %v1769 = vadd.f32 %v1687, %v1768
        %v1770 = vand.u32 %v1085, 4294901760
        %1771 = vmatmul.f32.gmra.mxu0 %v1770
        %v1772 = vpop.f32.mrf.mxu0
        %v1773 = vadd.f32 %v1691, %v1772
        %v1774 = vand.u32 %v1089, 4294901760
        %1775 = vmatmul.f32.gmra.mxu0 %v1774
        %v1776 = vpop.f32.mrf.mxu0
        %v1777 = vadd.f32 %v1695, %v1776
        %v1778 = vand.u32 %v1093, 4294901760
        %1779 = vmatmul.f32.gmra.mxu0 %v1778
        %v1780 = vpop.f32.mrf.mxu0
        %v1781 = vadd.f32 %v1699, %v1780
        %v1782 = vand.u32 %v1097, 4294901760
        %1783 = vmatmul.f32.gmra.mxu0 %v1782
        %v1784 = vpop.f32.mrf.mxu0
        %v1785 = vadd.f32 %v1703, %v1784
        %v1786 = vand.u32 %v1101, 4294901760
        %1787 = vmatmul.f32.gmra.mxu0 %v1786
        %v1788 = vpop.f32.mrf.mxu0
        %v1789 = vadd.f32 %v1707, %v1788
        %v1790 = vand.u32 %v1105, 4294901760
        %1791 = vmatmul.f32.gmra.mxu0 %v1790
        %v1792 = vpop.f32.mrf.mxu0
        %v1793 = vadd.f32 %v1711, %v1792
        %v1794 = vand.u32 %v1109, 4294901760
        %1795 = vmatmul.f32.gmra.mxu0 %v1794
        %v1796 = vpop.f32.mrf.mxu0
        %v1797 = vadd.f32 %v1715, %v1796
        %v1798 = vand.u32 %v1113, 4294901760
        %1799 = vmatmul.f32.gmra.mxu0 %v1798
        %v1800 = vpop.f32.mrf.mxu0
        %v1801 = vadd.f32 %v1719, %v1800
        %1802 = vdwg.mxu0
        %1803 = vmatpush.xpose.msra.mxu0 0.0
        %1804 = vmatpush.xpose.msra.mxu0 0.0
        %1805 = vmatpush.xpose.msra.mxu0 0.0
        %1806 = vmatpush.xpose.msra.mxu0 0.0
        %1807 = vmatpush.xpose.msra.mxu0 0.0
        %1808 = vmatpush.xpose.msra.mxu0 0.0
        %1809 = vmatpush.xpose.msra.mxu0 0.0
        %1810 = vmatpush.xpose.msra.mxu0 0.0
        %1811 = vmatpush.xpose.msra.mxu0 0.0
        %1812 = vmatpush.xpose.msra.mxu0 0.0
        %1813 = vmatpush.xpose.msra.mxu0 0.0
        %1814 = vmatpush.xpose.msra.mxu0 0.0
        %1815 = vmatpush.xpose.msra.mxu0 0.0
        %1816 = vmatpush.xpose.msra.mxu0 0.0
        %1817 = vmatpush.xpose.msra.mxu0 0.0
        %v1818 = vand.u32 %v1185, 4294901760
        %1819 = vmatpush.xpose.msra.mxu0 %v1818
        %v1820 = vand.u32 %v1054, 4294901760
        %v1821 = vsub.f32 %v1054, %v1820
        %v1822 = vand.u32 %v1821, 4294901760
        %v1823 = vsub.f32 %v1821, %v1822
        %v1824 = vand.u32 %v1823, 4294901760
        %1825 = vmatmul.f32.gmra.mxu0 %v1824
        %v1826 = vpop.f32.mrf.mxu0
        %v1827 = vadd.f32 %v1741, %v1826
        %v1828 = vand.u32 %v1058, 4294901760
        %v1829 = vsub.f32 %v1058, %v1828
        %v1830 = vand.u32 %v1829, 4294901760
        %v1831 = vsub.f32 %v1829, %v1830
        %v1832 = vand.u32 %v1831, 4294901760
        %1833 = vmatmul.f32.gmra.mxu0 %v1832
        %v1834 = vpop.f32.mrf.mxu0
        %v1835 = vadd.f32 %v1745, %v1834
        %v1836 = vand.u32 %v1062, 4294901760
        %v1837 = vsub.f32 %v1062, %v1836
        %v1838 = vand.u32 %v1837, 4294901760
        %v1839 = vsub.f32 %v1837, %v1838
        %v1840 = vand.u32 %v1839, 4294901760
        %1841 = vmatmul.f32.gmra.mxu0 %v1840
        %v1842 = vpop.f32.mrf.mxu0
        %v1843 = vadd.f32 %v1749, %v1842
        %v1844 = vand.u32 %v1066, 4294901760
        %v1845 = vsub.f32 %v1066, %v1844
        %v1846 = vand.u32 %v1845, 4294901760
        %v1847 = vsub.f32 %v1845, %v1846
        %v1848 = vand.u32 %v1847, 4294901760
        %1849 = vmatmul.f32.gmra.mxu0 %v1848
        %v1850 = vpop.f32.mrf.mxu0
        %v1851 = vadd.f32 %v1753, %v1850
        %v1852 = vand.u32 %v1070, 4294901760
        %v1853 = vsub.f32 %v1070, %v1852
        %v1854 = vand.u32 %v1853, 4294901760
        %v1855 = vsub.f32 %v1853, %v1854
        %v1856 = vand.u32 %v1855, 4294901760
        %1857 = vmatmul.f32.gmra.mxu0 %v1856
        %v1858 = vpop.f32.mrf.mxu0
        %v1859 = vadd.f32 %v1757, %v1858
        %v1860 = vand.u32 %v1074, 4294901760
        %v1861 = vsub.f32 %v1074, %v1860
        %v1862 = vand.u32 %v1861, 4294901760
        %v1863 = vsub.f32 %v1861, %v1862
        %v1864 = vand.u32 %v1863, 4294901760
        %1865 = vmatmul.f32.gmra.mxu0 %v1864
        %v1866 = vpop.f32.mrf.mxu0
        %v1867 = vadd.f32 %v1761, %v1866
        %v1868 = vand.u32 %v1078, 4294901760
        %v1869 = vsub.f32 %v1078, %v1868
        %v1870 = vand.u32 %v1869, 4294901760
        %v1871 = vsub.f32 %v1869, %v1870
        %v1872 = vand.u32 %v1871, 4294901760
        %1873 = vmatmul.f32.gmra.mxu0 %v1872
        %v1874 = vpop.f32.mrf.mxu0
        %v1875 = vadd.f32 %v1765, %v1874
        %v1876 = vand.u32 %v1082, 4294901760
        %v1877 = vsub.f32 %v1082, %v1876
        %v1878 = vand.u32 %v1877, 4294901760
        %v1879 = vsub.f32 %v1877, %v1878
        %v1880 = vand.u32 %v1879, 4294901760
        %1881 = vmatmul.f32.gmra.mxu0 %v1880
        %v1882 = vpop.f32.mrf.mxu0
        %v1883 = vadd.f32 %v1769, %v1882
        %v1884 = vand.u32 %v1086, 4294901760
        %v1885 = vsub.f32 %v1086, %v1884
        %v1886 = vand.u32 %v1885, 4294901760
        %v1887 = vsub.f32 %v1885, %v1886
        %v1888 = vand.u32 %v1887, 4294901760
        %1889 = vmatmul.f32.gmra.mxu0 %v1888
        %v1890 = vpop.f32.mrf.mxu0
        %v1891 = vadd.f32 %v1773, %v1890
        %v1892 = vand.u32 %v1090, 4294901760
        %v1893 = vsub.f32 %v1090, %v1892
        %v1894 = vand.u32 %v1893, 4294901760
        %v1895 = vsub.f32 %v1893, %v1894
        %v1896 = vand.u32 %v1895, 4294901760
        %1897 = vmatmul.f32.gmra.mxu0 %v1896
        %v1898 = vpop.f32.mrf.mxu0
        %v1899 = vadd.f32 %v1777, %v1898
        %v1900 = vand.u32 %v1094, 4294901760
        %v1901 = vsub.f32 %v1094, %v1900
        %v1902 = vand.u32 %v1901, 4294901760
        %v1903 = vsub.f32 %v1901, %v1902
        %v1904 = vand.u32 %v1903, 4294901760
        %1905 = vmatmul.f32.gmra.mxu0 %v1904
        %v1906 = vpop.f32.mrf.mxu0
        %v1907 = vadd.f32 %v1781, %v1906
        %v1908 = vand.u32 %v1098, 4294901760
        %v1909 = vsub.f32 %v1098, %v1908
        %v1910 = vand.u32 %v1909, 4294901760
        %v1911 = vsub.f32 %v1909, %v1910
        %v1912 = vand.u32 %v1911, 4294901760
        %1913 = vmatmul.f32.gmra.mxu0 %v1912
        %v1914 = vpop.f32.mrf.mxu0
        %v1915 = vadd.f32 %v1785, %v1914
        %v1916 = vand.u32 %v1102, 4294901760
        %v1917 = vsub.f32 %v1102, %v1916
        %v1918 = vand.u32 %v1917, 4294901760
        %v1919 = vsub.f32 %v1917, %v1918
        %v1920 = vand.u32 %v1919, 4294901760
        %1921 = vmatmul.f32.gmra.mxu0 %v1920
        %v1922 = vpop.f32.mrf.mxu0
        %v1923 = vadd.f32 %v1789, %v1922
        %v1924 = vand.u32 %v1106, 4294901760
        %v1925 = vsub.f32 %v1106, %v1924
        %v1926 = vand.u32 %v1925, 4294901760
        %v1927 = vsub.f32 %v1925, %v1926
        %v1928 = vand.u32 %v1927, 4294901760
        %1929 = vmatmul.f32.gmra.mxu0 %v1928
        %v1930 = vpop.f32.mrf.mxu0
        %v1931 = vadd.f32 %v1793, %v1930
        %v1932 = vand.u32 %v1110, 4294901760
        %v1933 = vsub.f32 %v1110, %v1932
        %v1934 = vand.u32 %v1933, 4294901760
        %v1935 = vsub.f32 %v1933, %v1934
        %v1936 = vand.u32 %v1935, 4294901760
        %1937 = vmatmul.f32.gmra.mxu0 %v1936
        %v1938 = vpop.f32.mrf.mxu0
        %v1939 = vadd.f32 %v1797, %v1938
        %v1940 = vand.u32 %v1114, 4294901760
        %v1941 = vsub.f32 %v1114, %v1940
        %v1942 = vand.u32 %v1941, 4294901760
        %v1943 = vsub.f32 %v1941, %v1942
        %v1944 = vand.u32 %v1943, 4294901760
        %1945 = vmatmul.f32.gmra.mxu0 %v1944
        %v1946 = vpop.f32.mrf.mxu0
        %v1947 = vadd.f32 %v1801, %v1946
        %1948 = vdwg.mxu0
        %1949 = vmatpush.xpose.msra.mxu0 0.0
        %1950 = vmatpush.xpose.msra.mxu0 0.0
        %1951 = vmatpush.xpose.msra.mxu0 0.0
        %1952 = vmatpush.xpose.msra.mxu0 0.0
        %1953 = vmatpush.xpose.msra.mxu0 0.0
        %1954 = vmatpush.xpose.msra.mxu0 0.0
        %1955 = vmatpush.xpose.msra.mxu0 0.0
        %1956 = vmatpush.xpose.msra.mxu0 0.0
        %1957 = vmatpush.xpose.msra.mxu0 0.0
        %1958 = vmatpush.xpose.msra.mxu0 0.0
        %1959 = vmatpush.xpose.msra.mxu0 0.0
        %1960 = vmatpush.xpose.msra.mxu0 0.0
        %1961 = vmatpush.xpose.msra.mxu0 0.0
        %1962 = vmatpush.xpose.msra.mxu0 0.0
        %1963 = vmatpush.xpose.msra.mxu0 0.0
        %v1964 = vand.u32 %v1185, 4294901760
        %v1965 = vsub.f32 %v1185, %v1964
        %v1966 = vand.u32 %v1965, 4294901760
        %v1967 = vsub.f32 %v1965, %v1966
        %v1968 = vand.u32 %v1967, 4294901760
        %1969 = vmatpush.xpose.msra.mxu0 %v1968
        %v1970 = vand.u32 %v1054, 4294901760
        %1971 = vmatmul.f32.gmra.mxu0 %v1970
        %v1972 = vpop.f32.mrf.mxu0
        %v1973 = vadd.f32 %v1827, %v1972
        %v1974 = vand.u32 %v1058, 4294901760
        %1975 = vmatmul.f32.gmra.mxu0 %v1974
        %v1976 = vpop.f32.mrf.mxu0
        %v1977 = vadd.f32 %v1835, %v1976
        %v1978 = vand.u32 %v1062, 4294901760
        %1979 = vmatmul.f32.gmra.mxu0 %v1978
        %v1980 = vpop.f32.mrf.mxu0
        %v1981 = vadd.f32 %v1843, %v1980
        %v1982 = vand.u32 %v1066, 4294901760
        %1983 = vmatmul.f32.gmra.mxu0 %v1982
        %v1984 = vpop.f32.mrf.mxu0
        %v1985 = vadd.f32 %v1851, %v1984
        %v1986 = vand.u32 %v1070, 4294901760
        %1987 = vmatmul.f32.gmra.mxu0 %v1986
        %v1988 = vpop.f32.mrf.mxu0
        %v1989 = vadd.f32 %v1859, %v1988
        %v1990 = vand.u32 %v1074, 4294901760
        %1991 = vmatmul.f32.gmra.mxu0 %v1990
        %v1992 = vpop.f32.mrf.mxu0
        %v1993 = vadd.f32 %v1867, %v1992
        %v1994 = vand.u32 %v1078, 4294901760
        %1995 = vmatmul.f32.gmra.mxu0 %v1994
        %v1996 = vpop.f32.mrf.mxu0
        %v1997 = vadd.f32 %v1875, %v1996
        %v1998 = vand.u32 %v1082, 4294901760
        %1999 = vmatmul.f32.gmra.mxu0 %v1998
        %v2000 = vpop.f32.mrf.mxu0
        %v2001 = vadd.f32 %v1883, %v2000
        %v2002 = vand.u32 %v1086, 4294901760
        %2003 = vmatmul.f32.gmra.mxu0 %v2002
        %v2004 = vpop.f32.mrf.mxu0
        %v2005 = vadd.f32 %v1891, %v2004
        %v2006 = vand.u32 %v1090, 4294901760
        %2007 = vmatmul.f32.gmra.mxu0 %v2006
        %v2008 = vpop.f32.mrf.mxu0
        %v2009 = vadd.f32 %v1899, %v2008
        %v2010 = vand.u32 %v1094, 4294901760
        %2011 = vmatmul.f32.gmra.mxu0 %v2010
        %v2012 = vpop.f32.mrf.mxu0
        %v2013 = vadd.f32 %v1907, %v2012
        %v2014 = vand.u32 %v1098, 4294901760
        %2015 = vmatmul.f32.gmra.mxu0 %v2014
        %v2016 = vpop.f32.mrf.mxu0
        %v2017 = vadd.f32 %v1915, %v2016
        %v2018 = vand.u32 %v1102, 4294901760
        %2019 = vmatmul.f32.gmra.mxu0 %v2018
        %v2020 = vpop.f32.mrf.mxu0
        %v2021 = vadd.f32 %v1923, %v2020
        %v2022 = vand.u32 %v1106, 4294901760
        %2023 = vmatmul.f32.gmra.mxu0 %v2022
        %v2024 = vpop.f32.mrf.mxu0
        %v2025 = vadd.f32 %v1931, %v2024
        %v2026 = vand.u32 %v1110, 4294901760
        %2027 = vmatmul.f32.gmra.mxu0 %v2026
        %v2028 = vpop.f32.mrf.mxu0
        %v2029 = vadd.f32 %v1939, %v2028
        %v2030 = vand.u32 %v1114, 4294901760
        %2031 = vmatmul.f32.gmra.mxu0 %v2030
        %v2032 = vpop.f32.mrf.mxu0
        %v2033 = vadd.f32 %v1947, %v2032
        %2034 = vdwg.mxu0
        %2035 = vmatpush.xpose.msra.mxu0 0.0
        %2036 = vmatpush.xpose.msra.mxu0 0.0
        %2037 = vmatpush.xpose.msra.mxu0 0.0
        %2038 = vmatpush.xpose.msra.mxu0 0.0
        %2039 = vmatpush.xpose.msra.mxu0 0.0
        %2040 = vmatpush.xpose.msra.mxu0 0.0
        %2041 = vmatpush.xpose.msra.mxu0 0.0
        %2042 = vmatpush.xpose.msra.mxu0 0.0
        %2043 = vmatpush.xpose.msra.mxu0 0.0
        %2044 = vmatpush.xpose.msra.mxu0 0.0
        %2045 = vmatpush.xpose.msra.mxu0 0.0
        %2046 = vmatpush.xpose.msra.mxu0 0.0
        %2047 = vmatpush.xpose.msra.mxu0 0.0
        %2048 = vmatpush.xpose.msra.mxu0 0.0
        %2049 = vmatpush.xpose.msra.mxu0 0.0
        %v2050 = vand.u32 %v1185, 4294901760
        %v2051 = vsub.f32 %v1185, %v2050
        %2052 = vmatpush.xpose.msra.mxu0 %v2051
        %v2053 = vand.u32 %v1054, 4294901760
        %v2054 = vsub.f32 %v1054, %v2053
        %2055 = vmatmul.f32.gmra.mxu0 %v2054
        %v2056 = vpop.f32.mrf.mxu0
        %v2057 = vadd.f32 %v1973, %v2056
        %v2058 = vand.u32 %v1058, 4294901760
        %v2059 = vsub.f32 %v1058, %v2058
        %2060 = vmatmul.f32.gmra.mxu0 %v2059
        %v2061 = vpop.f32.mrf.mxu0
        %v2062 = vadd.f32 %v1977, %v2061
        %v2063 = vand.u32 %v1062, 4294901760
        %v2064 = vsub.f32 %v1062, %v2063
        %2065 = vmatmul.f32.gmra.mxu0 %v2064
        %v2066 = vpop.f32.mrf.mxu0
        %v2067 = vadd.f32 %v1981, %v2066
        %v2068 = vand.u32 %v1066, 4294901760
        %v2069 = vsub.f32 %v1066, %v2068
        %2070 = vmatmul.f32.gmra.mxu0 %v2069
        %v2071 = vpop.f32.mrf.mxu0
        %v2072 = vadd.f32 %v1985, %v2071
        %v2073 = vand.u32 %v1070, 4294901760
        %v2074 = vsub.f32 %v1070, %v2073
        %2075 = vmatmul.f32.gmra.mxu0 %v2074
        %v2076 = vpop.f32.mrf.mxu0
        %v2077 = vadd.f32 %v1989, %v2076
        %v2078 = vand.u32 %v1074, 4294901760
        %v2079 = vsub.f32 %v1074, %v2078
        %2080 = vmatmul.f32.gmra.mxu0 %v2079
        %v2081 = vpop.f32.mrf.mxu0
        %v2082 = vadd.f32 %v1993, %v2081
        %v2083 = vand.u32 %v1078, 4294901760
        %v2084 = vsub.f32 %v1078, %v2083
        %2085 = vmatmul.f32.gmra.mxu0 %v2084
        %v2086 = vpop.f32.mrf.mxu0
        %v2087 = vadd.f32 %v1997, %v2086
        %v2088 = vand.u32 %v1082, 4294901760
        %v2089 = vsub.f32 %v1082, %v2088
        %2090 = vmatmul.f32.gmra.mxu0 %v2089
        %v2091 = vpop.f32.mrf.mxu0
        %v2092 = vadd.f32 %v2001, %v2091
        %v2093 = vand.u32 %v1086, 4294901760
        %v2094 = vsub.f32 %v1086, %v2093
        %2095 = vmatmul.f32.gmra.mxu0 %v2094
        %v2096 = vpop.f32.mrf.mxu0
        %v2097 = vadd.f32 %v2005, %v2096
        %v2098 = vand.u32 %v1090, 4294901760
        %v2099 = vsub.f32 %v1090, %v2098
        %2100 = vmatmul.f32.gmra.mxu0 %v2099
        %v2101 = vpop.f32.mrf.mxu0
        %v2102 = vadd.f32 %v2009, %v2101
        %v2103 = vand.u32 %v1094, 4294901760
        %v2104 = vsub.f32 %v1094, %v2103
        %2105 = vmatmul.f32.gmra.mxu0 %v2104
        %v2106 = vpop.f32.mrf.mxu0
        %v2107 = vadd.f32 %v2013, %v2106
        %v2108 = vand.u32 %v1098, 4294901760
        %v2109 = vsub.f32 %v1098, %v2108
        %2110 = vmatmul.f32.gmra.mxu0 %v2109
        %v2111 = vpop.f32.mrf.mxu0
        %v2112 = vadd.f32 %v2017, %v2111
        %v2113 = vand.u32 %v1102, 4294901760
        %v2114 = vsub.f32 %v1102, %v2113
        %2115 = vmatmul.f32.gmra.mxu0 %v2114
        %v2116 = vpop.f32.mrf.mxu0
        %v2117 = vadd.f32 %v2021, %v2116
        %v2118 = vand.u32 %v1106, 4294901760
        %v2119 = vsub.f32 %v1106, %v2118
        %2120 = vmatmul.f32.gmra.mxu0 %v2119
        %v2121 = vpop.f32.mrf.mxu0
        %v2122 = vadd.f32 %v2025, %v2121
        %v2123 = vand.u32 %v1110, 4294901760
        %v2124 = vsub.f32 %v1110, %v2123
        %2125 = vmatmul.f32.gmra.mxu0 %v2124
        %v2126 = vpop.f32.mrf.mxu0
        %v2127 = vadd.f32 %v2029, %v2126
        %v2128 = vand.u32 %v1114, 4294901760
        %v2129 = vsub.f32 %v1114, %v2128
        %2130 = vmatmul.f32.gmra.mxu0 %v2129
        %v2131 = vpop.f32.mrf.mxu0
        %v2132 = vadd.f32 %v2033, %v2131
        %2133 = vdwg.mxu0
        %2134 = vmatpush.xpose.msra.mxu0 0.0
        %2135 = vmatpush.xpose.msra.mxu0 0.0
        %2136 = vmatpush.xpose.msra.mxu0 0.0
        %2137 = vmatpush.xpose.msra.mxu0 0.0
        %2138 = vmatpush.xpose.msra.mxu0 0.0
        %2139 = vmatpush.xpose.msra.mxu0 0.0
        %2140 = vmatpush.xpose.msra.mxu0 0.0
        %2141 = vmatpush.xpose.msra.mxu0 0.0
        %2142 = vmatpush.xpose.msra.mxu0 0.0
        %2143 = vmatpush.xpose.msra.mxu0 0.0
        %2144 = vmatpush.xpose.msra.mxu0 0.0
        %2145 = vmatpush.xpose.msra.mxu0 0.0
        %2146 = vmatpush.xpose.msra.mxu0 0.0
        %2147 = vmatpush.xpose.msra.mxu0 0.0
        %2148 = vmatpush.xpose.msra.mxu0 0.0
        %v2149 = vand.u32 %v1185, 4294901760
        %2150 = vmatpush.xpose.msra.mxu0 %v2149
        %v2151 = vand.u32 %v1054, 4294901760
        %v2152 = vsub.f32 %v1054, %v2151
        %v2153 = vand.u32 %v2152, 4294901760
        %2154 = vmatmul.f32.gmra.mxu0 %v2153
        %v2155 = vpop.f32.mrf.mxu0
        %v2156 = vadd.f32 %v2057, %v2155
        %v2157 = vand.u32 %v1058, 4294901760
        %v2158 = vsub.f32 %v1058, %v2157
        %v2159 = vand.u32 %v2158, 4294901760
        %2160 = vmatmul.f32.gmra.mxu0 %v2159
        %v2161 = vpop.f32.mrf.mxu0
        %v2162 = vadd.f32 %v2062, %v2161
        %v2163 = vand.u32 %v1062, 4294901760
        %v2164 = vsub.f32 %v1062, %v2163
        %v2165 = vand.u32 %v2164, 4294901760
        %2166 = vmatmul.f32.gmra.mxu0 %v2165
        %v2167 = vpop.f32.mrf.mxu0
        %v2168 = vadd.f32 %v2067, %v2167
        %v2169 = vand.u32 %v1066, 4294901760
        %v2170 = vsub.f32 %v1066, %v2169
        %v2171 = vand.u32 %v2170, 4294901760
        %2172 = vmatmul.f32.gmra.mxu0 %v2171
        %v2173 = vpop.f32.mrf.mxu0
        %v2174 = vadd.f32 %v2072, %v2173
        %v2175 = vand.u32 %v1070, 4294901760
        %v2176 = vsub.f32 %v1070, %v2175
        %v2177 = vand.u32 %v2176, 4294901760
        %2178 = vmatmul.f32.gmra.mxu0 %v2177
        %v2179 = vpop.f32.mrf.mxu0
        %v2180 = vadd.f32 %v2077, %v2179
        %v2181 = vand.u32 %v1074, 4294901760
        %v2182 = vsub.f32 %v1074, %v2181
        %v2183 = vand.u32 %v2182, 4294901760
        %2184 = vmatmul.f32.gmra.mxu0 %v2183
        %v2185 = vpop.f32.mrf.mxu0
        %v2186 = vadd.f32 %v2082, %v2185
        %v2187 = vand.u32 %v1078, 4294901760
        %v2188 = vsub.f32 %v1078, %v2187
        %v2189 = vand.u32 %v2188, 4294901760
        %2190 = vmatmul.f32.gmra.mxu0 %v2189
        %v2191 = vpop.f32.mrf.mxu0
        %v2192 = vadd.f32 %v2087, %v2191
        %v2193 = vand.u32 %v1082, 4294901760
        %v2194 = vsub.f32 %v1082, %v2193
        %v2195 = vand.u32 %v2194, 4294901760
        %2196 = vmatmul.f32.gmra.mxu0 %v2195
        %v2197 = vpop.f32.mrf.mxu0
        %v2198 = vadd.f32 %v2092, %v2197
        %v2199 = vand.u32 %v1086, 4294901760
        %v2200 = vsub.f32 %v1086, %v2199
        %v2201 = vand.u32 %v2200, 4294901760
        %2202 = vmatmul.f32.gmra.mxu0 %v2201
        %v2203 = vpop.f32.mrf.mxu0
        %v2204 = vadd.f32 %v2097, %v2203
        %v2205 = vand.u32 %v1090, 4294901760
        %v2206 = vsub.f32 %v1090, %v2205
        %v2207 = vand.u32 %v2206, 4294901760
        %2208 = vmatmul.f32.gmra.mxu0 %v2207
        %v2209 = vpop.f32.mrf.mxu0
        %v2210 = vadd.f32 %v2102, %v2209
        %v2211 = vand.u32 %v1094, 4294901760
        %v2212 = vsub.f32 %v1094, %v2211
        %v2213 = vand.u32 %v2212, 4294901760
        %2214 = vmatmul.f32.gmra.mxu0 %v2213
        %v2215 = vpop.f32.mrf.mxu0
        %v2216 = vadd.f32 %v2107, %v2215
        %v2217 = vand.u32 %v1098, 4294901760
        %v2218 = vsub.f32 %v1098, %v2217
        %v2219 = vand.u32 %v2218, 4294901760
        %2220 = vmatmul.f32.gmra.mxu0 %v2219
        %v2221 = vpop.f32.mrf.mxu0
        %v2222 = vadd.f32 %v2112, %v2221
        %v2223 = vand.u32 %v1102, 4294901760
        %v2224 = vsub.f32 %v1102, %v2223
        %v2225 = vand.u32 %v2224, 4294901760
        %2226 = vmatmul.f32.gmra.mxu0 %v2225
        %v2227 = vpop.f32.mrf.mxu0
        %v2228 = vadd.f32 %v2117, %v2227
        %v2229 = vand.u32 %v1106, 4294901760
        %v2230 = vsub.f32 %v1106, %v2229
        %v2231 = vand.u32 %v2230, 4294901760
        %2232 = vmatmul.f32.gmra.mxu0 %v2231
        %v2233 = vpop.f32.mrf.mxu0
        %v2234 = vadd.f32 %v2122, %v2233
        %v2235 = vand.u32 %v1110, 4294901760
        %v2236 = vsub.f32 %v1110, %v2235
        %v2237 = vand.u32 %v2236, 4294901760
        %2238 = vmatmul.f32.gmra.mxu0 %v2237
        %v2239 = vpop.f32.mrf.mxu0
        %v2240 = vadd.f32 %v2127, %v2239
        %v2241 = vand.u32 %v1114, 4294901760
        %v2242 = vsub.f32 %v1114, %v2241
        %v2243 = vand.u32 %v2242, 4294901760
        %2244 = vmatmul.f32.gmra.mxu0 %v2243
        %v2245 = vpop.f32.mrf.mxu0
        %v2246 = vadd.f32 %v2132, %v2245
        %2247 = vdwg.mxu0
        %2248 = vmatpush.xpose.msra.mxu0 0.0
        %2249 = vmatpush.xpose.msra.mxu0 0.0
        %2250 = vmatpush.xpose.msra.mxu0 0.0
        %2251 = vmatpush.xpose.msra.mxu0 0.0
        %2252 = vmatpush.xpose.msra.mxu0 0.0
        %2253 = vmatpush.xpose.msra.mxu0 0.0
        %2254 = vmatpush.xpose.msra.mxu0 0.0
        %2255 = vmatpush.xpose.msra.mxu0 0.0
        %2256 = vmatpush.xpose.msra.mxu0 0.0
        %2257 = vmatpush.xpose.msra.mxu0 0.0
        %2258 = vmatpush.xpose.msra.mxu0 0.0
        %2259 = vmatpush.xpose.msra.mxu0 0.0
        %2260 = vmatpush.xpose.msra.mxu0 0.0
        %2261 = vmatpush.xpose.msra.mxu0 0.0
        %2262 = vmatpush.xpose.msra.mxu0 0.0
        %v2263 = vand.u32 %v1185, 4294901760
        %v2264 = vsub.f32 %v1185, %v2263
        %v2265 = vand.u32 %v2264, 4294901760
        %2266 = vmatpush.xpose.msra.mxu0 %v2265
        %v2267 = vand.u32 %v1054, 4294901760
        %2268 = vmatmul.f32.gmra.mxu0 %v2267
        %v2269 = vpop.f32.mrf.mxu0
        %v2270 = vadd.f32 %v2156, %v2269
        %v2271 = vand.u32 %v1058, 4294901760
        %2272 = vmatmul.f32.gmra.mxu0 %v2271
        %v2273 = vpop.f32.mrf.mxu0
        %v2274 = vadd.f32 %v2162, %v2273
        %v2275 = vand.u32 %v1062, 4294901760
        %2276 = vmatmul.f32.gmra.mxu0 %v2275
        %v2277 = vpop.f32.mrf.mxu0
        %v2278 = vadd.f32 %v2168, %v2277
        %v2279 = vand.u32 %v1066, 4294901760
        %2280 = vmatmul.f32.gmra.mxu0 %v2279
        %v2281 = vpop.f32.mrf.mxu0
        %v2282 = vadd.f32 %v2174, %v2281
        %v2283 = vand.u32 %v1070, 4294901760
        %2284 = vmatmul.f32.gmra.mxu0 %v2283
        %v2285 = vpop.f32.mrf.mxu0
        %v2286 = vadd.f32 %v2180, %v2285
        %v2287 = vand.u32 %v1074, 4294901760
        %2288 = vmatmul.f32.gmra.mxu0 %v2287
        %v2289 = vpop.f32.mrf.mxu0
        %v2290 = vadd.f32 %v2186, %v2289
        %v2291 = vand.u32 %v1078, 4294901760
        %2292 = vmatmul.f32.gmra.mxu0 %v2291
        %v2293 = vpop.f32.mrf.mxu0
        %v2294 = vadd.f32 %v2192, %v2293
        %v2295 = vand.u32 %v1082, 4294901760
        %2296 = vmatmul.f32.gmra.mxu0 %v2295
        %v2297 = vpop.f32.mrf.mxu0
        %v2298 = vadd.f32 %v2198, %v2297
        %v2299 = vand.u32 %v1086, 4294901760
        %2300 = vmatmul.f32.gmra.mxu0 %v2299
        %v2301 = vpop.f32.mrf.mxu0
        %v2302 = vadd.f32 %v2204, %v2301
        %v2303 = vand.u32 %v1090, 4294901760
        %2304 = vmatmul.f32.gmra.mxu0 %v2303
        %v2305 = vpop.f32.mrf.mxu0
        %v2306 = vadd.f32 %v2210, %v2305
        %v2307 = vand.u32 %v1094, 4294901760
        %2308 = vmatmul.f32.gmra.mxu0 %v2307
        %v2309 = vpop.f32.mrf.mxu0
        %v2310 = vadd.f32 %v2216, %v2309
        %v2311 = vand.u32 %v1098, 4294901760
        %2312 = vmatmul.f32.gmra.mxu0 %v2311
        %v2313 = vpop.f32.mrf.mxu0
        %v2314 = vadd.f32 %v2222, %v2313
        %v2315 = vand.u32 %v1102, 4294901760
        %2316 = vmatmul.f32.gmra.mxu0 %v2315
        %v2317 = vpop.f32.mrf.mxu0
        %v2318 = vadd.f32 %v2228, %v2317
        %v2319 = vand.u32 %v1106, 4294901760
        %2320 = vmatmul.f32.gmra.mxu0 %v2319
        %v2321 = vpop.f32.mrf.mxu0
        %v2322 = vadd.f32 %v2234, %v2321
        %v2323 = vand.u32 %v1110, 4294901760
        %2324 = vmatmul.f32.gmra.mxu0 %v2323
        %v2325 = vpop.f32.mrf.mxu0
        %v2326 = vadd.f32 %v2240, %v2325
        %v2327 = vand.u32 %v1114, 4294901760
        %2328 = vmatmul.f32.gmra.mxu0 %v2327
        %v2329 = vpop.f32.mrf.mxu0
        %v2330 = vadd.f32 %v2246, %v2329
        %2331 = vdwg.mxu0
        %2332 = vmatpush.xpose.msra.mxu0 0.0
        %2333 = vmatpush.xpose.msra.mxu0 0.0
        %2334 = vmatpush.xpose.msra.mxu0 0.0
        %2335 = vmatpush.xpose.msra.mxu0 0.0
        %2336 = vmatpush.xpose.msra.mxu0 0.0
        %2337 = vmatpush.xpose.msra.mxu0 0.0
        %2338 = vmatpush.xpose.msra.mxu0 0.0
        %2339 = vmatpush.xpose.msra.mxu0 0.0
        %2340 = vmatpush.xpose.msra.mxu0 0.0
        %2341 = vmatpush.xpose.msra.mxu0 0.0
        %2342 = vmatpush.xpose.msra.mxu0 0.0
        %2343 = vmatpush.xpose.msra.mxu0 0.0
        %2344 = vmatpush.xpose.msra.mxu0 0.0
        %2345 = vmatpush.xpose.msra.mxu0 0.0
        %2346 = vmatpush.xpose.msra.mxu0 0.0
        %v2347 = vand.u32 %v1185, 4294901760
        %2348 = vmatpush.xpose.msra.mxu0 %v2347
        %v2349 = vand.u32 %v1054, 4294901760
        %2350 = vmatmul.f32.gmra.mxu0 %v2349
        %v2351 = vpop.f32.mrf.mxu0
        %v2352 = vadd.f32 %v2270, %v2351
        %v2353 = vand.u32 %v1058, 4294901760
        %2354 = vmatmul.f32.gmra.mxu0 %v2353
        %v2355 = vpop.f32.mrf.mxu0
        %v2356 = vadd.f32 %v2274, %v2355
        %v2357 = vand.u32 %v1062, 4294901760
        %2358 = vmatmul.f32.gmra.mxu0 %v2357
        %v2359 = vpop.f32.mrf.mxu0
        %v2360 = vadd.f32 %v2278, %v2359
        %v2361 = vand.u32 %v1066, 4294901760
        %2362 = vmatmul.f32.gmra.mxu0 %v2361
        %v2363 = vpop.f32.mrf.mxu0
        %v2364 = vadd.f32 %v2282, %v2363
        %v2365 = vand.u32 %v1070, 4294901760
        %2366 = vmatmul.f32.gmra.mxu0 %v2365
        %v2367 = vpop.f32.mrf.mxu0
        %v2368 = vadd.f32 %v2286, %v2367
        %v2369 = vand.u32 %v1074, 4294901760
        %2370 = vmatmul.f32.gmra.mxu0 %v2369
        %v2371 = vpop.f32.mrf.mxu0
        %v2372 = vadd.f32 %v2290, %v2371
        %v2373 = vand.u32 %v1078, 4294901760
        %2374 = vmatmul.f32.gmra.mxu0 %v2373
        %v2375 = vpop.f32.mrf.mxu0
        %v2376 = vadd.f32 %v2294, %v2375
        %v2377 = vand.u32 %v1082, 4294901760
        %2378 = vmatmul.f32.gmra.mxu0 %v2377
        %v2379 = vpop.f32.mrf.mxu0
        %v2380 = vadd.f32 %v2298, %v2379
        %v2381 = vand.u32 %v1086, 4294901760
        %2382 = vmatmul.f32.gmra.mxu0 %v2381
        %v2383 = vpop.f32.mrf.mxu0
        %v2384 = vadd.f32 %v2302, %v2383
        %v2385 = vand.u32 %v1090, 4294901760
        %2386 = vmatmul.f32.gmra.mxu0 %v2385
        %v2387 = vpop.f32.mrf.mxu0
        %v2388 = vadd.f32 %v2306, %v2387
        %v2389 = vand.u32 %v1094, 4294901760
        %2390 = vmatmul.f32.gmra.mxu0 %v2389
        %v2391 = vpop.f32.mrf.mxu0
        %v2392 = vadd.f32 %v2310, %v2391
        %v2393 = vand.u32 %v1098, 4294901760
        %2394 = vmatmul.f32.gmra.mxu0 %v2393
        %v2395 = vpop.f32.mrf.mxu0
        %v2396 = vadd.f32 %v2314, %v2395
        %v2397 = vand.u32 %v1102, 4294901760
        %2398 = vmatmul.f32.gmra.mxu0 %v2397
        %v2399 = vpop.f32.mrf.mxu0
        %v2400 = vadd.f32 %v2318, %v2399
        %v2401 = vand.u32 %v1106, 4294901760
        %2402 = vmatmul.f32.gmra.mxu0 %v2401
        %v2403 = vpop.f32.mrf.mxu0
        %v2404 = vadd.f32 %v2322, %v2403
        %v2405 = vand.u32 %v1110, 4294901760
        %2406 = vmatmul.f32.gmra.mxu0 %v2405
        %v2407 = vpop.f32.mrf.mxu0
        %v2408 = vadd.f32 %v2326, %v2407
        %v2409 = vand.u32 %v1114, 4294901760
        %2410 = vmatmul.f32.gmra.mxu0 %v2409
        %v2411 = vpop.f32.mrf.mxu0
        %v2412 = vadd.f32 %v2330, %v2411
        %2413 = vdwg.mxu0
        %2414 = vmatpush.xpose.msra.mxu0 0.0
        %2415 = vmatpush.xpose.msra.mxu0 0.0
        %2416 = vmatpush.xpose.msra.mxu0 0.0
        %2417 = vmatpush.xpose.msra.mxu0 0.0
        %2418 = vmatpush.xpose.msra.mxu0 0.0
        %2419 = vmatpush.xpose.msra.mxu0 0.0
        %2420 = vmatpush.xpose.msra.mxu0 0.0
        %2421 = vmatpush.xpose.msra.mxu0 0.0
        %2422 = vmatpush.xpose.msra.mxu0 0.0
        %2423 = vmatpush.xpose.msra.mxu0 0.0
        %2424 = vmatpush.xpose.msra.mxu0 0.0
        %2425 = vmatpush.xpose.msra.mxu0 0.0
        %2426 = vmatpush.xpose.msra.mxu0 0.0
        %2427 = vmatpush.xpose.msra.mxu0 0.0
        %2428 = vmatpush.xpose.msra.mxu0 0.0
        %v2429 = vand.u32 %v1186, 4294901760
        %2430 = vmatpush.xpose.msra.mxu0 %v2429
        %v2431 = vand.u32 %v1055, 4294901760
        %v2432 = vsub.f32 %v1055, %v2431
        %v2433 = vand.u32 %v2432, 4294901760
        %v2434 = vsub.f32 %v2432, %v2433
        %v2435 = vand.u32 %v2434, 4294901760
        %2436 = vmatmul.f32.gmra.mxu0 %v2435
        %v2437 = vpop.f32.mrf.mxu0
        %v2438 = vadd.f32 %v2352, %v2437
        %v2439 = vand.u32 %v1059, 4294901760
        %v2440 = vsub.f32 %v1059, %v2439
        %v2441 = vand.u32 %v2440, 4294901760
        %v2442 = vsub.f32 %v2440, %v2441
        %v2443 = vand.u32 %v2442, 4294901760
        %2444 = vmatmul.f32.gmra.mxu0 %v2443
        %v2445 = vpop.f32.mrf.mxu0
        %v2446 = vadd.f32 %v2356, %v2445
        %v2447 = vand.u32 %v1063, 4294901760
        %v2448 = vsub.f32 %v1063, %v2447
        %v2449 = vand.u32 %v2448, 4294901760
        %v2450 = vsub.f32 %v2448, %v2449
        %v2451 = vand.u32 %v2450, 4294901760
        %2452 = vmatmul.f32.gmra.mxu0 %v2451
        %v2453 = vpop.f32.mrf.mxu0
        %v2454 = vadd.f32 %v2360, %v2453
        %v2455 = vand.u32 %v1067, 4294901760
        %v2456 = vsub.f32 %v1067, %v2455
        %v2457 = vand.u32 %v2456, 4294901760
        %v2458 = vsub.f32 %v2456, %v2457
        %v2459 = vand.u32 %v2458, 4294901760
        %2460 = vmatmul.f32.gmra.mxu0 %v2459
        %v2461 = vpop.f32.mrf.mxu0
        %v2462 = vadd.f32 %v2364, %v2461
        %v2463 = vand.u32 %v1071, 4294901760
        %v2464 = vsub.f32 %v1071, %v2463
        %v2465 = vand.u32 %v2464, 4294901760
        %v2466 = vsub.f32 %v2464, %v2465
        %v2467 = vand.u32 %v2466, 4294901760
        %2468 = vmatmul.f32.gmra.mxu0 %v2467
        %v2469 = vpop.f32.mrf.mxu0
        %v2470 = vadd.f32 %v2368, %v2469
        %v2471 = vand.u32 %v1075, 4294901760
        %v2472 = vsub.f32 %v1075, %v2471
        %v2473 = vand.u32 %v2472, 4294901760
        %v2474 = vsub.f32 %v2472, %v2473
        %v2475 = vand.u32 %v2474, 4294901760
        %2476 = vmatmul.f32.gmra.mxu0 %v2475
        %v2477 = vpop.f32.mrf.mxu0
        %v2478 = vadd.f32 %v2372, %v2477
        %v2479 = vand.u32 %v1079, 4294901760
        %v2480 = vsub.f32 %v1079, %v2479
        %v2481 = vand.u32 %v2480, 4294901760
        %v2482 = vsub.f32 %v2480, %v2481
        %v2483 = vand.u32 %v2482, 4294901760
        %2484 = vmatmul.f32.gmra.mxu0 %v2483
        %v2485 = vpop.f32.mrf.mxu0
        %v2486 = vadd.f32 %v2376, %v2485
        %v2487 = vand.u32 %v1083, 4294901760
        %v2488 = vsub.f32 %v1083, %v2487
        %v2489 = vand.u32 %v2488, 4294901760
        %v2490 = vsub.f32 %v2488, %v2489
        %v2491 = vand.u32 %v2490, 4294901760
        %2492 = vmatmul.f32.gmra.mxu0 %v2491
        %v2493 = vpop.f32.mrf.mxu0
        %v2494 = vadd.f32 %v2380, %v2493
        %v2495 = vand.u32 %v1087, 4294901760
        %v2496 = vsub.f32 %v1087, %v2495
        %v2497 = vand.u32 %v2496, 4294901760
        %v2498 = vsub.f32 %v2496, %v2497
        %v2499 = vand.u32 %v2498, 4294901760
        %2500 = vmatmul.f32.gmra.mxu0 %v2499
        %v2501 = vpop.f32.mrf.mxu0
        %v2502 = vadd.f32 %v2384, %v2501
        %v2503 = vand.u32 %v1091, 4294901760
        %v2504 = vsub.f32 %v1091, %v2503
        %v2505 = vand.u32 %v2504, 4294901760
        %v2506 = vsub.f32 %v2504, %v2505
        %v2507 = vand.u32 %v2506, 4294901760
        %2508 = vmatmul.f32.gmra.mxu0 %v2507
        %v2509 = vpop.f32.mrf.mxu0
        %v2510 = vadd.f32 %v2388, %v2509
        %v2511 = vand.u32 %v1095, 4294901760
        %v2512 = vsub.f32 %v1095, %v2511
        %v2513 = vand.u32 %v2512, 4294901760
        %v2514 = vsub.f32 %v2512, %v2513
        %v2515 = vand.u32 %v2514, 4294901760
        %2516 = vmatmul.f32.gmra.mxu0 %v2515
        %v2517 = vpop.f32.mrf.mxu0
        %v2518 = vadd.f32 %v2392, %v2517
        %v2519 = vand.u32 %v1099, 4294901760
        %v2520 = vsub.f32 %v1099, %v2519
        %v2521 = vand.u32 %v2520, 4294901760
        %v2522 = vsub.f32 %v2520, %v2521
        %v2523 = vand.u32 %v2522, 4294901760
        %2524 = vmatmul.f32.gmra.mxu0 %v2523
        %v2525 = vpop.f32.mrf.mxu0
        %v2526 = vadd.f32 %v2396, %v2525
        %v2527 = vand.u32 %v1103, 4294901760
        %v2528 = vsub.f32 %v1103, %v2527
        %v2529 = vand.u32 %v2528, 4294901760
        %v2530 = vsub.f32 %v2528, %v2529
        %v2531 = vand.u32 %v2530, 4294901760
        %2532 = vmatmul.f32.gmra.mxu0 %v2531
        %v2533 = vpop.f32.mrf.mxu0
        %v2534 = vadd.f32 %v2400, %v2533
        %v2535 = vand.u32 %v1107, 4294901760
        %v2536 = vsub.f32 %v1107, %v2535
        %v2537 = vand.u32 %v2536, 4294901760
        %v2538 = vsub.f32 %v2536, %v2537
        %v2539 = vand.u32 %v2538, 4294901760
        %2540 = vmatmul.f32.gmra.mxu0 %v2539
        %v2541 = vpop.f32.mrf.mxu0
        %v2542 = vadd.f32 %v2404, %v2541
        %v2543 = vand.u32 %v1111, 4294901760
        %v2544 = vsub.f32 %v1111, %v2543
        %v2545 = vand.u32 %v2544, 4294901760
        %v2546 = vsub.f32 %v2544, %v2545
        %v2547 = vand.u32 %v2546, 4294901760
        %2548 = vmatmul.f32.gmra.mxu0 %v2547
        %v2549 = vpop.f32.mrf.mxu0
        %v2550 = vadd.f32 %v2408, %v2549
        %v2551 = vand.u32 %v1115, 4294901760
        %v2552 = vsub.f32 %v1115, %v2551
        %v2553 = vand.u32 %v2552, 4294901760
        %v2554 = vsub.f32 %v2552, %v2553
        %v2555 = vand.u32 %v2554, 4294901760
        %2556 = vmatmul.f32.gmra.mxu0 %v2555
        %v2557 = vpop.f32.mrf.mxu0
        %v2558 = vadd.f32 %v2412, %v2557
        %2559 = vdwg.mxu0
        %2560 = vmatpush.xpose.msra.mxu0 0.0
        %2561 = vmatpush.xpose.msra.mxu0 0.0
        %2562 = vmatpush.xpose.msra.mxu0 0.0
        %2563 = vmatpush.xpose.msra.mxu0 0.0
        %2564 = vmatpush.xpose.msra.mxu0 0.0
        %2565 = vmatpush.xpose.msra.mxu0 0.0
        %2566 = vmatpush.xpose.msra.mxu0 0.0
        %2567 = vmatpush.xpose.msra.mxu0 0.0
        %2568 = vmatpush.xpose.msra.mxu0 0.0
        %2569 = vmatpush.xpose.msra.mxu0 0.0
        %2570 = vmatpush.xpose.msra.mxu0 0.0
        %2571 = vmatpush.xpose.msra.mxu0 0.0
        %2572 = vmatpush.xpose.msra.mxu0 0.0
        %2573 = vmatpush.xpose.msra.mxu0 0.0
        %2574 = vmatpush.xpose.msra.mxu0 0.0
        %v2575 = vand.u32 %v1186, 4294901760
        %v2576 = vsub.f32 %v1186, %v2575
        %v2577 = vand.u32 %v2576, 4294901760
        %v2578 = vsub.f32 %v2576, %v2577
        %v2579 = vand.u32 %v2578, 4294901760
        %2580 = vmatpush.xpose.msra.mxu0 %v2579
        %v2581 = vand.u32 %v1055, 4294901760
        %2582 = vmatmul.f32.gmra.mxu0 %v2581
        %v2583 = vpop.f32.mrf.mxu0
        %v2584 = vadd.f32 %v2438, %v2583
        %v2585 = vand.u32 %v1059, 4294901760
        %2586 = vmatmul.f32.gmra.mxu0 %v2585
        %v2587 = vpop.f32.mrf.mxu0
        %v2588 = vadd.f32 %v2446, %v2587
        %v2589 = vand.u32 %v1063, 4294901760
        %2590 = vmatmul.f32.gmra.mxu0 %v2589
        %v2591 = vpop.f32.mrf.mxu0
        %v2592 = vadd.f32 %v2454, %v2591
        %v2593 = vand.u32 %v1067, 4294901760
        %2594 = vmatmul.f32.gmra.mxu0 %v2593
        %v2595 = vpop.f32.mrf.mxu0
        %v2596 = vadd.f32 %v2462, %v2595
        %v2597 = vand.u32 %v1071, 4294901760
        %2598 = vmatmul.f32.gmra.mxu0 %v2597
        %v2599 = vpop.f32.mrf.mxu0
        %v2600 = vadd.f32 %v2470, %v2599
        %v2601 = vand.u32 %v1075, 4294901760
        %2602 = vmatmul.f32.gmra.mxu0 %v2601
        %v2603 = vpop.f32.mrf.mxu0
        %v2604 = vadd.f32 %v2478, %v2603
        %v2605 = vand.u32 %v1079, 4294901760
        %2606 = vmatmul.f32.gmra.mxu0 %v2605
        %v2607 = vpop.f32.mrf.mxu0
        %v2608 = vadd.f32 %v2486, %v2607
        %v2609 = vand.u32 %v1083, 4294901760
        %2610 = vmatmul.f32.gmra.mxu0 %v2609
        %v2611 = vpop.f32.mrf.mxu0
        %v2612 = vadd.f32 %v2494, %v2611
        %v2613 = vand.u32 %v1087, 4294901760
        %2614 = vmatmul.f32.gmra.mxu0 %v2613
        %v2615 = vpop.f32.mrf.mxu0
        %v2616 = vadd.f32 %v2502, %v2615
        %v2617 = vand.u32 %v1091, 4294901760
        %2618 = vmatmul.f32.gmra.mxu0 %v2617
        %v2619 = vpop.f32.mrf.mxu0
        %v2620 = vadd.f32 %v2510, %v2619
        %v2621 = vand.u32 %v1095, 4294901760
        %2622 = vmatmul.f32.gmra.mxu0 %v2621
        %v2623 = vpop.f32.mrf.mxu0
        %v2624 = vadd.f32 %v2518, %v2623
        %v2625 = vand.u32 %v1099, 4294901760
        %2626 = vmatmul.f32.gmra.mxu0 %v2625
        %v2627 = vpop.f32.mrf.mxu0
        %v2628 = vadd.f32 %v2526, %v2627
        %v2629 = vand.u32 %v1103, 4294901760
        %2630 = vmatmul.f32.gmra.mxu0 %v2629
        %v2631 = vpop.f32.mrf.mxu0
        %v2632 = vadd.f32 %v2534, %v2631
        %v2633 = vand.u32 %v1107, 4294901760
        %2634 = vmatmul.f32.gmra.mxu0 %v2633
        %v2635 = vpop.f32.mrf.mxu0
        %v2636 = vadd.f32 %v2542, %v2635
        %v2637 = vand.u32 %v1111, 4294901760
        %2638 = vmatmul.f32.gmra.mxu0 %v2637
        %v2639 = vpop.f32.mrf.mxu0
        %v2640 = vadd.f32 %v2550, %v2639
        %v2641 = vand.u32 %v1115, 4294901760
        %2642 = vmatmul.f32.gmra.mxu0 %v2641
        %v2643 = vpop.f32.mrf.mxu0
        %v2644 = vadd.f32 %v2558, %v2643
        %2645 = vdwg.mxu0
        %2646 = vmatpush.xpose.msra.mxu0 0.0
        %2647 = vmatpush.xpose.msra.mxu0 0.0
        %2648 = vmatpush.xpose.msra.mxu0 0.0
        %2649 = vmatpush.xpose.msra.mxu0 0.0
        %2650 = vmatpush.xpose.msra.mxu0 0.0
        %2651 = vmatpush.xpose.msra.mxu0 0.0
        %2652 = vmatpush.xpose.msra.mxu0 0.0
        %2653 = vmatpush.xpose.msra.mxu0 0.0
        %2654 = vmatpush.xpose.msra.mxu0 0.0
        %2655 = vmatpush.xpose.msra.mxu0 0.0
        %2656 = vmatpush.xpose.msra.mxu0 0.0
        %2657 = vmatpush.xpose.msra.mxu0 0.0
        %2658 = vmatpush.xpose.msra.mxu0 0.0
        %2659 = vmatpush.xpose.msra.mxu0 0.0
        %2660 = vmatpush.xpose.msra.mxu0 0.0
        %v2661 = vand.u32 %v1186, 4294901760
        %v2662 = vsub.f32 %v1186, %v2661
        %2663 = vmatpush.xpose.msra.mxu0 %v2662
        %v2664 = vand.u32 %v1055, 4294901760
        %v2665 = vsub.f32 %v1055, %v2664
        %2666 = vmatmul.f32.gmra.mxu0 %v2665
        %v2667 = vpop.f32.mrf.mxu0
        %v2668 = vadd.f32 %v2584, %v2667
        %v2669 = vand.u32 %v1059, 4294901760
        %v2670 = vsub.f32 %v1059, %v2669
        %2671 = vmatmul.f32.gmra.mxu0 %v2670
        %v2672 = vpop.f32.mrf.mxu0
        %v2673 = vadd.f32 %v2588, %v2672
        %v2674 = vand.u32 %v1063, 4294901760
        %v2675 = vsub.f32 %v1063, %v2674
        %2676 = vmatmul.f32.gmra.mxu0 %v2675
        %v2677 = vpop.f32.mrf.mxu0
        %v2678 = vadd.f32 %v2592, %v2677
        %v2679 = vand.u32 %v1067, 4294901760
        %v2680 = vsub.f32 %v1067, %v2679
        %2681 = vmatmul.f32.gmra.mxu0 %v2680
        %v2682 = vpop.f32.mrf.mxu0
        %v2683 = vadd.f32 %v2596, %v2682
        %v2684 = vand.u32 %v1071, 4294901760
        %v2685 = vsub.f32 %v1071, %v2684
        %2686 = vmatmul.f32.gmra.mxu0 %v2685
        %v2687 = vpop.f32.mrf.mxu0
        %v2688 = vadd.f32 %v2600, %v2687
        %v2689 = vand.u32 %v1075, 4294901760
        %v2690 = vsub.f32 %v1075, %v2689
        %2691 = vmatmul.f32.gmra.mxu0 %v2690
        %v2692 = vpop.f32.mrf.mxu0
        %v2693 = vadd.f32 %v2604, %v2692
        %v2694 = vand.u32 %v1079, 4294901760
        %v2695 = vsub.f32 %v1079, %v2694
        %2696 = vmatmul.f32.gmra.mxu0 %v2695
        %v2697 = vpop.f32.mrf.mxu0
        %v2698 = vadd.f32 %v2608, %v2697
        %v2699 = vand.u32 %v1083, 4294901760
        %v2700 = vsub.f32 %v1083, %v2699
        %2701 = vmatmul.f32.gmra.mxu0 %v2700
        %v2702 = vpop.f32.mrf.mxu0
        %v2703 = vadd.f32 %v2612, %v2702
        %v2704 = vand.u32 %v1087, 4294901760
        %v2705 = vsub.f32 %v1087, %v2704
        %2706 = vmatmul.f32.gmra.mxu0 %v2705
        %v2707 = vpop.f32.mrf.mxu0
        %v2708 = vadd.f32 %v2616, %v2707
        %v2709 = vand.u32 %v1091, 4294901760
        %v2710 = vsub.f32 %v1091, %v2709
        %2711 = vmatmul.f32.gmra.mxu0 %v2710
        %v2712 = vpop.f32.mrf.mxu0
        %v2713 = vadd.f32 %v2620, %v2712
        %v2714 = vand.u32 %v1095, 4294901760
        %v2715 = vsub.f32 %v1095, %v2714
        %2716 = vmatmul.f32.gmra.mxu0 %v2715
        %v2717 = vpop.f32.mrf.mxu0
        %v2718 = vadd.f32 %v2624, %v2717
        %v2719 = vand.u32 %v1099, 4294901760
        %v2720 = vsub.f32 %v1099, %v2719
        %2721 = vmatmul.f32.gmra.mxu0 %v2720
        %v2722 = vpop.f32.mrf.mxu0
        %v2723 = vadd.f32 %v2628, %v2722
        %v2724 = vand.u32 %v1103, 4294901760
        %v2725 = vsub.f32 %v1103, %v2724
        %2726 = vmatmul.f32.gmra.mxu0 %v2725
        %v2727 = vpop.f32.mrf.mxu0
        %v2728 = vadd.f32 %v2632, %v2727
        %v2729 = vand.u32 %v1107, 4294901760
        %v2730 = vsub.f32 %v1107, %v2729
        %2731 = vmatmul.f32.gmra.mxu0 %v2730
        %v2732 = vpop.f32.mrf.mxu0
        %v2733 = vadd.f32 %v2636, %v2732
        %v2734 = vand.u32 %v1111, 4294901760
        %v2735 = vsub.f32 %v1111, %v2734
        %2736 = vmatmul.f32.gmra.mxu0 %v2735
        %v2737 = vpop.f32.mrf.mxu0
        %v2738 = vadd.f32 %v2640, %v2737
        %v2739 = vand.u32 %v1115, 4294901760
        %v2740 = vsub.f32 %v1115, %v2739
        %2741 = vmatmul.f32.gmra.mxu0 %v2740
        %v2742 = vpop.f32.mrf.mxu0
        %v2743 = vadd.f32 %v2644, %v2742
        %2744 = vdwg.mxu0
        %2745 = vmatpush.xpose.msra.mxu0 0.0
        %2746 = vmatpush.xpose.msra.mxu0 0.0
        %2747 = vmatpush.xpose.msra.mxu0 0.0
        %2748 = vmatpush.xpose.msra.mxu0 0.0
        %2749 = vmatpush.xpose.msra.mxu0 0.0
        %2750 = vmatpush.xpose.msra.mxu0 0.0
        %2751 = vmatpush.xpose.msra.mxu0 0.0
        %2752 = vmatpush.xpose.msra.mxu0 0.0
        %2753 = vmatpush.xpose.msra.mxu0 0.0
        %2754 = vmatpush.xpose.msra.mxu0 0.0
        %2755 = vmatpush.xpose.msra.mxu0 0.0
        %2756 = vmatpush.xpose.msra.mxu0 0.0
        %2757 = vmatpush.xpose.msra.mxu0 0.0
        %2758 = vmatpush.xpose.msra.mxu0 0.0
        %2759 = vmatpush.xpose.msra.mxu0 0.0
        %v2760 = vand.u32 %v1186, 4294901760
        %2761 = vmatpush.xpose.msra.mxu0 %v2760
        %v2762 = vand.u32 %v1055, 4294901760
        %v2763 = vsub.f32 %v1055, %v2762
        %v2764 = vand.u32 %v2763, 4294901760
        %2765 = vmatmul.f32.gmra.mxu0 %v2764
        %v2766 = vpop.f32.mrf.mxu0
        %v2767 = vadd.f32 %v2668, %v2766
        %v2768 = vand.u32 %v1059, 4294901760
        %v2769 = vsub.f32 %v1059, %v2768
        %v2770 = vand.u32 %v2769, 4294901760
        %2771 = vmatmul.f32.gmra.mxu0 %v2770
        %v2772 = vpop.f32.mrf.mxu0
        %v2773 = vadd.f32 %v2673, %v2772
        %v2774 = vand.u32 %v1063, 4294901760
        %v2775 = vsub.f32 %v1063, %v2774
        %v2776 = vand.u32 %v2775, 4294901760
        %2777 = vmatmul.f32.gmra.mxu0 %v2776
        %v2778 = vpop.f32.mrf.mxu0
        %v2779 = vadd.f32 %v2678, %v2778
        %v2780 = vand.u32 %v1067, 4294901760
        %v2781 = vsub.f32 %v1067, %v2780
        %v2782 = vand.u32 %v2781, 4294901760
        %2783 = vmatmul.f32.gmra.mxu0 %v2782
        %v2784 = vpop.f32.mrf.mxu0
        %v2785 = vadd.f32 %v2683, %v2784
        %v2786 = vand.u32 %v1071, 4294901760
        %v2787 = vsub.f32 %v1071, %v2786
        %v2788 = vand.u32 %v2787, 4294901760
        %2789 = vmatmul.f32.gmra.mxu0 %v2788
        %v2790 = vpop.f32.mrf.mxu0
        %v2791 = vadd.f32 %v2688, %v2790
        %v2792 = vand.u32 %v1075, 4294901760
        %v2793 = vsub.f32 %v1075, %v2792
        %v2794 = vand.u32 %v2793, 4294901760
        %2795 = vmatmul.f32.gmra.mxu0 %v2794
        %v2796 = vpop.f32.mrf.mxu0
        %v2797 = vadd.f32 %v2693, %v2796
        %v2798 = vand.u32 %v1079, 4294901760
        %v2799 = vsub.f32 %v1079, %v2798
        %v2800 = vand.u32 %v2799, 4294901760
        %2801 = vmatmul.f32.gmra.mxu0 %v2800
        %v2802 = vpop.f32.mrf.mxu0
        %v2803 = vadd.f32 %v2698, %v2802
        %v2804 = vand.u32 %v1083, 4294901760
        %v2805 = vsub.f32 %v1083, %v2804
        %v2806 = vand.u32 %v2805, 4294901760
        %2807 = vmatmul.f32.gmra.mxu0 %v2806
        %v2808 = vpop.f32.mrf.mxu0
        %v2809 = vadd.f32 %v2703, %v2808
        %v2810 = vand.u32 %v1087, 4294901760
        %v2811 = vsub.f32 %v1087, %v2810
        %v2812 = vand.u32 %v2811, 4294901760
        %2813 = vmatmul.f32.gmra.mxu0 %v2812
        %v2814 = vpop.f32.mrf.mxu0
        %v2815 = vadd.f32 %v2708, %v2814
        %v2816 = vand.u32 %v1091, 4294901760
        %v2817 = vsub.f32 %v1091, %v2816
        %v2818 = vand.u32 %v2817, 4294901760
        %2819 = vmatmul.f32.gmra.mxu0 %v2818
        %v2820 = vpop.f32.mrf.mxu0
        %v2821 = vadd.f32 %v2713, %v2820
        %v2822 = vand.u32 %v1095, 4294901760
        %v2823 = vsub.f32 %v1095, %v2822
        %v2824 = vand.u32 %v2823, 4294901760
        %2825 = vmatmul.f32.gmra.mxu0 %v2824
        %v2826 = vpop.f32.mrf.mxu0
        %v2827 = vadd.f32 %v2718, %v2826
        %v2828 = vand.u32 %v1099, 4294901760
        %v2829 = vsub.f32 %v1099, %v2828
        %v2830 = vand.u32 %v2829, 4294901760
        %2831 = vmatmul.f32.gmra.mxu0 %v2830
        %v2832 = vpop.f32.mrf.mxu0
        %v2833 = vadd.f32 %v2723, %v2832
        %v2834 = vand.u32 %v1103, 4294901760
        %v2835 = vsub.f32 %v1103, %v2834
        %v2836 = vand.u32 %v2835, 4294901760
        %2837 = vmatmul.f32.gmra.mxu0 %v2836
        %v2838 = vpop.f32.mrf.mxu0
        %v2839 = vadd.f32 %v2728, %v2838
        %v2840 = vand.u32 %v1107, 4294901760
        %v2841 = vsub.f32 %v1107, %v2840
        %v2842 = vand.u32 %v2841, 4294901760
        %2843 = vmatmul.f32.gmra.mxu0 %v2842
        %v2844 = vpop.f32.mrf.mxu0
        %v2845 = vadd.f32 %v2733, %v2844
        %v2846 = vand.u32 %v1111, 4294901760
        %v2847 = vsub.f32 %v1111, %v2846
        %v2848 = vand.u32 %v2847, 4294901760
        %2849 = vmatmul.f32.gmra.mxu0 %v2848
        %v2850 = vpop.f32.mrf.mxu0
        %v2851 = vadd.f32 %v2738, %v2850
        %v2852 = vand.u32 %v1115, 4294901760
        %v2853 = vsub.f32 %v1115, %v2852
        %v2854 = vand.u32 %v2853, 4294901760
        %2855 = vmatmul.f32.gmra.mxu0 %v2854
        %v2856 = vpop.f32.mrf.mxu0
        %v2857 = vadd.f32 %v2743, %v2856
        %2858 = vdwg.mxu0
        %2859 = vmatpush.xpose.msra.mxu0 0.0
        %2860 = vmatpush.xpose.msra.mxu0 0.0
        %2861 = vmatpush.xpose.msra.mxu0 0.0
        %2862 = vmatpush.xpose.msra.mxu0 0.0
        %2863 = vmatpush.xpose.msra.mxu0 0.0
        %2864 = vmatpush.xpose.msra.mxu0 0.0
        %2865 = vmatpush.xpose.msra.mxu0 0.0
        %2866 = vmatpush.xpose.msra.mxu0 0.0
        %2867 = vmatpush.xpose.msra.mxu0 0.0
        %2868 = vmatpush.xpose.msra.mxu0 0.0
        %2869 = vmatpush.xpose.msra.mxu0 0.0
        %2870 = vmatpush.xpose.msra.mxu0 0.0
        %2871 = vmatpush.xpose.msra.mxu0 0.0
        %2872 = vmatpush.xpose.msra.mxu0 0.0
        %2873 = vmatpush.xpose.msra.mxu0 0.0
        %v2874 = vand.u32 %v1186, 4294901760
        %v2875 = vsub.f32 %v1186, %v2874
        %v2876 = vand.u32 %v2875, 4294901760
        %2877 = vmatpush.xpose.msra.mxu0 %v2876
        %v2878 = vand.u32 %v1055, 4294901760
        %2879 = vmatmul.f32.gmra.mxu0 %v2878
        %v2880 = vpop.f32.mrf.mxu0
        %v2881 = vadd.f32 %v2767, %v2880
        %v2882 = vand.u32 %v1059, 4294901760
        %2883 = vmatmul.f32.gmra.mxu0 %v2882
        %v2884 = vpop.f32.mrf.mxu0
        %v2885 = vadd.f32 %v2773, %v2884
        %v2886 = vand.u32 %v1063, 4294901760
        %2887 = vmatmul.f32.gmra.mxu0 %v2886
        %v2888 = vpop.f32.mrf.mxu0
        %v2889 = vadd.f32 %v2779, %v2888
        %v2890 = vand.u32 %v1067, 4294901760
        %2891 = vmatmul.f32.gmra.mxu0 %v2890
        %v2892 = vpop.f32.mrf.mxu0
        %v2893 = vadd.f32 %v2785, %v2892
        %v2894 = vand.u32 %v1071, 4294901760
        %2895 = vmatmul.f32.gmra.mxu0 %v2894
        %v2896 = vpop.f32.mrf.mxu0
        %v2897 = vadd.f32 %v2791, %v2896
        %v2898 = vand.u32 %v1075, 4294901760
        %2899 = vmatmul.f32.gmra.mxu0 %v2898
        %v2900 = vpop.f32.mrf.mxu0
        %v2901 = vadd.f32 %v2797, %v2900
        %v2902 = vand.u32 %v1079, 4294901760
        %2903 = vmatmul.f32.gmra.mxu0 %v2902
        %v2904 = vpop.f32.mrf.mxu0
        %v2905 = vadd.f32 %v2803, %v2904
        %v2906 = vand.u32 %v1083, 4294901760
        %2907 = vmatmul.f32.gmra.mxu0 %v2906
        %v2908 = vpop.f32.mrf.mxu0
        %v2909 = vadd.f32 %v2809, %v2908
        %v2910 = vand.u32 %v1087, 4294901760
        %2911 = vmatmul.f32.gmra.mxu0 %v2910
        %v2912 = vpop.f32.mrf.mxu0
        %v2913 = vadd.f32 %v2815, %v2912
        %v2914 = vand.u32 %v1091, 4294901760
        %2915 = vmatmul.f32.gmra.mxu0 %v2914
        %v2916 = vpop.f32.mrf.mxu0
        %v2917 = vadd.f32 %v2821, %v2916
        %v2918 = vand.u32 %v1095, 4294901760
        %2919 = vmatmul.f32.gmra.mxu0 %v2918
        %v2920 = vpop.f32.mrf.mxu0
        %v2921 = vadd.f32 %v2827, %v2920
        %v2922 = vand.u32 %v1099, 4294901760
        %2923 = vmatmul.f32.gmra.mxu0 %v2922
        %v2924 = vpop.f32.mrf.mxu0
        %v2925 = vadd.f32 %v2833, %v2924
        %v2926 = vand.u32 %v1103, 4294901760
        %2927 = vmatmul.f32.gmra.mxu0 %v2926
        %v2928 = vpop.f32.mrf.mxu0
        %v2929 = vadd.f32 %v2839, %v2928
        %v2930 = vand.u32 %v1107, 4294901760
        %2931 = vmatmul.f32.gmra.mxu0 %v2930
        %v2932 = vpop.f32.mrf.mxu0
        %v2933 = vadd.f32 %v2845, %v2932
        %v2934 = vand.u32 %v1111, 4294901760
        %2935 = vmatmul.f32.gmra.mxu0 %v2934
        %v2936 = vpop.f32.mrf.mxu0
        %v2937 = vadd.f32 %v2851, %v2936
        %v2938 = vand.u32 %v1115, 4294901760
        %2939 = vmatmul.f32.gmra.mxu0 %v2938
        %v2940 = vpop.f32.mrf.mxu0
        %v2941 = vadd.f32 %v2857, %v2940
        %2942 = vdwg.mxu0
        %2943 = vmatpush.xpose.msra.mxu0 0.0
        %2944 = vmatpush.xpose.msra.mxu0 0.0
        %2945 = vmatpush.xpose.msra.mxu0 0.0
        %2946 = vmatpush.xpose.msra.mxu0 0.0
        %2947 = vmatpush.xpose.msra.mxu0 0.0
        %2948 = vmatpush.xpose.msra.mxu0 0.0
        %2949 = vmatpush.xpose.msra.mxu0 0.0
        %2950 = vmatpush.xpose.msra.mxu0 0.0
        %2951 = vmatpush.xpose.msra.mxu0 0.0
        %2952 = vmatpush.xpose.msra.mxu0 0.0
        %2953 = vmatpush.xpose.msra.mxu0 0.0
        %2954 = vmatpush.xpose.msra.mxu0 0.0
        %2955 = vmatpush.xpose.msra.mxu0 0.0
        %2956 = vmatpush.xpose.msra.mxu0 0.0
        %2957 = vmatpush.xpose.msra.mxu0 0.0
        %v2958 = vand.u32 %v1186, 4294901760
        %2959 = vmatpush.xpose.msra.mxu0 %v2958
        %v2960 = vand.u32 %v1055, 4294901760
        %2961 = vmatmul.f32.gmra.mxu0 %v2960
        %v2962 = vpop.f32.mrf.mxu0
        %v2963 = vadd.f32 %v2881, %v2962
        %v2964 = vand.u32 %v1059, 4294901760
        %2965 = vmatmul.f32.gmra.mxu0 %v2964
        %v2966 = vpop.f32.mrf.mxu0
        %v2967 = vadd.f32 %v2885, %v2966
        %v2968 = vand.u32 %v1063, 4294901760
        %2969 = vmatmul.f32.gmra.mxu0 %v2968
        %v2970 = vpop.f32.mrf.mxu0
        %v2971 = vadd.f32 %v2889, %v2970
        %v2972 = vand.u32 %v1067, 4294901760
        %2973 = vmatmul.f32.gmra.mxu0 %v2972
        %v2974 = vpop.f32.mrf.mxu0
        %v2975 = vadd.f32 %v2893, %v2974
        %v2976 = vand.u32 %v1071, 4294901760
        %2977 = vmatmul.f32.gmra.mxu0 %v2976
        %v2978 = vpop.f32.mrf.mxu0
        %v2979 = vadd.f32 %v2897, %v2978
        %v2980 = vand.u32 %v1075, 4294901760
        %2981 = vmatmul.f32.gmra.mxu0 %v2980
        %v2982 = vpop.f32.mrf.mxu0
        %v2983 = vadd.f32 %v2901, %v2982
        %v2984 = vand.u32 %v1079, 4294901760
        %2985 = vmatmul.f32.gmra.mxu0 %v2984
        %v2986 = vpop.f32.mrf.mxu0
        %v2987 = vadd.f32 %v2905, %v2986
        %v2988 = vand.u32 %v1083, 4294901760
        %2989 = vmatmul.f32.gmra.mxu0 %v2988
        %v2990 = vpop.f32.mrf.mxu0
        %v2991 = vadd.f32 %v2909, %v2990
        %v2992 = vand.u32 %v1087, 4294901760
        %2993 = vmatmul.f32.gmra.mxu0 %v2992
        %v2994 = vpop.f32.mrf.mxu0
        %v2995 = vadd.f32 %v2913, %v2994
        %v2996 = vand.u32 %v1091, 4294901760
        %2997 = vmatmul.f32.gmra.mxu0 %v2996
        %v2998 = vpop.f32.mrf.mxu0
        %v2999 = vadd.f32 %v2917, %v2998
        %v3000 = vand.u32 %v1095, 4294901760
        %3001 = vmatmul.f32.gmra.mxu0 %v3000
        %v3002 = vpop.f32.mrf.mxu0
        %v3003 = vadd.f32 %v2921, %v3002
        %v3004 = vand.u32 %v1099, 4294901760
        %3005 = vmatmul.f32.gmra.mxu0 %v3004
        %v3006 = vpop.f32.mrf.mxu0
        %v3007 = vadd.f32 %v2925, %v3006
        %v3008 = vand.u32 %v1103, 4294901760
        %3009 = vmatmul.f32.gmra.mxu0 %v3008
        %v3010 = vpop.f32.mrf.mxu0
        %v3011 = vadd.f32 %v2929, %v3010
        %v3012 = vand.u32 %v1107, 4294901760
        %3013 = vmatmul.f32.gmra.mxu0 %v3012
        %v3014 = vpop.f32.mrf.mxu0
        %v3015 = vadd.f32 %v2933, %v3014
        %v3016 = vand.u32 %v1111, 4294901760
        %3017 = vmatmul.f32.gmra.mxu0 %v3016
        %v3018 = vpop.f32.mrf.mxu0
        %v3019 = vadd.f32 %v2937, %v3018
        %v3020 = vand.u32 %v1115, 4294901760
        %3021 = vmatmul.f32.gmra.mxu0 %v3020
        %v3022 = vpop.f32.mrf.mxu0
        %v3023 = vadd.f32 %v2941, %v3022
        %3024 = vdwg.mxu0
        %3025 = vmatpush.xpose.msra.mxu0 0.0
        %3026 = vmatpush.xpose.msra.mxu0 0.0
        %3027 = vmatpush.xpose.msra.mxu0 0.0
        %3028 = vmatpush.xpose.msra.mxu0 0.0
        %3029 = vmatpush.xpose.msra.mxu0 0.0
        %3030 = vmatpush.xpose.msra.mxu0 0.0
        %3031 = vmatpush.xpose.msra.mxu0 0.0
        %3032 = vmatpush.xpose.msra.mxu0 0.0
        %3033 = vmatpush.xpose.msra.mxu0 0.0
        %3034 = vmatpush.xpose.msra.mxu0 0.0
        %3035 = vmatpush.xpose.msra.mxu0 0.0
        %3036 = vmatpush.xpose.msra.mxu0 0.0
        %3037 = vmatpush.xpose.msra.mxu0 0.0
        %3038 = vmatpush.xpose.msra.mxu0 0.0
        %3039 = vmatpush.xpose.msra.mxu0 0.0
        %v3040 = vand.u32 %v1187, 4294901760
        %3041 = vmatpush.xpose.msra.mxu0 %v3040
        %v3042 = vand.u32 %v1056, 4294901760
        %v3043 = vsub.f32 %v1056, %v3042
        %v3044 = vand.u32 %v3043, 4294901760
        %v3045 = vsub.f32 %v3043, %v3044
        %v3046 = vand.u32 %v3045, 4294901760
        %3047 = vmatmul.f32.gmra.mxu0 %v3046
        %v3048 = vpop.f32.mrf.mxu0
        %v3049 = vadd.f32 %v2963, %v3048
        %v3050 = vand.u32 %v1060, 4294901760
        %v3051 = vsub.f32 %v1060, %v3050
        %v3052 = vand.u32 %v3051, 4294901760
        %v3053 = vsub.f32 %v3051, %v3052
        %v3054 = vand.u32 %v3053, 4294901760
        %3055 = vmatmul.f32.gmra.mxu0 %v3054
        %v3056 = vpop.f32.mrf.mxu0
        %v3057 = vadd.f32 %v2967, %v3056
        %v3058 = vand.u32 %v1064, 4294901760
        %v3059 = vsub.f32 %v1064, %v3058
        %v3060 = vand.u32 %v3059, 4294901760
        %v3061 = vsub.f32 %v3059, %v3060
        %v3062 = vand.u32 %v3061, 4294901760
        %3063 = vmatmul.f32.gmra.mxu0 %v3062
        %v3064 = vpop.f32.mrf.mxu0
        %v3065 = vadd.f32 %v2971, %v3064
        %v3066 = vand.u32 %v1068, 4294901760
        %v3067 = vsub.f32 %v1068, %v3066
        %v3068 = vand.u32 %v3067, 4294901760
        %v3069 = vsub.f32 %v3067, %v3068
        %v3070 = vand.u32 %v3069, 4294901760
        %3071 = vmatmul.f32.gmra.mxu0 %v3070
        %v3072 = vpop.f32.mrf.mxu0
        %v3073 = vadd.f32 %v2975, %v3072
        %v3074 = vand.u32 %v1072, 4294901760
        %v3075 = vsub.f32 %v1072, %v3074
        %v3076 = vand.u32 %v3075, 4294901760
        %v3077 = vsub.f32 %v3075, %v3076
        %v3078 = vand.u32 %v3077, 4294901760
        %3079 = vmatmul.f32.gmra.mxu0 %v3078
        %v3080 = vpop.f32.mrf.mxu0
        %v3081 = vadd.f32 %v2979, %v3080
        %v3082 = vand.u32 %v1076, 4294901760
        %v3083 = vsub.f32 %v1076, %v3082
        %v3084 = vand.u32 %v3083, 4294901760
        %v3085 = vsub.f32 %v3083, %v3084
        %v3086 = vand.u32 %v3085, 4294901760
        %3087 = vmatmul.f32.gmra.mxu0 %v3086
        %v3088 = vpop.f32.mrf.mxu0
        %v3089 = vadd.f32 %v2983, %v3088
        %v3090 = vand.u32 %v1080, 4294901760
        %v3091 = vsub.f32 %v1080, %v3090
        %v3092 = vand.u32 %v3091, 4294901760
        %v3093 = vsub.f32 %v3091, %v3092
        %v3094 = vand.u32 %v3093, 4294901760
        %3095 = vmatmul.f32.gmra.mxu0 %v3094
        %v3096 = vpop.f32.mrf.mxu0
        %v3097 = vadd.f32 %v2987, %v3096
        %v3098 = vand.u32 %v1084, 4294901760
        %v3099 = vsub.f32 %v1084, %v3098
        %v3100 = vand.u32 %v3099, 4294901760
        %v3101 = vsub.f32 %v3099, %v3100
        %v3102 = vand.u32 %v3101, 4294901760
        %3103 = vmatmul.f32.gmra.mxu0 %v3102
        %v3104 = vpop.f32.mrf.mxu0
        %v3105 = vadd.f32 %v2991, %v3104
        %v3106 = vand.u32 %v1088, 4294901760
        %v3107 = vsub.f32 %v1088, %v3106
        %v3108 = vand.u32 %v3107, 4294901760
        %v3109 = vsub.f32 %v3107, %v3108
        %v3110 = vand.u32 %v3109, 4294901760
        %3111 = vmatmul.f32.gmra.mxu0 %v3110
        %v3112 = vpop.f32.mrf.mxu0
        %v3113 = vadd.f32 %v2995, %v3112
        %v3114 = vand.u32 %v1092, 4294901760
        %v3115 = vsub.f32 %v1092, %v3114
        %v3116 = vand.u32 %v3115, 4294901760
        %v3117 = vsub.f32 %v3115, %v3116
        %v3118 = vand.u32 %v3117, 4294901760
        %3119 = vmatmul.f32.gmra.mxu0 %v3118
        %v3120 = vpop.f32.mrf.mxu0
        %v3121 = vadd.f32 %v2999, %v3120
        %v3122 = vand.u32 %v1096, 4294901760
        %v3123 = vsub.f32 %v1096, %v3122
        %v3124 = vand.u32 %v3123, 4294901760
        %v3125 = vsub.f32 %v3123, %v3124
        %v3126 = vand.u32 %v3125, 4294901760
        %3127 = vmatmul.f32.gmra.mxu0 %v3126
        %v3128 = vpop.f32.mrf.mxu0
        %v3129 = vadd.f32 %v3003, %v3128
        %v3130 = vand.u32 %v1100, 4294901760
        %v3131 = vsub.f32 %v1100, %v3130
        %v3132 = vand.u32 %v3131, 4294901760
        %v3133 = vsub.f32 %v3131, %v3132
        %v3134 = vand.u32 %v3133, 4294901760
        %3135 = vmatmul.f32.gmra.mxu0 %v3134
        %v3136 = vpop.f32.mrf.mxu0
        %v3137 = vadd.f32 %v3007, %v3136
        %v3138 = vand.u32 %v1104, 4294901760
        %v3139 = vsub.f32 %v1104, %v3138
        %v3140 = vand.u32 %v3139, 4294901760
        %v3141 = vsub.f32 %v3139, %v3140
        %v3142 = vand.u32 %v3141, 4294901760
        %3143 = vmatmul.f32.gmra.mxu0 %v3142
        %v3144 = vpop.f32.mrf.mxu0
        %v3145 = vadd.f32 %v3011, %v3144
        %v3146 = vand.u32 %v1108, 4294901760
        %v3147 = vsub.f32 %v1108, %v3146
        %v3148 = vand.u32 %v3147, 4294901760
        %v3149 = vsub.f32 %v3147, %v3148
        %v3150 = vand.u32 %v3149, 4294901760
        %3151 = vmatmul.f32.gmra.mxu0 %v3150
        %v3152 = vpop.f32.mrf.mxu0
        %v3153 = vadd.f32 %v3015, %v3152
        %v3154 = vand.u32 %v1112, 4294901760
        %v3155 = vsub.f32 %v1112, %v3154
        %v3156 = vand.u32 %v3155, 4294901760
        %v3157 = vsub.f32 %v3155, %v3156
        %v3158 = vand.u32 %v3157, 4294901760
        %3159 = vmatmul.f32.gmra.mxu0 %v3158
        %v3160 = vpop.f32.mrf.mxu0
        %v3161 = vadd.f32 %v3019, %v3160
        %v3162 = vand.u32 %v1116, 4294901760
        %v3163 = vsub.f32 %v1116, %v3162
        %v3164 = vand.u32 %v3163, 4294901760
        %v3165 = vsub.f32 %v3163, %v3164
        %v3166 = vand.u32 %v3165, 4294901760
        %3167 = vmatmul.f32.gmra.mxu0 %v3166
        %v3168 = vpop.f32.mrf.mxu0
        %v3169 = vadd.f32 %v3023, %v3168
        %3170 = vdwg.mxu0
        %3171 = vmatpush.xpose.msra.mxu0 0.0
        %3172 = vmatpush.xpose.msra.mxu0 0.0
        %3173 = vmatpush.xpose.msra.mxu0 0.0
        %3174 = vmatpush.xpose.msra.mxu0 0.0
        %3175 = vmatpush.xpose.msra.mxu0 0.0
        %3176 = vmatpush.xpose.msra.mxu0 0.0
        %3177 = vmatpush.xpose.msra.mxu0 0.0
        %3178 = vmatpush.xpose.msra.mxu0 0.0
        %3179 = vmatpush.xpose.msra.mxu0 0.0
        %3180 = vmatpush.xpose.msra.mxu0 0.0
        %3181 = vmatpush.xpose.msra.mxu0 0.0
        %3182 = vmatpush.xpose.msra.mxu0 0.0
        %3183 = vmatpush.xpose.msra.mxu0 0.0
        %3184 = vmatpush.xpose.msra.mxu0 0.0
        %3185 = vmatpush.xpose.msra.mxu0 0.0
        %v3186 = vand.u32 %v1187, 4294901760
        %v3187 = vsub.f32 %v1187, %v3186
        %v3188 = vand.u32 %v3187, 4294901760
        %v3189 = vsub.f32 %v3187, %v3188
        %v3190 = vand.u32 %v3189, 4294901760
        %3191 = vmatpush.xpose.msra.mxu0 %v3190
        %v3192 = vand.u32 %v1056, 4294901760
        %3193 = vmatmul.f32.gmra.mxu0 %v3192
        %v3194 = vpop.f32.mrf.mxu0
        %v3195 = vadd.f32 %v3049, %v3194
        %v3196 = vand.u32 %v1060, 4294901760
        %3197 = vmatmul.f32.gmra.mxu0 %v3196
        %v3198 = vpop.f32.mrf.mxu0
        %v3199 = vadd.f32 %v3057, %v3198
        %v3200 = vand.u32 %v1064, 4294901760
        %3201 = vmatmul.f32.gmra.mxu0 %v3200
        %v3202 = vpop.f32.mrf.mxu0
        %v3203 = vadd.f32 %v3065, %v3202
        %v3204 = vand.u32 %v1068, 4294901760
        %3205 = vmatmul.f32.gmra.mxu0 %v3204
        %v3206 = vpop.f32.mrf.mxu0
        %v3207 = vadd.f32 %v3073, %v3206
        %v3208 = vand.u32 %v1072, 4294901760
        %3209 = vmatmul.f32.gmra.mxu0 %v3208
        %v3210 = vpop.f32.mrf.mxu0
        %v3211 = vadd.f32 %v3081, %v3210
        %v3212 = vand.u32 %v1076, 4294901760
        %3213 = vmatmul.f32.gmra.mxu0 %v3212
        %v3214 = vpop.f32.mrf.mxu0
        %v3215 = vadd.f32 %v3089, %v3214
        %v3216 = vand.u32 %v1080, 4294901760
        %3217 = vmatmul.f32.gmra.mxu0 %v3216
        %v3218 = vpop.f32.mrf.mxu0
        %v3219 = vadd.f32 %v3097, %v3218
        %v3220 = vand.u32 %v1084, 4294901760
        %3221 = vmatmul.f32.gmra.mxu0 %v3220
        %v3222 = vpop.f32.mrf.mxu0
        %v3223 = vadd.f32 %v3105, %v3222
        %v3224 = vand.u32 %v1088, 4294901760
        %3225 = vmatmul.f32.gmra.mxu0 %v3224
        %v3226 = vpop.f32.mrf.mxu0
        %v3227 = vadd.f32 %v3113, %v3226
        %v3228 = vand.u32 %v1092, 4294901760
        %3229 = vmatmul.f32.gmra.mxu0 %v3228
        %v3230 = vpop.f32.mrf.mxu0
        %v3231 = vadd.f32 %v3121, %v3230
        %v3232 = vand.u32 %v1096, 4294901760
        %3233 = vmatmul.f32.gmra.mxu0 %v3232
        %v3234 = vpop.f32.mrf.mxu0
        %v3235 = vadd.f32 %v3129, %v3234
        %v3236 = vand.u32 %v1100, 4294901760
        %3237 = vmatmul.f32.gmra.mxu0 %v3236
        %v3238 = vpop.f32.mrf.mxu0
        %v3239 = vadd.f32 %v3137, %v3238
        %v3240 = vand.u32 %v1104, 4294901760
        %3241 = vmatmul.f32.gmra.mxu0 %v3240
        %v3242 = vpop.f32.mrf.mxu0
        %v3243 = vadd.f32 %v3145, %v3242
        %v3244 = vand.u32 %v1108, 4294901760
        %3245 = vmatmul.f32.gmra.mxu0 %v3244
        %v3246 = vpop.f32.mrf.mxu0
        %v3247 = vadd.f32 %v3153, %v3246
        %v3248 = vand.u32 %v1112, 4294901760
        %3249 = vmatmul.f32.gmra.mxu0 %v3248
        %v3250 = vpop.f32.mrf.mxu0
        %v3251 = vadd.f32 %v3161, %v3250
        %v3252 = vand.u32 %v1116, 4294901760
        %3253 = vmatmul.f32.gmra.mxu0 %v3252
        %v3254 = vpop.f32.mrf.mxu0
        %v3255 = vadd.f32 %v3169, %v3254
        %3256 = vdwg.mxu0
        %3257 = vmatpush.xpose.msra.mxu0 0.0
        %3258 = vmatpush.xpose.msra.mxu0 0.0
        %3259 = vmatpush.xpose.msra.mxu0 0.0
        %3260 = vmatpush.xpose.msra.mxu0 0.0
        %3261 = vmatpush.xpose.msra.mxu0 0.0
        %3262 = vmatpush.xpose.msra.mxu0 0.0
        %3263 = vmatpush.xpose.msra.mxu0 0.0
        %3264 = vmatpush.xpose.msra.mxu0 0.0
        %3265 = vmatpush.xpose.msra.mxu0 0.0
        %3266 = vmatpush.xpose.msra.mxu0 0.0
        %3267 = vmatpush.xpose.msra.mxu0 0.0
        %3268 = vmatpush.xpose.msra.mxu0 0.0
        %3269 = vmatpush.xpose.msra.mxu0 0.0
        %3270 = vmatpush.xpose.msra.mxu0 0.0
        %3271 = vmatpush.xpose.msra.mxu0 0.0
        %v3272 = vand.u32 %v1187, 4294901760
        %v3273 = vsub.f32 %v1187, %v3272
        %3274 = vmatpush.xpose.msra.mxu0 %v3273
        %v3275 = vand.u32 %v1056, 4294901760
        %v3276 = vsub.f32 %v1056, %v3275
        %3277 = vmatmul.f32.gmra.mxu0 %v3276
        %v3278 = vpop.f32.mrf.mxu0
        %v3279 = vadd.f32 %v3195, %v3278
        %v3280 = vand.u32 %v1060, 4294901760
        %v3281 = vsub.f32 %v1060, %v3280
        %3282 = vmatmul.f32.gmra.mxu0 %v3281
        %v3283 = vpop.f32.mrf.mxu0
        %v3284 = vadd.f32 %v3199, %v3283
        %v3285 = vand.u32 %v1064, 4294901760
        %v3286 = vsub.f32 %v1064, %v3285
        %3287 = vmatmul.f32.gmra.mxu0 %v3286
        %v3288 = vpop.f32.mrf.mxu0
        %v3289 = vadd.f32 %v3203, %v3288
        %v3290 = vand.u32 %v1068, 4294901760
        %v3291 = vsub.f32 %v1068, %v3290
        %3292 = vmatmul.f32.gmra.mxu0 %v3291
        %v3293 = vpop.f32.mrf.mxu0
        %v3294 = vadd.f32 %v3207, %v3293
        %v3295 = vand.u32 %v1072, 4294901760
        %v3296 = vsub.f32 %v1072, %v3295
        %3297 = vmatmul.f32.gmra.mxu0 %v3296
        %v3298 = vpop.f32.mrf.mxu0
        %v3299 = vadd.f32 %v3211, %v3298
        %v3300 = vand.u32 %v1076, 4294901760
        %v3301 = vsub.f32 %v1076, %v3300
        %3302 = vmatmul.f32.gmra.mxu0 %v3301
        %v3303 = vpop.f32.mrf.mxu0
        %v3304 = vadd.f32 %v3215, %v3303
        %v3305 = vand.u32 %v1080, 4294901760
        %v3306 = vsub.f32 %v1080, %v3305
        %3307 = vmatmul.f32.gmra.mxu0 %v3306
        %v3308 = vpop.f32.mrf.mxu0
        %v3309 = vadd.f32 %v3219, %v3308
        %v3310 = vand.u32 %v1084, 4294901760
        %v3311 = vsub.f32 %v1084, %v3310
        %3312 = vmatmul.f32.gmra.mxu0 %v3311
        %v3313 = vpop.f32.mrf.mxu0
        %v3314 = vadd.f32 %v3223, %v3313
        %v3315 = vand.u32 %v1088, 4294901760
        %v3316 = vsub.f32 %v1088, %v3315
        %3317 = vmatmul.f32.gmra.mxu0 %v3316
        %v3318 = vpop.f32.mrf.mxu0
        %v3319 = vadd.f32 %v3227, %v3318
        %v3320 = vand.u32 %v1092, 4294901760
        %v3321 = vsub.f32 %v1092, %v3320
        %3322 = vmatmul.f32.gmra.mxu0 %v3321
        %v3323 = vpop.f32.mrf.mxu0
        %v3324 = vadd.f32 %v3231, %v3323
        %v3325 = vand.u32 %v1096, 4294901760
        %v3326 = vsub.f32 %v1096, %v3325
        %3327 = vmatmul.f32.gmra.mxu0 %v3326
        %v3328 = vpop.f32.mrf.mxu0
        %v3329 = vadd.f32 %v3235, %v3328
        %v3330 = vand.u32 %v1100, 4294901760
        %v3331 = vsub.f32 %v1100, %v3330
        %3332 = vmatmul.f32.gmra.mxu0 %v3331
        %v3333 = vpop.f32.mrf.mxu0
        %v3334 = vadd.f32 %v3239, %v3333
        %v3335 = vand.u32 %v1104, 4294901760
        %v3336 = vsub.f32 %v1104, %v3335
        %3337 = vmatmul.f32.gmra.mxu0 %v3336
        %v3338 = vpop.f32.mrf.mxu0
        %v3339 = vadd.f32 %v3243, %v3338
        %v3340 = vand.u32 %v1108, 4294901760
        %v3341 = vsub.f32 %v1108, %v3340
        %3342 = vmatmul.f32.gmra.mxu0 %v3341
        %v3343 = vpop.f32.mrf.mxu0
        %v3344 = vadd.f32 %v3247, %v3343
        %v3345 = vand.u32 %v1112, 4294901760
        %v3346 = vsub.f32 %v1112, %v3345
        %3347 = vmatmul.f32.gmra.mxu0 %v3346
        %v3348 = vpop.f32.mrf.mxu0
        %v3349 = vadd.f32 %v3251, %v3348
        %v3350 = vand.u32 %v1116, 4294901760
        %v3351 = vsub.f32 %v1116, %v3350
        %3352 = vmatmul.f32.gmra.mxu0 %v3351
        %v3353 = vpop.f32.mrf.mxu0
        %v3354 = vadd.f32 %v3255, %v3353
        %3355 = vdwg.mxu0
        %3356 = vmatpush.xpose.msra.mxu0 0.0
        %3357 = vmatpush.xpose.msra.mxu0 0.0
        %3358 = vmatpush.xpose.msra.mxu0 0.0
        %3359 = vmatpush.xpose.msra.mxu0 0.0
        %3360 = vmatpush.xpose.msra.mxu0 0.0
        %3361 = vmatpush.xpose.msra.mxu0 0.0
        %3362 = vmatpush.xpose.msra.mxu0 0.0
        %3363 = vmatpush.xpose.msra.mxu0 0.0
        %3364 = vmatpush.xpose.msra.mxu0 0.0
        %3365 = vmatpush.xpose.msra.mxu0 0.0
        %3366 = vmatpush.xpose.msra.mxu0 0.0
        %3367 = vmatpush.xpose.msra.mxu0 0.0
        %3368 = vmatpush.xpose.msra.mxu0 0.0
        %3369 = vmatpush.xpose.msra.mxu0 0.0
        %3370 = vmatpush.xpose.msra.mxu0 0.0
        %v3371 = vand.u32 %v1187, 4294901760
        %3372 = vmatpush.xpose.msra.mxu0 %v3371
        %v3373 = vand.u32 %v1056, 4294901760
        %v3374 = vsub.f32 %v1056, %v3373
        %v3375 = vand.u32 %v3374, 4294901760
        %3376 = vmatmul.f32.gmra.mxu0 %v3375
        %v3377 = vpop.f32.mrf.mxu0
        %v3378 = vadd.f32 %v3279, %v3377
        %v3379 = vand.u32 %v1060, 4294901760
        %v3380 = vsub.f32 %v1060, %v3379
        %v3381 = vand.u32 %v3380, 4294901760
        %3382 = vmatmul.f32.gmra.mxu0 %v3381
        %v3383 = vpop.f32.mrf.mxu0
        %v3384 = vadd.f32 %v3284, %v3383
        %v3385 = vand.u32 %v1064, 4294901760
        %v3386 = vsub.f32 %v1064, %v3385
        %v3387 = vand.u32 %v3386, 4294901760
        %3388 = vmatmul.f32.gmra.mxu0 %v3387
        %v3389 = vpop.f32.mrf.mxu0
        %v3390 = vadd.f32 %v3289, %v3389
        %v3391 = vand.u32 %v1068, 4294901760
        %v3392 = vsub.f32 %v1068, %v3391
        %v3393 = vand.u32 %v3392, 4294901760
        %3394 = vmatmul.f32.gmra.mxu0 %v3393
        %v3395 = vpop.f32.mrf.mxu0
        %v3396 = vadd.f32 %v3294, %v3395
        %v3397 = vand.u32 %v1072, 4294901760
        %v3398 = vsub.f32 %v1072, %v3397
        %v3399 = vand.u32 %v3398, 4294901760
        %3400 = vmatmul.f32.gmra.mxu0 %v3399
        %v3401 = vpop.f32.mrf.mxu0
        %v3402 = vadd.f32 %v3299, %v3401
        %v3403 = vand.u32 %v1076, 4294901760
        %v3404 = vsub.f32 %v1076, %v3403
        %v3405 = vand.u32 %v3404, 4294901760
        %3406 = vmatmul.f32.gmra.mxu0 %v3405
        %v3407 = vpop.f32.mrf.mxu0
        %v3408 = vadd.f32 %v3304, %v3407
        %v3409 = vand.u32 %v1080, 4294901760
        %v3410 = vsub.f32 %v1080, %v3409
        %v3411 = vand.u32 %v3410, 4294901760
        %3412 = vmatmul.f32.gmra.mxu0 %v3411
        %v3413 = vpop.f32.mrf.mxu0
        %v3414 = vadd.f32 %v3309, %v3413
        %v3415 = vand.u32 %v1084, 4294901760
        %v3416 = vsub.f32 %v1084, %v3415
        %v3417 = vand.u32 %v3416, 4294901760
        %3418 = vmatmul.f32.gmra.mxu0 %v3417
        %v3419 = vpop.f32.mrf.mxu0
        %v3420 = vadd.f32 %v3314, %v3419
        %v3421 = vand.u32 %v1088, 4294901760
        %v3422 = vsub.f32 %v1088, %v3421
        %v3423 = vand.u32 %v3422, 4294901760
        %3424 = vmatmul.f32.gmra.mxu0 %v3423
        %v3425 = vpop.f32.mrf.mxu0
        %v3426 = vadd.f32 %v3319, %v3425
        %v3427 = vand.u32 %v1092, 4294901760
        %v3428 = vsub.f32 %v1092, %v3427
        %v3429 = vand.u32 %v3428, 4294901760
        %3430 = vmatmul.f32.gmra.mxu0 %v3429
        %v3431 = vpop.f32.mrf.mxu0
        %v3432 = vadd.f32 %v3324, %v3431
        %v3433 = vand.u32 %v1096, 4294901760
        %v3434 = vsub.f32 %v1096, %v3433
        %v3435 = vand.u32 %v3434, 4294901760
        %3436 = vmatmul.f32.gmra.mxu0 %v3435
        %v3437 = vpop.f32.mrf.mxu0
        %v3438 = vadd.f32 %v3329, %v3437
        %v3439 = vand.u32 %v1100, 4294901760
        %v3440 = vsub.f32 %v1100, %v3439
        %v3441 = vand.u32 %v3440, 4294901760
        %3442 = vmatmul.f32.gmra.mxu0 %v3441
        %v3443 = vpop.f32.mrf.mxu0
        %v3444 = vadd.f32 %v3334, %v3443
        %v3445 = vand.u32 %v1104, 4294901760
        %v3446 = vsub.f32 %v1104, %v3445
        %v3447 = vand.u32 %v3446, 4294901760
        %3448 = vmatmul.f32.gmra.mxu0 %v3447
        %v3449 = vpop.f32.mrf.mxu0
        %v3450 = vadd.f32 %v3339, %v3449
        %v3451 = vand.u32 %v1108, 4294901760
        %v3452 = vsub.f32 %v1108, %v3451
        %v3453 = vand.u32 %v3452, 4294901760
        %3454 = vmatmul.f32.gmra.mxu0 %v3453
        %v3455 = vpop.f32.mrf.mxu0
        %v3456 = vadd.f32 %v3344, %v3455
        %v3457 = vand.u32 %v1112, 4294901760
        %v3458 = vsub.f32 %v1112, %v3457
        %v3459 = vand.u32 %v3458, 4294901760
        %3460 = vmatmul.f32.gmra.mxu0 %v3459
        %v3461 = vpop.f32.mrf.mxu0
        %v3462 = vadd.f32 %v3349, %v3461
        %v3463 = vand.u32 %v1116, 4294901760
        %v3464 = vsub.f32 %v1116, %v3463
        %v3465 = vand.u32 %v3464, 4294901760
        %3466 = vmatmul.f32.gmra.mxu0 %v3465
        %v3467 = vpop.f32.mrf.mxu0
        %v3468 = vadd.f32 %v3354, %v3467
        %3469 = vdwg.mxu0
        %3470 = vmatpush.xpose.msra.mxu0 0.0
        %3471 = vmatpush.xpose.msra.mxu0 0.0
        %3472 = vmatpush.xpose.msra.mxu0 0.0
        %3473 = vmatpush.xpose.msra.mxu0 0.0
        %3474 = vmatpush.xpose.msra.mxu0 0.0
        %3475 = vmatpush.xpose.msra.mxu0 0.0
        %3476 = vmatpush.xpose.msra.mxu0 0.0
        %3477 = vmatpush.xpose.msra.mxu0 0.0
        %3478 = vmatpush.xpose.msra.mxu0 0.0
        %3479 = vmatpush.xpose.msra.mxu0 0.0
        %3480 = vmatpush.xpose.msra.mxu0 0.0
        %3481 = vmatpush.xpose.msra.mxu0 0.0
        %3482 = vmatpush.xpose.msra.mxu0 0.0
        %3483 = vmatpush.xpose.msra.mxu0 0.0
        %3484 = vmatpush.xpose.msra.mxu0 0.0
        %v3485 = vand.u32 %v1187, 4294901760
        %v3486 = vsub.f32 %v1187, %v3485
        %v3487 = vand.u32 %v3486, 4294901760
        %3488 = vmatpush.xpose.msra.mxu0 %v3487
        %v3489 = vand.u32 %v1056, 4294901760
        %3490 = vmatmul.f32.gmra.mxu0 %v3489
        %v3491 = vpop.f32.mrf.mxu0
        %v3492 = vadd.f32 %v3378, %v3491
        %v3493 = vand.u32 %v1060, 4294901760
        %3494 = vmatmul.f32.gmra.mxu0 %v3493
        %v3495 = vpop.f32.mrf.mxu0
        %v3496 = vadd.f32 %v3384, %v3495
        %v3497 = vand.u32 %v1064, 4294901760
        %3498 = vmatmul.f32.gmra.mxu0 %v3497
        %v3499 = vpop.f32.mrf.mxu0
        %v3500 = vadd.f32 %v3390, %v3499
        %v3501 = vand.u32 %v1068, 4294901760
        %3502 = vmatmul.f32.gmra.mxu0 %v3501
        %v3503 = vpop.f32.mrf.mxu0
        %v3504 = vadd.f32 %v3396, %v3503
        %v3505 = vand.u32 %v1072, 4294901760
        %3506 = vmatmul.f32.gmra.mxu0 %v3505
        %v3507 = vpop.f32.mrf.mxu0
        %v3508 = vadd.f32 %v3402, %v3507
        %v3509 = vand.u32 %v1076, 4294901760
        %3510 = vmatmul.f32.gmra.mxu0 %v3509
        %v3511 = vpop.f32.mrf.mxu0
        %v3512 = vadd.f32 %v3408, %v3511
        %v3513 = vand.u32 %v1080, 4294901760
        %3514 = vmatmul.f32.gmra.mxu0 %v3513
        %v3515 = vpop.f32.mrf.mxu0
        %v3516 = vadd.f32 %v3414, %v3515
        %v3517 = vand.u32 %v1084, 4294901760
        %3518 = vmatmul.f32.gmra.mxu0 %v3517
        %v3519 = vpop.f32.mrf.mxu0
        %v3520 = vadd.f32 %v3420, %v3519
        %v3521 = vand.u32 %v1088, 4294901760
        %3522 = vmatmul.f32.gmra.mxu0 %v3521
        %v3523 = vpop.f32.mrf.mxu0
        %v3524 = vadd.f32 %v3426, %v3523
        %v3525 = vand.u32 %v1092, 4294901760
        %3526 = vmatmul.f32.gmra.mxu0 %v3525
        %v3527 = vpop.f32.mrf.mxu0
        %v3528 = vadd.f32 %v3432, %v3527
        %v3529 = vand.u32 %v1096, 4294901760
        %3530 = vmatmul.f32.gmra.mxu0 %v3529
        %v3531 = vpop.f32.mrf.mxu0
        %v3532 = vadd.f32 %v3438, %v3531
        %v3533 = vand.u32 %v1100, 4294901760
        %3534 = vmatmul.f32.gmra.mxu0 %v3533
        %v3535 = vpop.f32.mrf.mxu0
        %v3536 = vadd.f32 %v3444, %v3535
        %v3537 = vand.u32 %v1104, 4294901760
        %3538 = vmatmul.f32.gmra.mxu0 %v3537
        %v3539 = vpop.f32.mrf.mxu0
        %v3540 = vadd.f32 %v3450, %v3539
        %v3541 = vand.u32 %v1108, 4294901760
        %3542 = vmatmul.f32.gmra.mxu0 %v3541
        %v3543 = vpop.f32.mrf.mxu0
        %v3544 = vadd.f32 %v3456, %v3543
        %v3545 = vand.u32 %v1112, 4294901760
        %3546 = vmatmul.f32.gmra.mxu0 %v3545
        %v3547 = vpop.f32.mrf.mxu0
        %v3548 = vadd.f32 %v3462, %v3547
        %v3549 = vand.u32 %v1116, 4294901760
        %3550 = vmatmul.f32.gmra.mxu0 %v3549
        %v3551 = vpop.f32.mrf.mxu0
        %v3552 = vadd.f32 %v3468, %v3551
        %3553 = vdwg.mxu0
        %3554 = vmatpush.xpose.msra.mxu0 0.0
        %3555 = vmatpush.xpose.msra.mxu0 0.0
        %3556 = vmatpush.xpose.msra.mxu0 0.0
        %3557 = vmatpush.xpose.msra.mxu0 0.0
        %3558 = vmatpush.xpose.msra.mxu0 0.0
        %3559 = vmatpush.xpose.msra.mxu0 0.0
        %3560 = vmatpush.xpose.msra.mxu0 0.0
        %3561 = vmatpush.xpose.msra.mxu0 0.0
        %3562 = vmatpush.xpose.msra.mxu0 0.0
        %3563 = vmatpush.xpose.msra.mxu0 0.0
        %3564 = vmatpush.xpose.msra.mxu0 0.0
        %3565 = vmatpush.xpose.msra.mxu0 0.0
        %3566 = vmatpush.xpose.msra.mxu0 0.0
        %3567 = vmatpush.xpose.msra.mxu0 0.0
        %3568 = vmatpush.xpose.msra.mxu0 0.0
        %v3569 = vand.u32 %v1187, 4294901760
        %3570 = vmatpush.xpose.msra.mxu0 %v3569
        %v3571 = vand.u32 %v1056, 4294901760
        %3572 = vmatmul.f32.gmra.mxu0 %v3571
        %v3573 = vpop.f32.mrf.mxu0
        %v3574 = vadd.f32 %v3492, %v3573
        %v3575 = vand.u32 %v1060, 4294901760
        %3576 = vmatmul.f32.gmra.mxu0 %v3575
        %v3577 = vpop.f32.mrf.mxu0
        %v3578 = vadd.f32 %v3496, %v3577
        %v3579 = vand.u32 %v1064, 4294901760
        %3580 = vmatmul.f32.gmra.mxu0 %v3579
        %v3581 = vpop.f32.mrf.mxu0
        %v3582 = vadd.f32 %v3500, %v3581
        %v3583 = vand.u32 %v1068, 4294901760
        %3584 = vmatmul.f32.gmra.mxu0 %v3583
        %v3585 = vpop.f32.mrf.mxu0
        %v3586 = vadd.f32 %v3504, %v3585
        %v3587 = vand.u32 %v1072, 4294901760
        %3588 = vmatmul.f32.gmra.mxu0 %v3587
        %v3589 = vpop.f32.mrf.mxu0
        %v3590 = vadd.f32 %v3508, %v3589
        %v3591 = vand.u32 %v1076, 4294901760
        %3592 = vmatmul.f32.gmra.mxu0 %v3591
        %v3593 = vpop.f32.mrf.mxu0
        %v3594 = vadd.f32 %v3512, %v3593
        %v3595 = vand.u32 %v1080, 4294901760
        %3596 = vmatmul.f32.gmra.mxu0 %v3595
        %v3597 = vpop.f32.mrf.mxu0
        %v3598 = vadd.f32 %v3516, %v3597
        %v3599 = vand.u32 %v1084, 4294901760
        %3600 = vmatmul.f32.gmra.mxu0 %v3599
        %v3601 = vpop.f32.mrf.mxu0
        %v3602 = vadd.f32 %v3520, %v3601
        %v3603 = vand.u32 %v1088, 4294901760
        %3604 = vmatmul.f32.gmra.mxu0 %v3603
        %v3605 = vpop.f32.mrf.mxu0
        %v3606 = vadd.f32 %v3524, %v3605
        %v3607 = vand.u32 %v1092, 4294901760
        %3608 = vmatmul.f32.gmra.mxu0 %v3607
        %v3609 = vpop.f32.mrf.mxu0
        %v3610 = vadd.f32 %v3528, %v3609
        %v3611 = vand.u32 %v1096, 4294901760
        %3612 = vmatmul.f32.gmra.mxu0 %v3611
        %v3613 = vpop.f32.mrf.mxu0
        %v3614 = vadd.f32 %v3532, %v3613
        %v3615 = vand.u32 %v1100, 4294901760
        %3616 = vmatmul.f32.gmra.mxu0 %v3615
        %v3617 = vpop.f32.mrf.mxu0
        %v3618 = vadd.f32 %v3536, %v3617
        %v3619 = vand.u32 %v1104, 4294901760
        %3620 = vmatmul.f32.gmra.mxu0 %v3619
        %v3621 = vpop.f32.mrf.mxu0
        %v3622 = vadd.f32 %v3540, %v3621
        %v3623 = vand.u32 %v1108, 4294901760
        %3624 = vmatmul.f32.gmra.mxu0 %v3623
        %v3625 = vpop.f32.mrf.mxu0
        %v3626 = vadd.f32 %v3544, %v3625
        %v3627 = vand.u32 %v1112, 4294901760
        %3628 = vmatmul.f32.gmra.mxu0 %v3627
        %v3629 = vpop.f32.mrf.mxu0
        %v3630 = vadd.f32 %v3548, %v3629
        %v3631 = vand.u32 %v1116, 4294901760
        %3632 = vmatmul.f32.gmra.mxu0 %v3631
        %v3633 = vpop.f32.mrf.mxu0
        %v3634 = vadd.f32 %v3552, %v3633
        %3635 = vdwg.mxu0
        %v3636 = vrcp.pop %v3574
        %v3637 = vrcp.pop %v3578
        %v3638 = vrcp.pop %v3582
        %v3639 = vrcp.pop %v3586
        %v3640 = vrcp.pop %v3590
        %v3641 = vrcp.pop %v3594
        %v3642 = vrcp.pop %v3598
        %v3643 = vrcp.pop %v3602
        %v3644 = vrcp.pop %v3606
        %v3645 = vrcp.pop %v3610
        %v3646 = vrcp.pop %v3614
        %v3647 = vrcp.pop %v3618
        %v3648 = vrcp.pop %v3622
        %v3649 = vrcp.pop %v3626
        %v3650 = vrcp.pop %v3630
        %v3651 = vrcp.pop %v3634
        %3668 = vrot.lane.b32.xlu0 %v3636, 127
        %v3669 = vpop.permute.xlu0 %3668
        %3670 = vrot.lane.b32.xlu0 %v3637, 127
        %v3671 = vpop.permute.xlu0 %3670
        %3672 = vrot.lane.b32.xlu0 %v3638, 127
        %v3673 = vpop.permute.xlu0 %3672
        %3674 = vrot.lane.b32.xlu0 %v3639, 127
        %v3675 = vpop.permute.xlu0 %3674
        %3676 = vrot.lane.b32.xlu0 %v3640, 127
        %v3677 = vpop.permute.xlu0 %3676
        %3678 = vrot.lane.b32.xlu0 %v3641, 127
        %v3679 = vpop.permute.xlu0 %3678
        %3680 = vrot.lane.b32.xlu0 %v3642, 127
        %v3681 = vpop.permute.xlu0 %3680
        %3682 = vrot.lane.b32.xlu0 %v3643, 127
        %v3683 = vpop.permute.xlu0 %3682
        %3684 = vrot.lane.b32.xlu0 %v3644, 127
        %v3685 = vpop.permute.xlu0 %3684
        %3686 = vrot.lane.b32.xlu0 %v3645, 127
        %v3687 = vpop.permute.xlu0 %3686
        %3688 = vrot.lane.b32.xlu0 %v3646, 127
        %v3689 = vpop.permute.xlu0 %3688
        %3690 = vrot.lane.b32.xlu0 %v3647, 127
        %v3691 = vpop.permute.xlu0 %3690
        %3692 = vrot.lane.b32.xlu0 %v3648, 127
        %v3693 = vpop.permute.xlu0 %3692
        %3694 = vrot.lane.b32.xlu0 %v3649, 127
        %v3695 = vpop.permute.xlu0 %3694
        %3696 = vrot.lane.b32.xlu0 %v3650, 127
        %v3697 = vpop.permute.xlu0 %3696
        %3698 = vrot.lane.b32.xlu0 %v3651, 127
        %v3699 = vpop.permute.xlu0 %3698
        %v3716 = vmul.f32 %v3574, %v3669
        %v3717 = vmul.f32 %v3578, %v3671
        %v3718 = vmul.f32 %v3582, %v3673
        %v3719 = vmul.f32 %v3586, %v3675
        %v3720 = vmul.f32 %v3590, %v3677
        %v3721 = vmul.f32 %v3594, %v3679
        %v3722 = vmul.f32 %v3598, %v3681
        %v3723 = vmul.f32 %v3602, %v3683
        %v3724 = vmul.f32 %v3606, %v3685
        %v3725 = vmul.f32 %v3610, %v3687
        %v3726 = vmul.f32 %v3614, %v3689
        %v3727 = vmul.f32 %v3618, %v3691
        %v3728 = vmul.f32 %v3622, %v3693
        %v3729 = vmul.f32 %v3626, %v3695
        %v3730 = vmul.f32 %v3630, %v3697
        %v3731 = vmul.f32 %v3634, %v3699
        %vm3732 = vcmask 7168
        %3733 = vst.msk [vmem:[%s210] sm:$0xff] %vm3732, %v3716
        %3734 = vst.msk [vmem:[%s210 + $0x8] sm:$0xff] %vm3732, %v3717
        %3735 = vst.msk [vmem:[%s210 + $0x10] sm:$0xff] %vm3732, %v3718
        %3736 = vst.msk [vmem:[%s210 + $0x18] sm:$0xff] %vm3732, %v3719
        %3737 = vst.msk [vmem:[%s210 + $0x20] sm:$0xff] %vm3732, %v3720
        %3738 = vst.msk [vmem:[%s210 + $0x28] sm:$0xff] %vm3732, %v3721
        %3739 = vst.msk [vmem:[%s210 + $0x30] sm:$0xff] %vm3732, %v3722
        %3740 = vst.msk [vmem:[%s210 + $0x38] sm:$0xff] %vm3732, %v3723
        %3741 = vst.msk [vmem:[%s210 + $0x40] sm:$0xff] %vm3732, %v3724
        %3742 = vst.msk [vmem:[%s210 + $0x48] sm:$0xff] %vm3732, %v3725
        %3743 = vst.msk [vmem:[%s210 + $0x50] sm:$0xff] %vm3732, %v3726
        %3744 = vst.msk [vmem:[%s210 + $0x58] sm:$0xff] %vm3732, %v3727
        %3745 = vst.msk [vmem:[%s210 + $0x60] sm:$0xff] %vm3732, %v3728
        %3746 = vst.msk [vmem:[%s210 + $0x68] sm:$0xff] %vm3732, %v3729
        %3747 = vst.msk [vmem:[%s210 + $0x70] sm:$0xff] %vm3732, %v3730
        %3748 = vst.msk [vmem:[%s210 + $0x78] sm:$0xff] %vm3732, %v3731
        %s3749 = smul.u32 16, %s19
        %p3750 = scmp.lt.s32.totalorder %s3749, 63
        %s3751 = scalar_select %p3750, %s3749, 63
        %s3752 = smul.addr %s3751, 8
        %s3753 = scalar_lea.vmem %s3, %s3752
        %s3754 = sand.u32 %s121, 1
        %s3755 = scalar_lea.sflag [#allocation3], %s3754
        %s3756 = sand.u32 %s121, 1
        %s3757 = smul.addr %s3756, 512
        %s3758 = scalar_lea.vmem [#allocation2], %s3757
        // Predicated region
        $region33: #{tpu_custom_call.1} parent=31 // pred_check
          %p3759 = pneg %p105
        $region34: #{tpu_custom_call.1} parent=31 // pred_check_branch
          %3761 = sbr.rel (%p3759) target = $region36
        $region35: #{tpu_custom_call.1} parent=31 // pred_region
          %s3762 = smul.u32 16, %s19
        $region36: #{tpu_custom_call.1} parent=31 // pred_fallthru
          _
        // Predicated region
        $region37: #{tpu_custom_call.1} parent=31 // pred_check
          %p3763 = pneg %p131
        $region38: #{tpu_custom_call.1} parent=31 // pred_check_branch
          %3765 = sbr.rel (%p3763) target = $region40
        $region39: #{tpu_custom_call.1} parent=31 // pred_region
          %s3766 = smul.u32 16, %s19
          %3768 = vsyncadd %s3755, 0
          %s3769 = smul.addr %s3766, 4
          %s3770 = smul.addr %s3769, 8
          %s3771 = scalar_lea.hbm %s4, %s3770
          %s3772 = sshll.u32 %s3758, 4
          %s3773 = int_to_ptr.vmem [resolvable:$true] %s3772
          %s3774 = sshll.u32 %s3771, 4
          %s3775 = int_to_ptr.hbm [resolvable:$true] %s3774
          %3780 = dma.vmem_to_hbm [thread:$0]  %s3773, 8192, %s3775, %s3755, 512, 512, 32
        $region40: #{tpu_custom_call.1} parent=31 // pred_fallthru
          _
      $region32: #{tpu_custom_call.1} parent=5 // pred_fallthru
        _
      %p3781 = scmp.le.s32.totalorder 2, %s14
      // Predicated region
      $region41: #{tpu_custom_call.1} parent=5 // pred_check
        %p3782 = pneg %p3781
      $region42: #{tpu_custom_call.1} parent=5 // pred_check_branch
        %3784 = sbr.rel (%p3782) target = $region44
      $region43: #{tpu_custom_call.1} parent=5 // pred_region
        %s3785 = ssub.s32 %s14, 2
        // Predicated region
        $region45: #{tpu_custom_call.1} parent=43 // pred_check
          %p3786 = pneg %p111
        $region46: #{tpu_custom_call.1} parent=43 // pred_check_branch
          %3788 = sbr.rel (%p3786) target = $region48
        $region47: #{tpu_custom_call.1} parent=43 // pred_region
          %s3789 = smul.u32 16, %s20
          %p3790 = scmp.lt.s32.totalorder %s3789, 63
          %s3791 = scalar_select %p3790, %s3789, 63
          %s3792 = smul.addr %s3791, 8
          %s3793 = scalar_lea.vmem %s3, %s3792
        $region48: #{tpu_custom_call.1} parent=43 // pred_fallthru
          _
        // Predicated region
        $region49: #{tpu_custom_call.1} parent=43 // pred_check
          %p3794 = pneg %p137
        $region50: #{tpu_custom_call.1} parent=43 // pred_check_branch
          %3796 = sbr.rel (%p3794) target = $region52
        $region51: #{tpu_custom_call.1} parent=43 // pred_region
          %s3797 = sand.u32 %s122, 1
          %s3798 = scalar_lea.sflag [#allocation3], %s3797
          %s3799 = sand.u32 %s122, 1
          %s3800 = smul.addr %s3799, 512
          %s3801 = scalar_lea.vmem [#allocation2], %s3800
          %3803 = dma.done %s3798, 8192
        $region52: #{tpu_custom_call.1} parent=43 // pred_fallthru
          _
      $region44: #{tpu_custom_call.1} parent=5 // pred_fallthru
        _
    $region6: #{tpu_custom_call.1} parent=1 // loop_footer
      %s18 = sadd.s32 1, %s14
    $region7: #{tpu_custom_call.1} parent=1 // loop_footer_branch
      %13 = sbr.rel target = $region3
    $region8: #{tpu_custom_call.1} parent=1 // loop_exit
      _
    %3804 = vsyncpa [#allocation3], 1
    %s3805 = scalar_lea.sflag [#allocation3], 1
    %3806 = vsyncpa %s3805, 1

</llo_original>
